<compile_context>
chip_gen: v6e
topology: v6e:2x2x1
jax: 0.10.0
libtpu: 0.0.40
codegen_flags: <defaults>
</compile_context>

<pallas_src>
import jax
import jax.numpy as jnp
from jax.experimental import pallas as pl
from jax.experimental.pallas import tpu as pltpu

# ----------------------------- problem sizes --------------------------------
B = 2            # batch
L_TEXT = 8       # text sequence length
NUM_CLS = 3      # <cls> tokens appended (matches module: num_cls = 3)
NCAM = 3         # number of cameras (one cls token per camera)
C_IMG, H_IMG, W_IMG = 3, 16, 16
PATCH = 4
P_PER_CAM = (H_IMG // PATCH) * (W_IMG // PATCH)       # 16 patches / camera
PATCH_DIM = C_IMG * PATCH * PATCH                     # 48
K_PAD = 128      # patch contraction dim zero-padded to a lane-dense width
D = 128          # hidden size (stand-in for t5-base d_model=768)
DFF = 256        # FFN hidden (stand-in for t5-base d_ff)
VOCAB = 64
CLS_ID = 1       # stand-in for tokenizer.convert_tokens_to_ids('<cls>')

S1_VALID = L_TEXT + NUM_CLS             # 11  (text encoder sequence)
S1_PAD = 16                             # padded to a multiple of 8 sublanes
S2_VALID = L_TEXT + NCAM * P_PER_CAM    # 56  (combined multimodal sequence)
S2_PAD = 64                             # padded to a multiple of 8 sublanes

NEG_INF = -1e30                         # finite "masked" score (avoids exp NaN)

_VMEM = pl.BlockSpec(memory_space=pltpu.MemorySpace.VMEM)  # whole array in VMEM
_SMEM = pl.BlockSpec(memory_space=pltpu.MemorySpace.SMEM)  # whole array in SMEM


# --------------------------- shared T5-style block ----------------------------
def _t5_block(x, wqkv, wo, w1, w2, ln1, ln2, *, s_valid):
    """Pre-norm T5 block: RMSNorm -> single-head self-attn -> RMSNorm -> ReLU FFN.
    x: (B, S, D) f32 (padded); key positions >= s_valid are masked from softmax.
    Matmuls run in bf16 on the MXU with f32 accumulation."""
    Bb, S, Dd = x.shape

    # --- self-attention sub-block (T5 LayerNorm = RMSNorm, no bias) ---
    var1 = jnp.mean(x * x, axis=-1, keepdims=True)
    h = x * jax.lax.rsqrt(var1 + 1e-6) * ln1                         # (B, S, D) f32
    h2 = h.reshape(Bb * S, Dd).astype(jnp.bfloat16)                  # fold batch -> big M
    # single (D, 3D) MXU pass; cast to bf16 *immediately* to keep live vregs low
    qkv = jnp.dot(h2, wqkv, preferred_element_type=jnp.float32).astype(jnp.bfloat16)
    q = qkv[:, 0 * Dd:1 * Dd].reshape(Bb, S, Dd)
    k = qkv[:, 1 * Dd:2 * Dd].reshape(Bb, S, Dd)
    v = qkv[:, 2 * Dd:3 * Dd].reshape(Bb, S, Dd)

    # batched q . k^T via dot_general (no explicit transpose); T5: no 1/sqrt(d).
    s = jnp.einsum('bqd,bkd->bqk', q, k, preferred_element_type=jnp.float32)
    key_pos = jax.lax.broadcasted_iota(jnp.int32, (1, 1, S), 2)
    s = jnp.where(key_pos < s_valid, s, NEG_INF)                     # mask padded keys
    m = jnp.max(s, axis=-1, keepdims=True)
    p = jnp.exp(s - m)
    # NOTE: approx reciprocal (~2^-12 rel. error) — use approx=False for
    # bit-tight comparison against a PyTorch softmax reference.
    p = p * pl.reciprocal(jnp.sum(p, axis=-1, keepdims=True), approx=True)
    attn = jnp.einsum('bqk,bkd->bqd', p.astype(jnp.bfloat16), v,
                      preferred_element_type=jnp.float32)            # (B, S, D) f32
    proj = jnp.dot(attn.reshape(Bb * S, Dd).astype(jnp.bfloat16), wo,
                   preferred_element_type=jnp.float32)
    x = x + proj.reshape(Bb, S, Dd)

    # --- feed-forward sub-block ---
    var2 = jnp.mean(x * x, axis=-1, keepdims=True)
    h = (x * jax.lax.rsqrt(var2 + 1e-6) * ln2).reshape(Bb * S, Dd).astype(jnp.bfloat16)
    f = jnp.maximum(jnp.dot(h, w1, preferred_element_type=jnp.float32), 0.0)
    o2 = jnp.dot(f.astype(jnp.bfloat16), w2, preferred_element_type=jnp.float32)
    return x + o2.reshape(Bb, S, Dd)


# ----------------------------- fused Pallas kernel ----------------------------
def _fused_forward_kernel(ids_ref, emb_ref, patch_ref, wpatch_ref, mod_ref,
                          t_wqkv, t_wo, t_w1, t_w2, t_ln1, t_ln2,
                          m_wqkv, m_wo, m_w1, m_w2, m_ln1, m_ln2,
                          out_ref, x1_sc):
    """Whole DriveT5VisionModel forward in one kernel invocation:
       embedding gather + <cls> append + text-encoder block + patch-embed +
       cls conditioning + modality add + combined assembly + LM-encoder block."""
    # ---- ImageProcessor.forward: build the padded text-encoder input --------
    x1_sc[...] = jnp.zeros_like(x1_sc)                  # also zeros pad rows 11..15
    cls_emb = emb_ref[pl.ds(CLS_ID, 1), :]              # (1, D) shared <cls> embedding
    for b in range(B):
        base = b * S1_PAD
        for l in range(L_TEXT):                         # in-kernel embedding gather
            tok = ids_ref[b, l]                         # SMEM scalar read
            x1_sc[pl.ds(base + l, 1), :] = emb_ref[pl.ds(tok, 1), :]
        for j in range(NUM_CLS):                        # append 3 <cls> tokens
            x1_sc[pl.ds(base + L_TEXT + j, 1), :] = cls_emb

    # ---- text_model.encoder stand-in (single T5 block; real t5-base has 12) --
    x1 = x1_sc[...].reshape(B, S1_PAD, D)
    enc = _t5_block(x1, t_wqkv[...], t_wo[...], t_w1[...], t_w2[...],
                    t_ln1[...], t_ln2[...], s_valid=S1_VALID)        # (B, 16, D)

    mod = mod_ref[...]                                  # (2, D) modality embeddings
    text = enc[:, :L_TEXT, :] + mod[0:1, :]             # rows 0:8  (8-aligned)
    cls = enc[:, L_TEXT:L_TEXT + NUM_CLS, :]            # rows 8:11 (8-aligned start)

    # ---- Brain() stand-in: one lane-dense (B*NCAM*P, 128)x(128, D) MXU pass --
    feats = jnp.dot(patch_ref[...], wpatch_ref[...],
                    preferred_element_type=jnp.float32)              # (B*NCAM*P, D)
    # condition each camera's patches on its cls token (stride-0 sublane bcast)
    feats = feats.reshape(B, NCAM, P_PER_CAM, D) + cls[:, :, None, :]
    visual = feats.reshape(B, NCAM * P_PER_CAM, D) + mod[1:2, :]     # (B, 48, D)

    # ---- assemble combined sequence directly in the output block (no concat) -
    out_ref[:, 0:L_TEXT, :] = text
    out_ref[:, L_TEXT:S2_VALID, :] = visual
    out_ref[:, S2_VALID:S2_PAD, :] = jnp.zeros((B, S2_PAD - S2_VALID, D), jnp.float32)

    # ---- language_model encoder stand-in over the combined sequence ---------
    # TODO(synk): full T5 seq2seq (decoder + lm_head, labels/loss) not reproduced.
    combined = out_ref[...]
    out_ref[...] = _t5_block(combined, m_wqkv[...], m_wo[...], m_w1[...], m_w2[...],
                             m_ln1[...], m_ln2[...], s_valid=S2_VALID)
    # NOTE: padded rows 56..63 of out_ref hold residual garbage from padded
    # queries; they are stripped in the wrapper and must not be consumed.


# ----------------------------- glue / wrapper ---------------------------------
def extract_patches(imgs):
    # imgs: (B, NCAM, C, H, W)  (NCHW per camera, as in PyTorch)
    Bb, n, c, h, w = imgs.shape
    x = imgs.reshape(Bb, n, c, h // PATCH, PATCH, w // PATCH, PATCH)
    x = x.transpose(0, 1, 3, 5, 2, 4, 6)          # B, N, h', w', C, ph, pw
    return x.reshape(Bb, n, (h // PATCH) * (w // PATCH), c * PATCH * PATCH)


def init_params(key):
    ks = jax.random.split(key, 6)

    def layer(k):
        kk = jax.random.split(k, 4)
        sc = 1.0 / jnp.sqrt(jnp.float32(D))
        return {
            # fused Q|K|V projection: one (D, 3D) MXU weight instead of three
            "wqkv": (jax.random.normal(kk[0], (D, 3 * D), jnp.float32) * sc).astype(jnp.bfloat16),
            "wo": (jax.random.normal(kk[1], (D, D), jnp.float32) * sc).astype(jnp.bfloat16),
            "w1": (jax.random.normal(kk[2], (D, DFF), jnp.float32) * sc).astype(jnp.bfloat16),
            "w2": (jax.random.normal(kk[3], (DFF, D), jnp.float32)
                   * (1.0 / jnp.sqrt(jnp.float32(DFF)))).astype(jnp.bfloat16),
            "ln1": jnp.ones((1, D), jnp.float32),
            "ln2": jnp.ones((1, D), jnp.float32),
        }

    w_patch = (jax.random.normal(ks[2], (PATCH_DIM, D), jnp.float32)
               * (1.0 / jnp.sqrt(jnp.float32(PATCH_DIM))))
    w_patch = jnp.pad(w_patch, ((0, K_PAD - PATCH_DIM), (0, 0)))     # lane-dense K

    return {
        "emb": jax.random.normal(ks[0], (VOCAB, D), jnp.float32) * 0.02,   # shared input embeddings
        "mod_emb": jax.random.normal(ks[1], (2, D), jnp.float32) * 0.02,   # modality_embeddings (2, hidden)
        "w_patch": w_patch.astype(jnp.bfloat16),
        "enc_text": layer(ks[3]),   # ImageProcessor: text_model.encoder stand-in
        "enc_lm": layer(ks[4]),     # language_model(inputs_embeds=...) encoder stand-in
    }


@jax.jit
def drive_t5_vision_forward(text_ids, imgs, params):
    """Mirrors DriveT5VisionModel.forward(text_input, imgs, labels=None)."""
    # TODO(synk): Brain() is not defined in the given source; stand-in is a
    # per-camera 4x4 patch embedding conditioned on that camera's cls token.
    patches = extract_patches(imgs)                                   # (B, NCAM, P, 48)
    patches2d = patches.reshape(B * NCAM * P_PER_CAM, PATCH_DIM)
    patches2d = jnp.pad(patches2d, ((0, 0), (0, K_PAD - PATCH_DIM))).astype(jnp.bfloat16)

    t, m = params["enc_text"], params["enc_lm"]
    lm_hidden = pl.pallas_call(
        _fused_forward_kernel,
        out_shape=jax.ShapeDtypeStruct((B, S2_PAD, D), jnp.float32),
        in_specs=[_SMEM] + [_VMEM] * 16,
        out_specs=_VMEM,
        scratch_shapes=[pltpu.VMEM((B * S1_PAD, D), jnp.float32)],
    )(text_ids, params["emb"], patches2d, params["w_patch"], params["mod_emb"],
      t["wqkv"], t["wo"], t["w1"], t["w2"], t["ln1"], t["ln2"],
      m["wqkv"], m["wo"], m["w1"], m["w2"], m["ln1"], m["ln2"])
    return lm_hidden[:, :S2_VALID, :]                                 # (B, 56, D)


# ----------------------------- main --------------------------------------------
if __name__ == "__main__":
    key = jax.random.PRNGKey(0)
    k_params, k_text, k_img = jax.random.split(key, 3)

    params = init_params(k_params)
    text_ids = jax.random.randint(k_text, (B, L_TEXT), 0, VOCAB, dtype=jnp.int32)
    imgs = jax.random.normal(k_img, (B, NCAM, C_IMG, H_IMG, W_IMG), jnp.float32)

    out = drive_t5_vision_forward(text_ids, imgs, params)
    out = jax.block_until_ready(out)
    assert out.shape == (B, L_TEXT + NCAM * P_PER_CAM, D), out.shape
    assert bool(jnp.all(jnp.isfinite(out)))
    print("KERNEL_OK")
</pallas_src>

<mosaic_0001>
module attributes {stable_mosaic.version = 11 : i64} {
  func.func @_fused_forward_kernel(%arg0: memref<2x8xi32, #tpu.memory_space<smem>>, %arg1: memref<64x128xf32, #tpu.memory_space<vmem>>, %arg2: memref<96x128xbf16, #tpu.memory_space<vmem>>, %arg3: memref<128x128xbf16, #tpu.memory_space<vmem>>, %arg4: memref<2x128xf32, #tpu.memory_space<vmem>>, %arg5: memref<128x384xbf16, #tpu.memory_space<vmem>>, %arg6: memref<128x128xbf16, #tpu.memory_space<vmem>>, %arg7: memref<128x256xbf16, #tpu.memory_space<vmem>>, %arg8: memref<256x128xbf16, #tpu.memory_space<vmem>>, %arg9: memref<1x128xf32, #tpu.memory_space<vmem>>, %arg10: memref<1x128xf32, #tpu.memory_space<vmem>>, %arg11: memref<128x384xbf16, #tpu.memory_space<vmem>>, %arg12: memref<128x128xbf16, #tpu.memory_space<vmem>>, %arg13: memref<128x256xbf16, #tpu.memory_space<vmem>>, %arg14: memref<256x128xbf16, #tpu.memory_space<vmem>>, %arg15: memref<1x128xf32, #tpu.memory_space<vmem>>, %arg16: memref<1x128xf32, #tpu.memory_space<vmem>>, %arg17: memref<2x64x128xf32, #tpu.memory_space<vmem>>, %arg18: memref<32x128xf32, #tpu.memory_space<vmem>>) attributes {dimension_semantics = [], scalar_prefetch = 0 : i64, scratch_operands = 1 : i64, tpu.core_type = #tpu.core_type<tc>} {
    %cst = arith.constant 0.000000e+00 : f32
    %0 = vector.broadcast %cst : f32 to vector<32x128xf32>
    %c0 = arith.constant 0 : index
    %c0_0 = arith.constant 0 : index
    %1 = vector.load %arg18[%c0, %c0_0] : memref<32x128xf32, #tpu.memory_space<vmem>>, vector<32x128xf32>
    tpu.vector_store %arg18[%c0, %c0_0], %0 {strides = array<i32>} : memref<32x128xf32, #tpu.memory_space<vmem>>, vector<32x128xf32>,
    %c1 = arith.constant 1 : index
    %c0_1 = arith.constant 0 : index
    %2 = vector.load %arg1[%c1, %c0_1] : memref<64x128xf32, #tpu.memory_space<vmem>>, vector<1x128xf32>
    %c0_2 = arith.constant 0 : index
    %c0_3 = arith.constant 0 : index
    %3 = memref.load %arg0[%c0_2, %c0_3] : memref<2x8xi32, #tpu.memory_space<smem>>
    %4 = arith.index_cast %3 : i32 to index
    %c0_4 = arith.constant 0 : index
    %5 = vector.load %arg1[%4, %c0_4] : memref<64x128xf32, #tpu.memory_space<vmem>>, vector<1x128xf32>
    %c0_5 = arith.constant 0 : index
    %c0_6 = arith.constant 0 : index
    %6 = vector.load %arg18[%c0_5, %c0_6] : memref<32x128xf32, #tpu.memory_space<vmem>>, vector<1x128xf32>
    tpu.vector_store %arg18[%c0_5, %c0_6], %5 {strides = array<i32>} : memref<32x128xf32, #tpu.memory_space<vmem>>, vector<1x128xf32>,
    %c0_7 = arith.constant 0 : index
    %c1_8 = arith.constant 1 : index
    %7 = memref.load %arg0[%c0_7, %c1_8] : memref<2x8xi32, #tpu.memory_space<smem>>
    %8 = arith.index_cast %7 : i32 to index
    %c0_9 = arith.constant 0 : index
    %9 = vector.load %arg1[%8, %c0_9] : memref<64x128xf32, #tpu.memory_space<vmem>>, vector<1x128xf32>
    %c1_10 = arith.constant 1 : index
    %c0_11 = arith.constant 0 : index
    %10 = vector.load %arg18[%c1_10, %c0_11] : memref<32x128xf32, #tpu.memory_space<vmem>>, vector<1x128xf32>
    tpu.vector_store %arg18[%c1_10, %c0_11], %9 {strides = array<i32>} : memref<32x128xf32, #tpu.memory_space<vmem>>, vector<1x128xf32>,
    %c0_12 = arith.constant 0 : index
    %c2 = arith.constant 2 : index
    %11 = memref.load %arg0[%c0_12, %c2] : memref<2x8xi32, #tpu.memory_space<smem>>
    %12 = arith.index_cast %11 : i32 to index
    %c0_13 = arith.constant 0 : index
    %13 = vector.load %arg1[%12, %c0_13] : memref<64x128xf32, #tpu.memory_space<vmem>>, vector<1x128xf32>
    %c2_14 = arith.constant 2 : index
    %c0_15 = arith.constant 0 : index
    %14 = vector.load %arg18[%c2_14, %c0_15] : memref<32x128xf32, #tpu.memory_space<vmem>>, vector<1x128xf32>
    tpu.vector_store %arg18[%c2_14, %c0_15], %13 {strides = array<i32>} : memref<32x128xf32, #tpu.memory_space<vmem>>, vector<1x128xf32>,
    %c0_16 = arith.constant 0 : index
    %c3 = arith.constant 3 : index
    %15 = memref.load %arg0[%c0_16, %c3] : memref<2x8xi32, #tpu.memory_space<smem>>
    %16 = arith.index_cast %15 : i32 to index
    %c0_17 = arith.constant 0 : index
    %17 = vector.load %arg1[%16, %c0_17] : memref<64x128xf32, #tpu.memory_space<vmem>>, vector<1x128xf32>
    %c3_18 = arith.constant 3 : index
    %c0_19 = arith.constant 0 : index
    %18 = vector.load %arg18[%c3_18, %c0_19] : memref<32x128xf32, #tpu.memory_space<vmem>>, vector<1x128xf32>
    tpu.vector_store %arg18[%c3_18, %c0_19], %17 {strides = array<i32>} : memref<32x128xf32, #tpu.memory_space<vmem>>, vector<1x128xf32>,
    %c0_20 = arith.constant 0 : index
    %c4 = arith.constant 4 : index
    %19 = memref.load %arg0[%c0_20, %c4] : memref<2x8xi32, #tpu.memory_space<smem>>
    %20 = arith.index_cast %19 : i32 to index
    %c0_21 = arith.constant 0 : index
    %21 = vector.load %arg1[%20, %c0_21] : memref<64x128xf32, #tpu.memory_space<vmem>>, vector<1x128xf32>
    %c4_22 = arith.constant 4 : index
    %c0_23 = arith.constant 0 : index
    %22 = vector.load %arg18[%c4_22, %c0_23] : memref<32x128xf32, #tpu.memory_space<vmem>>, vector<1x128xf32>
    tpu.vector_store %arg18[%c4_22, %c0_23], %21 {strides = array<i32>} : memref<32x128xf32, #tpu.memory_space<vmem>>, vector<1x128xf32>,
    %c0_24 = arith.constant 0 : index
    %c5 = arith.constant 5 : index
    %23 = memref.load %arg0[%c0_24, %c5] : memref<2x8xi32, #tpu.memory_space<smem>>
    %24 = arith.index_cast %23 : i32 to index
    %c0_25 = arith.constant 0 : index
    %25 = vector.load %arg1[%24, %c0_25] : memref<64x128xf32, #tpu.memory_space<vmem>>, vector<1x128xf32>
    %c5_26 = arith.constant 5 : index
    %c0_27 = arith.constant 0 : index
    %26 = vector.load %arg18[%c5_26, %c0_27] : memref<32x128xf32, #tpu.memory_space<vmem>>, vector<1x128xf32>
    tpu.vector_store %arg18[%c5_26, %c0_27], %25 {strides = array<i32>} : memref<32x128xf32, #tpu.memory_space<vmem>>, vector<1x128xf32>,
    %c0_28 = arith.constant 0 : index
    %c6 = arith.constant 6 : index
    %27 = memref.load %arg0[%c0_28, %c6] : memref<2x8xi32, #tpu.memory_space<smem>>
    %28 = arith.index_cast %27 : i32 to index
    %c0_29 = arith.constant 0 : index
    %29 = vector.load %arg1[%28, %c0_29] : memref<64x128xf32, #tpu.memory_space<vmem>>, vector<1x128xf32>
    %c6_30 = arith.constant 6 : index
    %c0_31 = arith.constant 0 : index
    %30 = vector.load %arg18[%c6_30, %c0_31] : memref<32x128xf32, #tpu.memory_space<vmem>>, vector<1x128xf32>
    tpu.vector_store %arg18[%c6_30, %c0_31], %29 {strides = array<i32>} : memref<32x128xf32, #tpu.memory_space<vmem>>, vector<1x128xf32>,
    %c0_32 = arith.constant 0 : index
    %c7 = arith.constant 7 : index
    %31 = memref.load %arg0[%c0_32, %c7] : memref<2x8xi32, #tpu.memory_space<smem>>
    %32 = arith.index_cast %31 : i32 to index
    %c0_33 = arith.constant 0 : index
    %33 = vector.load %arg1[%32, %c0_33] : memref<64x128xf32, #tpu.memory_space<vmem>>, vector<1x128xf32>
    %c7_34 = arith.constant 7 : index
    %c0_35 = arith.constant 0 : index
    %34 = vector.load %arg18[%c7_34, %c0_35] : memref<32x128xf32, #tpu.memory_space<vmem>>, vector<1x128xf32>
    tpu.vector_store %arg18[%c7_34, %c0_35], %33 {strides = array<i32>} : memref<32x128xf32, #tpu.memory_space<vmem>>, vector<1x128xf32>,
    %c8 = arith.constant 8 : index
    %c0_36 = arith.constant 0 : index
    %35 = vector.load %arg18[%c8, %c0_36] : memref<32x128xf32, #tpu.memory_space<vmem>>, vector<1x128xf32>
    tpu.vector_store %arg18[%c8, %c0_36], %2 {strides = array<i32>} : memref<32x128xf32, #tpu.memory_space<vmem>>, vector<1x128xf32>,
    %c9 = arith.constant 9 : index
    %c0_37 = arith.constant 0 : index
    %36 = vector.load %arg18[%c9, %c0_37] : memref<32x128xf32, #tpu.memory_space<vmem>>, vector<1x128xf32>
    tpu.vector_store %arg18[%c9, %c0_37], %2 {strides = array<i32>} : memref<32x128xf32, #tpu.memory_space<vmem>>, vector<1x128xf32>,
    %c10 = arith.constant 10 : index
    %c0_38 = arith.constant 0 : index
    %37 = vector.load %arg18[%c10, %c0_38] : memref<32x128xf32, #tpu.memory_space<vmem>>, vector<1x128xf32>
    tpu.vector_store %arg18[%c10, %c0_38], %2 {strides = array<i32>} : memref<32x128xf32, #tpu.memory_space<vmem>>, vector<1x128xf32>,
    %c1_39 = arith.constant 1 : index
    %c0_40 = arith.constant 0 : index
    %38 = memref.load %arg0[%c1_39, %c0_40] : memref<2x8xi32, #tpu.memory_space<smem>>
    %39 = arith.index_cast %38 : i32 to index
    %c0_41 = arith.constant 0 : index
    %40 = vector.load %arg1[%39, %c0_41] : memref<64x128xf32, #tpu.memory_space<vmem>>, vector<1x128xf32>
    %c16 = arith.constant 16 : index
    %c0_42 = arith.constant 0 : index
    %41 = vector.load %arg18[%c16, %c0_42] : memref<32x128xf32, #tpu.memory_space<vmem>>, vector<1x128xf32>
    tpu.vector_store %arg18[%c16, %c0_42], %40 {strides = array<i32>} : memref<32x128xf32, #tpu.memory_space<vmem>>, vector<1x128xf32>,
    %c1_43 = arith.constant 1 : index
    %c1_44 = arith.constant 1 : index
    %42 = memref.load %arg0[%c1_43, %c1_44] : memref<2x8xi32, #tpu.memory_space<smem>>
    %43 = arith.index_cast %42 : i32 to index
    %c0_45 = arith.constant 0 : index
    %44 = vector.load %arg1[%43, %c0_45] : memref<64x128xf32, #tpu.memory_space<vmem>>, vector<1x128xf32>
    %c17 = arith.constant 17 : index
    %c0_46 = arith.constant 0 : index
    %45 = vector.load %arg18[%c17, %c0_46] : memref<32x128xf32, #tpu.memory_space<vmem>>, vector<1x128xf32>
    tpu.vector_store %arg18[%c17, %c0_46], %44 {strides = array<i32>} : memref<32x128xf32, #tpu.memory_space<vmem>>, vector<1x128xf32>,
    %c1_47 = arith.constant 1 : index
    %c2_48 = arith.constant 2 : index
    %46 = memref.load %arg0[%c1_47, %c2_48] : memref<2x8xi32, #tpu.memory_space<smem>>
    %47 = arith.index_cast %46 : i32 to index
    %c0_49 = arith.constant 0 : index
    %48 = vector.load %arg1[%47, %c0_49] : memref<64x128xf32, #tpu.memory_space<vmem>>, vector<1x128xf32>
    %c18 = arith.constant 18 : index
    %c0_50 = arith.constant 0 : index
    %49 = vector.load %arg18[%c18, %c0_50] : memref<32x128xf32, #tpu.memory_space<vmem>>, vector<1x128xf32>
    tpu.vector_store %arg18[%c18, %c0_50], %48 {strides = array<i32>} : memref<32x128xf32, #tpu.memory_space<vmem>>, vector<1x128xf32>,
    %c1_51 = arith.constant 1 : index
    %c3_52 = arith.constant 3 : index
    %50 = memref.load %arg0[%c1_51, %c3_52] : memref<2x8xi32, #tpu.memory_space<smem>>
    %51 = arith.index_cast %50 : i32 to index
    %c0_53 = arith.constant 0 : index
    %52 = vector.load %arg1[%51, %c0_53] : memref<64x128xf32, #tpu.memory_space<vmem>>, vector<1x128xf32>
    %c19 = arith.constant 19 : index
    %c0_54 = arith.constant 0 : index
    %53 = vector.load %arg18[%c19, %c0_54] : memref<32x128xf32, #tpu.memory_space<vmem>>, vector<1x128xf32>
    tpu.vector_store %arg18[%c19, %c0_54], %52 {strides = array<i32>} : memref<32x128xf32, #tpu.memory_space<vmem>>, vector<1x128xf32>,
    %c1_55 = arith.constant 1 : index
    %c4_56 = arith.constant 4 : index
    %54 = memref.load %arg0[%c1_55, %c4_56] : memref<2x8xi32, #tpu.memory_space<smem>>
    %55 = arith.index_cast %54 : i32 to index
    %c0_57 = arith.constant 0 : index
    %56 = vector.load %arg1[%55, %c0_57] : memref<64x128xf32, #tpu.memory_space<vmem>>, vector<1x128xf32>
    %c20 = arith.constant 20 : index
    %c0_58 = arith.constant 0 : index
    %57 = vector.load %arg18[%c20, %c0_58] : memref<32x128xf32, #tpu.memory_space<vmem>>, vector<1x128xf32>
    tpu.vector_store %arg18[%c20, %c0_58], %56 {strides = array<i32>} : memref<32x128xf32, #tpu.memory_space<vmem>>, vector<1x128xf32>,
    %c1_59 = arith.constant 1 : index
    %c5_60 = arith.constant 5 : index
    %58 = memref.load %arg0[%c1_59, %c5_60] : memref<2x8xi32, #tpu.memory_space<smem>>
    %59 = arith.index_cast %58 : i32 to index
    %c0_61 = arith.constant 0 : index
    %60 = vector.load %arg1[%59, %c0_61] : memref<64x128xf32, #tpu.memory_space<vmem>>, vector<1x128xf32>
    %c21 = arith.constant 21 : index
    %c0_62 = arith.constant 0 : index
    %61 = vector.load %arg18[%c21, %c0_62] : memref<32x128xf32, #tpu.memory_space<vmem>>, vector<1x128xf32>
    tpu.vector_store %arg18[%c21, %c0_62], %60 {strides = array<i32>} : memref<32x128xf32, #tpu.memory_space<vmem>>, vector<1x128xf32>,
    %c1_63 = arith.constant 1 : index
    %c6_64 = arith.constant 6 : index
    %62 = memref.load %arg0[%c1_63, %c6_64] : memref<2x8xi32, #tpu.memory_space<smem>>
    %63 = arith.index_cast %62 : i32 to index
    %c0_65 = arith.constant 0 : index
    %64 = vector.load %arg1[%63, %c0_65] : memref<64x128xf32, #tpu.memory_space<vmem>>, vector<1x128xf32>
    %c22 = arith.constant 22 : index
    %c0_66 = arith.constant 0 : index
    %65 = vector.load %arg18[%c22, %c0_66] : memref<32x128xf32, #tpu.memory_space<vmem>>, vector<1x128xf32>
    tpu.vector_store %arg18[%c22, %c0_66], %64 {strides = array<i32>} : memref<32x128xf32, #tpu.memory_space<vmem>>, vector<1x128xf32>,
    %c1_67 = arith.constant 1 : index
    %c7_68 = arith.constant 7 : index
    %66 = memref.load %arg0[%c1_67, %c7_68] : memref<2x8xi32, #tpu.memory_space<smem>>
    %67 = arith.index_cast %66 : i32 to index
    %c0_69 = arith.constant 0 : index
    %68 = vector.load %arg1[%67, %c0_69] : memref<64x128xf32, #tpu.memory_space<vmem>>, vector<1x128xf32>
    %c23 = arith.constant 23 : index
    %c0_70 = arith.constant 0 : index
    %69 = vector.load %arg18[%c23, %c0_70] : memref<32x128xf32, #tpu.memory_space<vmem>>, vector<1x128xf32>
    tpu.vector_store %arg18[%c23, %c0_70], %68 {strides = array<i32>} : memref<32x128xf32, #tpu.memory_space<vmem>>, vector<1x128xf32>,
    %c24 = arith.constant 24 : index
    %c0_71 = arith.constant 0 : index
    %70 = vector.load %arg18[%c24, %c0_71] : memref<32x128xf32, #tpu.memory_space<vmem>>, vector<1x128xf32>
    tpu.vector_store %arg18[%c24, %c0_71], %2 {strides = array<i32>} : memref<32x128xf32, #tpu.memory_space<vmem>>, vector<1x128xf32>,
    %c25 = arith.constant 25 : index
    %c0_72 = arith.constant 0 : index
    %71 = vector.load %arg18[%c25, %c0_72] : memref<32x128xf32, #tpu.memory_space<vmem>>, vector<1x128xf32>
    tpu.vector_store %arg18[%c25, %c0_72], %2 {strides = array<i32>} : memref<32x128xf32, #tpu.memory_space<vmem>>, vector<1x128xf32>,
    %c26 = arith.constant 26 : index
    %c0_73 = arith.constant 0 : index
    %72 = vector.load %arg18[%c26, %c0_73] : memref<32x128xf32, #tpu.memory_space<vmem>>, vector<1x128xf32>
    tpu.vector_store %arg18[%c26, %c0_73], %2 {strides = array<i32>} : memref<32x128xf32, #tpu.memory_space<vmem>>, vector<1x128xf32>,
    %c0_74 = arith.constant 0 : index
    %c0_75 = arith.constant 0 : index
    %73 = vector.load %arg18[%c0_74, %c0_75] : memref<32x128xf32, #tpu.memory_space<vmem>>, vector<32x128xf32>
    %74 = vector.shape_cast %73 : vector<32x128xf32> to vector<2x16x128xf32>
    %c0_76 = arith.constant 0 : index
    %c0_77 = arith.constant 0 : index
    %75 = vector.load %arg5[%c0_76, %c0_77] : memref<128x384xbf16, #tpu.memory_space<vmem>>, vector<128x384xbf16>
    %c0_78 = arith.constant 0 : index
    %c0_79 = arith.constant 0 : index
    %76 = vector.load %arg6[%c0_78, %c0_79] : memref<128x128xbf16, #tpu.memory_space<vmem>>, vector<128x128xbf16>
    %c0_80 = arith.constant 0 : index
    %c0_81 = arith.constant 0 : index
    %77 = vector.load %arg7[%c0_80, %c0_81] : memref<128x256xbf16, #tpu.memory_space<vmem>>, vector<128x256xbf16>
    %c0_82 = arith.constant 0 : index
    %c0_83 = arith.constant 0 : index
    %78 = vector.load %arg8[%c0_82, %c0_83] : memref<256x128xbf16, #tpu.memory_space<vmem>>, vector<256x128xbf16>
    %c0_84 = arith.constant 0 : index
    %c0_85 = arith.constant 0 : index
    %79 = vector.load %arg9[%c0_84, %c0_85] : memref<1x128xf32, #tpu.memory_space<vmem>>, vector<1x128xf32>
    %c0_86 = arith.constant 0 : index
    %c0_87 = arith.constant 0 : index
    %80 = vector.load %arg10[%c0_86, %c0_87] : memref<1x128xf32, #tpu.memory_space<vmem>>, vector<1x128xf32>
    %81 = arith.mulf %74, %74 : vector<2x16x128xf32>
    %cst_88 = arith.constant dense<0.000000e+00> : vector<2x16xf32>
    %82 = vector.multi_reduction <add>, %81, %cst_88 [2] : vector<2x16x128xf32> to vector<2x16xf32>
    %83 = vector.shape_cast %82 : vector<2x16xf32> to vector<2x16x1xf32>
    %cst_89 = arith.constant 1.280000e+02 : f32
    %84 = vector.broadcast %cst_89 : f32 to vector<2x16x1xf32>
    %85 = arith.divf %83, %84 : vector<2x16x1xf32>
    %cst_90 = arith.constant 9.99999997E-7 : f32
    %86 = vector.broadcast %cst_90 : f32 to vector<2x16x1xf32>
    %87 = arith.addf %85, %86 : vector<2x16x1xf32>
    %88 = math.rsqrt %87 : vector<2x16x1xf32>
    %89 = vector.broadcast %88 : vector<2x16x1xf32> to vector<2x16x128xf32>
    %90 = arith.mulf %74, %89 : vector<2x16x128xf32>
    %91 = vector.shape_cast %79 : vector<1x128xf32> to vector<1x1x128xf32>
    %92 = vector.broadcast %91 : vector<1x1x128xf32> to vector<2x16x128xf32>
    %93 = arith.mulf %90, %92 : vector<2x16x128xf32>
    %94 = vector.shape_cast %93 : vector<2x16x128xf32> to vector<32x128xf32>
    %95 = arith.truncf %94 : vector<32x128xf32> to vector<32x128xbf16>
    %cst_91 = arith.constant dense<0.000000e+00> : vector<32x384xf32>
    %96 = tpu.matmul %95, %75, %cst_91 {dimension_numbers = #tpu.dot_dimension_numbers<[1], [0], [0], [1], [0, 0, 1, 1], [], []>} : vector<32x128xbf16>, vector<128x384xbf16>, vector<32x384xf32> -> vector<32x384xf32>
    %97 = arith.truncf %96 : vector<32x384xf32> to vector<32x384xbf16>
    %98 = vector.extract_strided_slice %97 {offsets = [0, 0], sizes = [32, 128], strides = [1, 1]} : vector<32x384xbf16> to vector<32x128xbf16>
    %99 = vector.shape_cast %98 : vector<32x128xbf16> to vector<2x16x128xbf16>
    %100 = vector.extract_strided_slice %97 {offsets = [0, 128], sizes = [32, 128], strides = [1, 1]} : vector<32x384xbf16> to vector<32x128xbf16>
    %101 = vector.shape_cast %100 : vector<32x128xbf16> to vector<2x16x128xbf16>
    %102 = vector.extract_strided_slice %97 {offsets = [0, 256], sizes = [32, 128], strides = [1, 1]} : vector<32x384xbf16> to vector<32x128xbf16>
    %103 = vector.shape_cast %102 : vector<32x128xbf16> to vector<2x16x128xbf16>
    "tpu.trace_start"() <{level = 10 : i32, message = "bqd,bkd->bqk"}> : () -> ()
    %cst_92 = arith.constant dense<0.000000e+00> : vector<2x16x16xf32>
    %104 = tpu.matmul %99, %101, %cst_92 {dimension_numbers = #tpu.dot_dimension_numbers<[2], [2], [1], [1], [0, 0, 0, 1, 1, 1], [0], [0]>} : vector<2x16x128xbf16>, vector<2x16x128xbf16>, vector<2x16x16xf32> -> vector<2x16x16xf32>
    "tpu.trace_stop"() : () -> ()
    %105 = tpu.iota {dimensions = array<i32: 2>} : vector<1x1x16xi32>
    %c11_i32 = arith.constant 11 : i32
    %106 = vector.broadcast %c11_i32 : i32 to vector<1x1x16xi32>
    %107 = arith.cmpi slt, %105, %106 : vector<1x1x16xi32>
    %cst_93 = arith.constant -1.000000e+30 : f32
    %108 = vector.shape_cast %107 : vector<1x1x16xi1> to vector<1x1x16xi1>
    %109 = vector.broadcast %108 : vector<1x1x16xi1> to vector<2x16x16xi1>
    %110 = vector.broadcast %cst_93 : f32 to vector<2x16x16xf32>
    %111 = arith.select %109, %104, %110 : vector<2x16x16xi1>, vector<2x16x16xf32>
    %cst_94 = arith.constant dense<0xFF800000> : vector<2x16xf32>
    %112 = vector.multi_reduction <maximumf>, %111, %cst_94 [2] : vector<2x16x16xf32> to vector<2x16xf32>
    %113 = vector.shape_cast %112 : vector<2x16xf32> to vector<2x16x1xf32>
    %114 = vector.broadcast %113 : vector<2x16x1xf32> to vector<2x16x16xf32>
    %115 = arith.subf %111, %114 : vector<2x16x16xf32>
    %116 = math.exp %115 : vector<2x16x16xf32>
    %cst_95 = arith.constant dense<0.000000e+00> : vector<2x16xf32>
    %117 = vector.multi_reduction <add>, %116, %cst_95 [2] : vector<2x16x16xf32> to vector<2x16xf32>
    %118 = vector.shape_cast %117 : vector<2x16xf32> to vector<2x16x1xf32>
    %119 = tpu.reciprocal %118 {approx = true} : vector<2x16x1xf32> -> vector<2x16x1xf32>
    %120 = vector.broadcast %119 : vector<2x16x1xf32> to vector<2x16x16xf32>
    %121 = arith.mulf %116, %120 : vector<2x16x16xf32>
    %122 = arith.truncf %121 : vector<2x16x16xf32> to vector<2x16x16xbf16>
    "tpu.trace_start"() <{level = 10 : i32, message = "bqk,bkd->bqd"}> : () -> ()
    %cst_96 = arith.constant dense<0.000000e+00> : vector<2x16x128xf32>
    %123 = tpu.matmul %122, %103, %cst_96 {dimension_numbers = #tpu.dot_dimension_numbers<[2], [1], [1], [2], [0, 0, 0, 1, 1, 2], [0], [0]>} : vector<2x16x16xbf16>, vector<2x16x128xbf16>, vector<2x16x128xf32> -> vector<2x16x128xf32>
    "tpu.trace_stop"() : () -> ()
    %124 = vector.shape_cast %123 : vector<2x16x128xf32> to vector<32x128xf32>
    %125 = arith.truncf %124 : vector<32x128xf32> to vector<32x128xbf16>
    %cst_97 = arith.constant dense<0.000000e+00> : vector<32x128xf32>
    %126 = tpu.matmul %125, %76, %cst_97 {dimension_numbers = #tpu.dot_dimension_numbers<[1], [0], [0], [1], [0, 0, 1, 1], [], []>} : vector<32x128xbf16>, vector<128x128xbf16>, vector<32x128xf32> -> vector<32x128xf32>
    %127 = vector.shape_cast %126 : vector<32x128xf32> to vector<2x16x128xf32>
    %128 = arith.addf %74, %127 : vector<2x16x128xf32>
    %129 = arith.mulf %128, %128 : vector<2x16x128xf32>
    %cst_98 = arith.constant dense<0.000000e+00> : vector<2x16xf32>
    %130 = vector.multi_reduction <add>, %129, %cst_98 [2] : vector<2x16x128xf32> to vector<2x16xf32>
    %131 = vector.shape_cast %130 : vector<2x16xf32> to vector<2x16x1xf32>
    %cst_99 = arith.constant 1.280000e+02 : f32
    %132 = vector.broadcast %cst_99 : f32 to vector<2x16x1xf32>
    %133 = arith.divf %131, %132 : vector<2x16x1xf32>
    %cst_100 = arith.constant 9.99999997E-7 : f32
    %134 = vector.broadcast %cst_100 : f32 to vector<2x16x1xf32>
    %135 = arith.addf %133, %134 : vector<2x16x1xf32>
    %136 = math.rsqrt %135 : vector<2x16x1xf32>
    %137 = vector.broadcast %136 : vector<2x16x1xf32> to vector<2x16x128xf32>
    %138 = arith.mulf %128, %137 : vector<2x16x128xf32>
    %139 = vector.shape_cast %80 : vector<1x128xf32> to vector<1x1x128xf32>
    %140 = vector.broadcast %139 : vector<1x1x128xf32> to vector<2x16x128xf32>
    %141 = arith.mulf %138, %140 : vector<2x16x128xf32>
    %142 = vector.shape_cast %141 : vector<2x16x128xf32> to vector<32x128xf32>
    %143 = arith.truncf %142 : vector<32x128xf32> to vector<32x128xbf16>
    %cst_101 = arith.constant dense<0.000000e+00> : vector<32x256xf32>
    %144 = tpu.matmul %143, %77, %cst_101 {dimension_numbers = #tpu.dot_dimension_numbers<[1], [0], [0], [1], [0, 0, 1, 1], [], []>} : vector<32x128xbf16>, vector<128x256xbf16>, vector<32x256xf32> -> vector<32x256xf32>
    %cst_102 = arith.constant 0.000000e+00 : f32
    %145 = vector.broadcast %cst_102 : f32 to vector<32x256xf32>
    %146 = arith.maximumf %144, %145 : vector<32x256xf32>
    %147 = arith.truncf %146 : vector<32x256xf32> to vector<32x256xbf16>
    %cst_103 = arith.constant dense<0.000000e+00> : vector<32x128xf32>
    %148 = tpu.matmul %147, %78, %cst_103 {dimension_numbers = #tpu.dot_dimension_numbers<[1], [0], [0], [1], [0, 0, 1, 1], [], []>} : vector<32x256xbf16>, vector<256x128xbf16>, vector<32x128xf32> -> vector<32x128xf32>
    %149 = vector.shape_cast %148 : vector<32x128xf32> to vector<2x16x128xf32>
    %150 = arith.addf %128, %149 : vector<2x16x128xf32>
    %c0_104 = arith.constant 0 : index
    %c0_105 = arith.constant 0 : index
    %151 = vector.load %arg4[%c0_104, %c0_105] : memref<2x128xf32, #tpu.memory_space<vmem>>, vector<2x128xf32>
    %152 = vector.extract_strided_slice %150 {offsets = [0, 0, 0], sizes = [2, 8, 128], strides = [1, 1, 1]} : vector<2x16x128xf32> to vector<2x8x128xf32>
    %153 = vector.extract_strided_slice %151 {offsets = [0, 0], sizes = [1, 128], strides = [1, 1]} : vector<2x128xf32> to vector<1x128xf32>
    %154 = vector.shape_cast %153 : vector<1x128xf32> to vector<1x1x128xf32>
    %155 = vector.broadcast %154 : vector<1x1x128xf32> to vector<2x8x128xf32>
    %156 = arith.addf %152, %155 : vector<2x8x128xf32>
    %157 = vector.extract_strided_slice %150 {offsets = [0, 8, 0], sizes = [2, 3, 128], strides = [1, 1, 1]} : vector<2x16x128xf32> to vector<2x3x128xf32>
    %c0_106 = arith.constant 0 : index
    %c0_107 = arith.constant 0 : index
    %158 = vector.load %arg2[%c0_106, %c0_107] : memref<96x128xbf16, #tpu.memory_space<vmem>>, vector<96x128xbf16>
    %c0_108 = arith.constant 0 : index
    %c0_109 = arith.constant 0 : index
    %159 = vector.load %arg3[%c0_108, %c0_109] : memref<128x128xbf16, #tpu.memory_space<vmem>>, vector<128x128xbf16>
    %cst_110 = arith.constant dense<0.000000e+00> : vector<96x128xf32>
    %160 = tpu.matmul %158, %159, %cst_110 {dimension_numbers = #tpu.dot_dimension_numbers<[1], [0], [0], [1], [0, 0, 1, 1], [], []>} : vector<96x128xbf16>, vector<128x128xbf16>, vector<96x128xf32> -> vector<96x128xf32>
    %161 = vector.shape_cast %160 : vector<96x128xf32> to vector<2x3x16x128xf32>
    %162 = vector.shape_cast %157 : vector<2x3x128xf32> to vector<2x3x1x128xf32>
    %163 = vector.broadcast %162 : vector<2x3x1x128xf32> to vector<2x3x16x128xf32>
    %164 = arith.addf %161, %163 : vector<2x3x16x128xf32>
    %165 = vector.shape_cast %164 : vector<2x3x16x128xf32> to vector<2x48x128xf32>
    %166 = vector.extract_strided_slice %151 {offsets = [1, 0], sizes = [1, 128], strides = [1, 1]} : vector<2x128xf32> to vector<1x128xf32>
    %167 = vector.shape_cast %166 : vector<1x128xf32> to vector<1x1x128xf32>
    %168 = vector.broadcast %167 : vector<1x1x128xf32> to vector<2x48x128xf32>
    %169 = arith.addf %165, %168 : vector<2x48x128xf32>
    %c0_111 = arith.constant 0 : index
    %c0_112 = arith.constant 0 : index
    %c0_113 = arith.constant 0 : index
    %170 = vector.load %arg17[%c0_111, %c0_112, %c0_113] : memref<2x64x128xf32, #tpu.memory_space<vmem>>, vector<2x8x128xf32>
    tpu.vector_store %arg17[%c0_111, %c0_112, %c0_113], %156 {strides = array<i32>} : memref<2x64x128xf32, #tpu.memory_space<vmem>>, vector<2x8x128xf32>,
    %c0_114 = arith.constant 0 : index
    %c8_115 = arith.constant 8 : index
    %c0_116 = arith.constant 0 : index
    %171 = vector.load %arg17[%c0_114, %c8_115, %c0_116] : memref<2x64x128xf32, #tpu.memory_space<vmem>>, vector<2x48x128xf32>
    tpu.vector_store %arg17[%c0_114, %c8_115, %c0_116], %169 {strides = array<i32>} : memref<2x64x128xf32, #tpu.memory_space<vmem>>, vector<2x48x128xf32>,
    %cst_117 = arith.constant 0.000000e+00 : f32
    %172 = vector.broadcast %cst_117 : f32 to vector<2x8x128xf32>
    %c0_118 = arith.constant 0 : index
    %c56 = arith.constant 56 : index
    %c0_119 = arith.constant 0 : index
    %173 = vector.load %arg17[%c0_118, %c56, %c0_119] : memref<2x64x128xf32, #tpu.memory_space<vmem>>, vector<2x8x128xf32>
    tpu.vector_store %arg17[%c0_118, %c56, %c0_119], %172 {strides = array<i32>} : memref<2x64x128xf32, #tpu.memory_space<vmem>>, vector<2x8x128xf32>,
    %c0_120 = arith.constant 0 : index
    %c0_121 = arith.constant 0 : index
    %c0_122 = arith.constant 0 : index
    %174 = vector.load %arg17[%c0_120, %c0_121, %c0_122] : memref<2x64x128xf32, #tpu.memory_space<vmem>>, vector<2x64x128xf32>
    %c0_123 = arith.constant 0 : index
    %c0_124 = arith.constant 0 : index
    %175 = vector.load %arg11[%c0_123, %c0_124] : memref<128x384xbf16, #tpu.memory_space<vmem>>, vector<128x384xbf16>
    %c0_125 = arith.constant 0 : index
    %c0_126 = arith.constant 0 : index
    %176 = vector.load %arg12[%c0_125, %c0_126] : memref<128x128xbf16, #tpu.memory_space<vmem>>, vector<128x128xbf16>
    %c0_127 = arith.constant 0 : index
    %c0_128 = arith.constant 0 : index
    %177 = vector.load %arg13[%c0_127, %c0_128] : memref<128x256xbf16, #tpu.memory_space<vmem>>, vector<128x256xbf16>
    %c0_129 = arith.constant 0 : index
    %c0_130 = arith.constant 0 : index
    %178 = vector.load %arg14[%c0_129, %c0_130] : memref<256x128xbf16, #tpu.memory_space<vmem>>, vector<256x128xbf16>
    %c0_131 = arith.constant 0 : index
    %c0_132 = arith.constant 0 : index
    %179 = vector.load %arg15[%c0_131, %c0_132] : memref<1x128xf32, #tpu.memory_space<vmem>>, vector<1x128xf32>
    %c0_133 = arith.constant 0 : index
    %c0_134 = arith.constant 0 : index
    %180 = vector.load %arg16[%c0_133, %c0_134] : memref<1x128xf32, #tpu.memory_space<vmem>>, vector<1x128xf32>
    %181 = arith.mulf %174, %174 : vector<2x64x128xf32>
    %cst_135 = arith.constant dense<0.000000e+00> : vector<2x64xf32>
    %182 = vector.multi_reduction <add>, %181, %cst_135 [2] : vector<2x64x128xf32> to vector<2x64xf32>
    %183 = vector.shape_cast %182 : vector<2x64xf32> to vector<2x64x1xf32>
    %cst_136 = arith.constant 1.280000e+02 : f32
    %184 = vector.broadcast %cst_136 : f32 to vector<2x64x1xf32>
    %185 = arith.divf %183, %184 : vector<2x64x1xf32>
    %cst_137 = arith.constant 9.99999997E-7 : f32
    %186 = vector.broadcast %cst_137 : f32 to vector<2x64x1xf32>
    %187 = arith.addf %185, %186 : vector<2x64x1xf32>
    %188 = math.rsqrt %187 : vector<2x64x1xf32>
    %189 = vector.broadcast %188 : vector<2x64x1xf32> to vector<2x64x128xf32>
    %190 = arith.mulf %174, %189 : vector<2x64x128xf32>
    %191 = vector.shape_cast %179 : vector<1x128xf32> to vector<1x1x128xf32>
    %192 = vector.broadcast %191 : vector<1x1x128xf32> to vector<2x64x128xf32>
    %193 = arith.mulf %190, %192 : vector<2x64x128xf32>
    %194 = vector.shape_cast %193 : vector<2x64x128xf32> to vector<128x128xf32>
    %195 = arith.truncf %194 : vector<128x128xf32> to vector<128x128xbf16>
    %cst_138 = arith.constant dense<0.000000e+00> : vector<128x384xf32>
    %196 = tpu.matmul %195, %175, %cst_138 {dimension_numbers = #tpu.dot_dimension_numbers<[1], [0], [0], [1], [0, 0, 1, 1], [], []>} : vector<128x128xbf16>, vector<128x384xbf16>, vector<128x384xf32> -> vector<128x384xf32>
    %197 = arith.truncf %196 : vector<128x384xf32> to vector<128x384xbf16>
    %198 = vector.extract_strided_slice %197 {offsets = [0, 0], sizes = [128, 128], strides = [1, 1]} : vector<128x384xbf16> to vector<128x128xbf16>
    %199 = vector.shape_cast %198 : vector<128x128xbf16> to vector<2x64x128xbf16>
    %200 = vector.extract_strided_slice %197 {offsets = [0, 128], sizes = [128, 128], strides = [1, 1]} : vector<128x384xbf16> to vector<128x128xbf16>
    %201 = vector.shape_cast %200 : vector<128x128xbf16> to vector<2x64x128xbf16>
    %202 = vector.extract_strided_slice %197 {offsets = [0, 256], sizes = [128, 128], strides = [1, 1]} : vector<128x384xbf16> to vector<128x128xbf16>
    %203 = vector.shape_cast %202 : vector<128x128xbf16> to vector<2x64x128xbf16>
    "tpu.trace_start"() <{level = 10 : i32, message = "bqd,bkd->bqk"}> : () -> ()
    %cst_139 = arith.constant dense<0.000000e+00> : vector<2x64x64xf32>
    %204 = tpu.matmul %199, %201, %cst_139 {dimension_numbers = #tpu.dot_dimension_numbers<[2], [2], [1], [1], [0, 0, 0, 1, 1, 1], [0], [0]>} : vector<2x64x128xbf16>, vector<2x64x128xbf16>, vector<2x64x64xf32> -> vector<2x64x64xf32>
    "tpu.trace_stop"() : () -> ()
    %205 = tpu.iota {dimensions = array<i32: 2>} : vector<1x1x64xi32>
    %c56_i32 = arith.constant 56 : i32
    %206 = vector.broadcast %c56_i32 : i32 to vector<1x1x64xi32>
    %207 = arith.cmpi slt, %205, %206 : vector<1x1x64xi32>
    %cst_140 = arith.constant -1.000000e+30 : f32
    %208 = vector.shape_cast %207 : vector<1x1x64xi1> to vector<1x1x64xi1>
    %209 = vector.broadcast %208 : vector<1x1x64xi1> to vector<2x64x64xi1>
    %210 = vector.broadcast %cst_140 : f32 to vector<2x64x64xf32>
    %211 = arith.select %209, %204, %210 : vector<2x64x64xi1>, vector<2x64x64xf32>
    %cst_141 = arith.constant dense<0xFF800000> : vector<2x64xf32>
    %212 = vector.multi_reduction <maximumf>, %211, %cst_141 [2] : vector<2x64x64xf32> to vector<2x64xf32>
    %213 = vector.shape_cast %212 : vector<2x64xf32> to vector<2x64x1xf32>
    %214 = vector.broadcast %213 : vector<2x64x1xf32> to vector<2x64x64xf32>
    %215 = arith.subf %211, %214 : vector<2x64x64xf32>
    %216 = math.exp %215 : vector<2x64x64xf32>
    %cst_142 = arith.constant dense<0.000000e+00> : vector<2x64xf32>
    %217 = vector.multi_reduction <add>, %216, %cst_142 [2] : vector<2x64x64xf32> to vector<2x64xf32>
    %218 = vector.shape_cast %217 : vector<2x64xf32> to vector<2x64x1xf32>
    %219 = tpu.reciprocal %218 {approx = true} : vector<2x64x1xf32> -> vector<2x64x1xf32>
    %220 = vector.broadcast %219 : vector<2x64x1xf32> to vector<2x64x64xf32>
    %221 = arith.mulf %216, %220 : vector<2x64x64xf32>
    %222 = arith.truncf %221 : vector<2x64x64xf32> to vector<2x64x64xbf16>
    "tpu.trace_start"() <{level = 10 : i32, message = "bqk,bkd->bqd"}> : () -> ()
    %cst_143 = arith.constant dense<0.000000e+00> : vector<2x64x128xf32>
    %223 = tpu.matmul %222, %203, %cst_143 {dimension_numbers = #tpu.dot_dimension_numbers<[2], [1], [1], [2], [0, 0, 0, 1, 1, 2], [0], [0]>} : vector<2x64x64xbf16>, vector<2x64x128xbf16>, vector<2x64x128xf32> -> vector<2x64x128xf32>
    "tpu.trace_stop"() : () -> ()
    %224 = vector.shape_cast %223 : vector<2x64x128xf32> to vector<128x128xf32>
    %225 = arith.truncf %224 : vector<128x128xf32> to vector<128x128xbf16>
    %cst_144 = arith.constant dense<0.000000e+00> : vector<128x128xf32>
    %226 = tpu.matmul %225, %176, %cst_144 {dimension_numbers = #tpu.dot_dimension_numbers<[1], [0], [0], [1], [0, 0, 1, 1], [], []>} : vector<128x128xbf16>, vector<128x128xbf16>, vector<128x128xf32> -> vector<128x128xf32>
    %227 = vector.shape_cast %226 : vector<128x128xf32> to vector<2x64x128xf32>
    %228 = arith.addf %174, %227 : vector<2x64x128xf32>
    %229 = arith.mulf %228, %228 : vector<2x64x128xf32>
    %cst_145 = arith.constant dense<0.000000e+00> : vector<2x64xf32>
    %230 = vector.multi_reduction <add>, %229, %cst_145 [2] : vector<2x64x128xf32> to vector<2x64xf32>
    %231 = vector.shape_cast %230 : vector<2x64xf32> to vector<2x64x1xf32>
    %cst_146 = arith.constant 1.280000e+02 : f32
    %232 = vector.broadcast %cst_146 : f32 to vector<2x64x1xf32>
    %233 = arith.divf %231, %232 : vector<2x64x1xf32>
    %cst_147 = arith.constant 9.99999997E-7 : f32
    %234 = vector.broadcast %cst_147 : f32 to vector<2x64x1xf32>
    %235 = arith.addf %233, %234 : vector<2x64x1xf32>
    %236 = math.rsqrt %235 : vector<2x64x1xf32>
    %237 = vector.broadcast %236 : vector<2x64x1xf32> to vector<2x64x128xf32>
    %238 = arith.mulf %228, %237 : vector<2x64x128xf32>
    %239 = vector.shape_cast %180 : vector<1x128xf32> to vector<1x1x128xf32>
    %240 = vector.broadcast %239 : vector<1x1x128xf32> to vector<2x64x128xf32>
    %241 = arith.mulf %238, %240 : vector<2x64x128xf32>
    %242 = vector.shape_cast %241 : vector<2x64x128xf32> to vector<128x128xf32>
    %243 = arith.truncf %242 : vector<128x128xf32> to vector<128x128xbf16>
    %cst_148 = arith.constant dense<0.000000e+00> : vector<128x256xf32>
    %244 = tpu.matmul %243, %177, %cst_148 {dimension_numbers = #tpu.dot_dimension_numbers<[1], [0], [0], [1], [0, 0, 1, 1], [], []>} : vector<128x128xbf16>, vector<128x256xbf16>, vector<128x256xf32> -> vector<128x256xf32>
    %cst_149 = arith.constant 0.000000e+00 : f32
    %245 = vector.broadcast %cst_149 : f32 to vector<128x256xf32>
    %246 = arith.maximumf %244, %245 : vector<128x256xf32>
    %247 = arith.truncf %246 : vector<128x256xf32> to vector<128x256xbf16>
    %cst_150 = arith.constant dense<0.000000e+00> : vector<128x128xf32>
    %248 = tpu.matmul %247, %178, %cst_150 {dimension_numbers = #tpu.dot_dimension_numbers<[1], [0], [0], [1], [0, 0, 1, 1], [], []>} : vector<128x256xbf16>, vector<256x128xbf16>, vector<128x128xf32> -> vector<128x128xf32>
    %249 = vector.shape_cast %248 : vector<128x128xf32> to vector<2x64x128xf32>
    %250 = arith.addf %228, %249 : vector<2x64x128xf32>
    %c0_151 = arith.constant 0 : index
    %c0_152 = arith.constant 0 : index
    %c0_153 = arith.constant 0 : index
    %251 = vector.load %arg17[%c0_151, %c0_152, %c0_153] : memref<2x64x128xf32, #tpu.memory_space<vmem>>, vector<2x64x128xf32>
    tpu.vector_store %arg17[%c0_151, %c0_152, %c0_153], %250 {strides = array<i32>} : memref<2x64x128xf32, #tpu.memory_space<vmem>>, vector<2x64x128xf32>,
    return
  }
}

</mosaic_0001>

<llo_original>
// kernel: drive_t5_vision_forward.1
$region0: #{drive_t5_vision_forward.1}
  #allocation0 [shape = 'u32[]', space=smem, size = 0x4, offset = 0x4, fixed_abs, tag = 'smem constant byte address 0x4 - core index']
  #allocation1 [shape = 'u32[144,128]{1,0:T(1,128)}', space=vmem, size = 0x12000, scoped, tag = 'internal scratch']
  #allocation2 [shape = 'f32[32,128]{1,0:T(8,128)}', space=vmem, size = 0x4000, scoped, tag = 'scratch operand']
  %s0 = inlined_call_operand.vmem [shape: s32[2,8], index: 0, kind: input, shape index: {}]
  %s1 = inlined_call_operand.vmem [shape: f32[64,128], index: 1, kind: input, shape index: {}]
  %s2 = inlined_call_operand.vmem [shape: bf16[96,128], index: 2, kind: input, shape index: {}]
  %s3 = inlined_call_operand.vmem [shape: bf16[128,128], index: 3, kind: input, shape index: {}]
  %s4 = inlined_call_operand.vmem [shape: f32[2,128], index: 4, kind: input, shape index: {}]
  %s5 = inlined_call_operand.vmem [shape: bf16[128,384], index: 5, kind: input, shape index: {}]
  %s6 = inlined_call_operand.vmem [shape: bf16[128,128], index: 6, kind: input, shape index: {}]
  %s7 = inlined_call_operand.vmem [shape: bf16[128,256], index: 7, kind: input, shape index: {}]
  %s8 = inlined_call_operand.vmem [shape: bf16[256,128], index: 8, kind: input, shape index: {}]
  %s9 = inlined_call_operand.vmem [shape: f32[1,128], index: 9, kind: input, shape index: {}]
  %s10 = inlined_call_operand.vmem [shape: f32[1,128], index: 10, kind: input, shape index: {}]
  %s11 = inlined_call_operand.vmem [shape: bf16[128,384], index: 11, kind: input, shape index: {}]
  %s12 = inlined_call_operand.vmem [shape: bf16[128,128], index: 12, kind: input, shape index: {}]
  %s13 = inlined_call_operand.vmem [shape: bf16[128,256], index: 13, kind: input, shape index: {}]
  %s14 = inlined_call_operand.vmem [shape: bf16[256,128], index: 14, kind: input, shape index: {}]
  %s15 = inlined_call_operand.vmem [shape: f32[1,128], index: 15, kind: input, shape index: {}]
  %s16 = inlined_call_operand.vmem [shape: f32[1,128], index: 16, kind: input, shape index: {}]
  %s17 = inlined_call_operand.vmem [shape: f32[2,64,128], index: 17, kind: output, shape index: {}]
  %s18 = sld [smem:[#allocation0]]
  $region82: #{drive_t5_vision_forward.1} parent=0
    _
  %s20 = ssub.s32 1, %s18
  %s21 = scalar_select 0, %s20, %s18
  $region1: #{drive_t5_vision_forward.1} parent=0
    #allocation3 [shape = 'u8[1024]{0}', space=smem, size = 0x400, scoped, tag = 'input window, operand 0, single buffered']
    #allocation4 [shape = 's32[1]{0}', space=sflag, size = 0x4, scoped, tag = 'scoped memory for drive_t5_vision_forward.1']
    %22 = vsyncpa [#allocation4], 0
    // Predicated region
    $region2: #{drive_t5_vision_forward.1} parent=1 // pred_check
      _
    $region3: #{drive_t5_vision_forward.1} parent=1 // pred_check_branch
      %24 = sbr.rel (0) target = $region5
    $region4: #{drive_t5_vision_forward.1} parent=1 // pred_region
      %s26 = ssub.s32 32, 32
      %27 = vsyncadd [#allocation4], %s26
      %s29 = sshll.u32 %s0, 4
      %s30 = int_to_ptr.vmem [resolvable:$true] %s29
      %32 = dma.vmem_to_smem %s30, 32, [#allocation3], [#allocation4]
    $region5: #{drive_t5_vision_forward.1} parent=1 // pred_fallthru
      _
    // Predicated region
    $region6: #{drive_t5_vision_forward.1} parent=1 // pred_check
      _
    $region7: #{drive_t5_vision_forward.1} parent=1 // pred_check_branch
      %34 = sbr.rel (0) target = $region9
    $region8: #{drive_t5_vision_forward.1} parent=1 // pred_region
      _
    $region9: #{drive_t5_vision_forward.1} parent=1 // pred_fallthru
      _
    // Predicated region
    $region10: #{drive_t5_vision_forward.1} parent=1 // pred_check
      _
    $region11: #{drive_t5_vision_forward.1} parent=1 // pred_check_branch
      %36 = sbr.rel (0) target = $region13
    $region12: #{drive_t5_vision_forward.1} parent=1 // pred_region
      _
    $region13: #{drive_t5_vision_forward.1} parent=1 // pred_fallthru
      _
    // Predicated region
    $region14: #{drive_t5_vision_forward.1} parent=1 // pred_check
      _
    $region15: #{drive_t5_vision_forward.1} parent=1 // pred_check_branch
      %38 = sbr.rel (0) target = $region17
    $region16: #{drive_t5_vision_forward.1} parent=1 // pred_region
      _
    $region17: #{drive_t5_vision_forward.1} parent=1 // pred_fallthru
      _
    // Predicated region
    $region18: #{drive_t5_vision_forward.1} parent=1 // pred_check
      _
    $region19: #{drive_t5_vision_forward.1} parent=1 // pred_check_branch
      %40 = sbr.rel (0) target = $region21
    $region20: #{drive_t5_vision_forward.1} parent=1 // pred_region
      _
    $region21: #{drive_t5_vision_forward.1} parent=1 // pred_fallthru
      _
    // Predicated region
    $region22: #{drive_t5_vision_forward.1} parent=1 // pred_check
      _
    $region23: #{drive_t5_vision_forward.1} parent=1 // pred_check_branch
      %42 = sbr.rel (0) target = $region25
    $region24: #{drive_t5_vision_forward.1} parent=1 // pred_region
      _
    $region25: #{drive_t5_vision_forward.1} parent=1 // pred_fallthru
      _
    // Predicated region
    $region26: #{drive_t5_vision_forward.1} parent=1 // pred_check
      _
    $region27: #{drive_t5_vision_forward.1} parent=1 // pred_check_branch
      %44 = sbr.rel (0) target = $region29
    $region28: #{drive_t5_vision_forward.1} parent=1 // pred_region
      _
    $region29: #{drive_t5_vision_forward.1} parent=1 // pred_fallthru
      _
    // Predicated region
    $region30: #{drive_t5_vision_forward.1} parent=1 // pred_check
      _
    $region31: #{drive_t5_vision_forward.1} parent=1 // pred_check_branch
      %46 = sbr.rel (0) target = $region33
    $region32: #{drive_t5_vision_forward.1} parent=1 // pred_region
      _
    $region33: #{drive_t5_vision_forward.1} parent=1 // pred_fallthru
      _
    // Predicated region
    $region34: #{drive_t5_vision_forward.1} parent=1 // pred_check
      _
    $region35: #{drive_t5_vision_forward.1} parent=1 // pred_check_branch
      %48 = sbr.rel (0) target = $region37
    $region36: #{drive_t5_vision_forward.1} parent=1 // pred_region
      _
    $region37: #{drive_t5_vision_forward.1} parent=1 // pred_fallthru
      _
    // Predicated region
    $region38: #{drive_t5_vision_forward.1} parent=1 // pred_check
      _
    $region39: #{drive_t5_vision_forward.1} parent=1 // pred_check_branch
      %50 = sbr.rel (0) target = $region41
    $region40: #{drive_t5_vision_forward.1} parent=1 // pred_region
      _
    $region41: #{drive_t5_vision_forward.1} parent=1 // pred_fallthru
      _
    // Predicated region
    $region42: #{drive_t5_vision_forward.1} parent=1 // pred_check
      _
    $region43: #{drive_t5_vision_forward.1} parent=1 // pred_check_branch
      %52 = sbr.rel (0) target = $region45
    $region44: #{drive_t5_vision_forward.1} parent=1 // pred_region
      _
    $region45: #{drive_t5_vision_forward.1} parent=1 // pred_fallthru
      _
    // Predicated region
    $region46: #{drive_t5_vision_forward.1} parent=1 // pred_check
      _
    $region47: #{drive_t5_vision_forward.1} parent=1 // pred_check_branch
      %54 = sbr.rel (0) target = $region49
    $region48: #{drive_t5_vision_forward.1} parent=1 // pred_region
      _
    $region49: #{drive_t5_vision_forward.1} parent=1 // pred_fallthru
      _
    // Predicated region
    $region50: #{drive_t5_vision_forward.1} parent=1 // pred_check
      _
    $region51: #{drive_t5_vision_forward.1} parent=1 // pred_check_branch
      %56 = sbr.rel (0) target = $region53
    $region52: #{drive_t5_vision_forward.1} parent=1 // pred_region
      _
    $region53: #{drive_t5_vision_forward.1} parent=1 // pred_fallthru
      _
    // Predicated region
    $region54: #{drive_t5_vision_forward.1} parent=1 // pred_check
      _
    $region55: #{drive_t5_vision_forward.1} parent=1 // pred_check_branch
      %58 = sbr.rel (0) target = $region57
    $region56: #{drive_t5_vision_forward.1} parent=1 // pred_region
      _
    $region57: #{drive_t5_vision_forward.1} parent=1 // pred_fallthru
      _
    // Predicated region
    $region58: #{drive_t5_vision_forward.1} parent=1 // pred_check
      _
    $region59: #{drive_t5_vision_forward.1} parent=1 // pred_check_branch
      %60 = sbr.rel (0) target = $region61
    $region60: #{drive_t5_vision_forward.1} parent=1 // pred_region
      _
    $region61: #{drive_t5_vision_forward.1} parent=1 // pred_fallthru
      _
    // Predicated region
    $region62: #{drive_t5_vision_forward.1} parent=1 // pred_check
      _
    $region63: #{drive_t5_vision_forward.1} parent=1 // pred_check_branch
      %62 = sbr.rel (0) target = $region65
    $region64: #{drive_t5_vision_forward.1} parent=1 // pred_region
      _
    $region65: #{drive_t5_vision_forward.1} parent=1 // pred_fallthru
      _
    // Predicated region
    $region66: #{drive_t5_vision_forward.1} parent=1 // pred_check
      _
    $region67: #{drive_t5_vision_forward.1} parent=1 // pred_check_branch
      %64 = sbr.rel (0) target = $region69
    $region68: #{drive_t5_vision_forward.1} parent=1 // pred_region
      _
    $region69: #{drive_t5_vision_forward.1} parent=1 // pred_fallthru
      _
    // Predicated region
    $region70: #{drive_t5_vision_forward.1} parent=1 // pred_check
      _
    $region71: #{drive_t5_vision_forward.1} parent=1 // pred_check_branch
      %66 = sbr.rel (0) target = $region73
    $region72: #{drive_t5_vision_forward.1} parent=1 // pred_region
      %67 = dma.done [#allocation4], 32
    $region73: #{drive_t5_vision_forward.1} parent=1 // pred_fallthru
      _
    %68 = sfence
    %70 = vst [vmem:[#allocation2] sm:$0xff] 0.0
    %71 = vst [vmem:[#allocation2 + $0x8] sm:$0xff] 0.0
    %72 = vst [vmem:[#allocation2 + $0x10] sm:$0xff] 0.0
    %73 = vst [vmem:[#allocation2 + $0x18] sm:$0xff] 0.0
    %v74 = vld [vmem:[%s1 + $0x1] sm:$0x1]
    %s75 = sld [smem:[#allocation3]]
    %s76 = scalar_lea.vmem %s1, %s75
    %v77 = vld [vmem:[%s76] sm:$0x1]
    %78 = vst [vmem:[#allocation2] sm:$0x1] %v77
    %s79 = sld [smem:[#allocation3 + $0x1]]
    %s80 = scalar_lea.vmem %s1, %s79
    %v81 = vld [vmem:[%s80] sm:$0x1]
    %82 = vst [vmem:[#allocation2 + $0x1] sm:$0x1] %v81
    %s83 = sld [smem:[#allocation3 + $0x2]]
    %s84 = scalar_lea.vmem %s1, %s83
    %v85 = vld [vmem:[%s84] sm:$0x1]
    %86 = vst [vmem:[#allocation2 + $0x2] sm:$0x1] %v85
    %s87 = sld [smem:[#allocation3 + $0x3]]
    %s88 = scalar_lea.vmem %s1, %s87
    %v89 = vld [vmem:[%s88] sm:$0x1]
    %90 = vst [vmem:[#allocation2 + $0x3] sm:$0x1] %v89
    %s91 = sld [smem:[#allocation3 + $0x4]]
    %s92 = scalar_lea.vmem %s1, %s91
    %v93 = vld [vmem:[%s92] sm:$0x1]
    %94 = vst [vmem:[#allocation2 + $0x4] sm:$0x1] %v93
    %s95 = sld [smem:[#allocation3 + $0x5]]
    %s96 = scalar_lea.vmem %s1, %s95
    %v97 = vld [vmem:[%s96] sm:$0x1]
    %98 = vst [vmem:[#allocation2 + $0x5] sm:$0x1] %v97
    %s99 = sld [smem:[#allocation3 + $0x6]]
    %s100 = scalar_lea.vmem %s1, %s99
    %v101 = vld [vmem:[%s100] sm:$0x1]
    %102 = vst [vmem:[#allocation2 + $0x6] sm:$0x1] %v101
    %s103 = sld [smem:[#allocation3 + $0x7]]
    %s104 = scalar_lea.vmem %s1, %s103
    %v105 = vld [vmem:[%s104] sm:$0x1]
    %106 = vst [vmem:[#allocation2 + $0x7] sm:$0x1] %v105
    %107 = vst [vmem:[#allocation2 + $0x8] sm:$0x1] %v74
    %108 = vst [vmem:[#allocation2 + $0x9] sm:$0x1] %v74
    %109 = vst [vmem:[#allocation2 + $0xa] sm:$0x1] %v74
    %s110 = sld [smem:[#allocation3 + $0x80]]
    %s111 = scalar_lea.vmem %s1, %s110
    %v112 = vld [vmem:[%s111] sm:$0x1]
    %113 = vst [vmem:[#allocation2 + $0x10] sm:$0x1] %v112
    %s114 = sld [smem:[#allocation3 + $0x81]]
    %s115 = scalar_lea.vmem %s1, %s114
    %v116 = vld [vmem:[%s115] sm:$0x1]
    %117 = vst [vmem:[#allocation2 + $0x11] sm:$0x1] %v116
    %s118 = sld [smem:[#allocation3 + $0x82]]
    %s119 = scalar_lea.vmem %s1, %s118
    %v120 = vld [vmem:[%s119] sm:$0x1]
    %121 = vst [vmem:[#allocation2 + $0x12] sm:$0x1] %v120
    %s122 = sld [smem:[#allocation3 + $0x83]]
    %s123 = scalar_lea.vmem %s1, %s122
    %v124 = vld [vmem:[%s123] sm:$0x1]
    %125 = vst [vmem:[#allocation2 + $0x13] sm:$0x1] %v124
    %s126 = sld [smem:[#allocation3 + $0x84]]
    %s127 = scalar_lea.vmem %s1, %s126
    %v128 = vld [vmem:[%s127] sm:$0x1]
    %129 = vst [vmem:[#allocation2 + $0x14] sm:$0x1] %v128
    %s130 = sld [smem:[#allocation3 + $0x85]]
    %s131 = scalar_lea.vmem %s1, %s130
    %v132 = vld [vmem:[%s131] sm:$0x1]
    %133 = vst [vmem:[#allocation2 + $0x15] sm:$0x1] %v132
    %s134 = sld [smem:[#allocation3 + $0x86]]
    %s135 = scalar_lea.vmem %s1, %s134
    %v136 = vld [vmem:[%s135] sm:$0x1]
    %137 = vst [vmem:[#allocation2 + $0x16] sm:$0x1] %v136
    %s138 = sld [smem:[#allocation3 + $0x87]]
    %s139 = scalar_lea.vmem %s1, %s138
    %v140 = vld [vmem:[%s139] sm:$0x1]
    %141 = vst [vmem:[#allocation2 + $0x17] sm:$0x1] %v140
    %142 = vst [vmem:[#allocation2 + $0x18] sm:$0x1] %v74
    %143 = vst [vmem:[#allocation2 + $0x19] sm:$0x1] %v74
    %144 = vst [vmem:[#allocation2 + $0x1a] sm:$0x1] %v74
    %v145 = vld [vmem:[#allocation2] sm:$0xff]
    %v146 = vld [vmem:[#allocation2 + $0x8] sm:$0xff]
    %v147 = vld [vmem:[#allocation2 + $0x10] sm:$0xff]
    %v148 = vld [vmem:[#allocation2 + $0x18] sm:$0xff]
    %v149 = vld [vmem:[%s5] sm:$0xff]
    %v150 = vld [vmem:[%s5 + $0x8] sm:$0xf]
    %v151 = vld [vmem:[%s5 + $0xc] sm:$0xff]
    %v152 = vld [vmem:[%s5 + $0x14] sm:$0xf]
    %v153 = vld [vmem:[%s5 + $0x18] sm:$0xff]
    %v154 = vld [vmem:[%s5 + $0x20] sm:$0xf]
    %v155 = vld [vmem:[%s5 + $0x24] sm:$0xff]
    %v156 = vld [vmem:[%s5 + $0x2c] sm:$0xf]
    %v157 = vld [vmem:[%s5 + $0x30] sm:$0xff]
    %v158 = vld [vmem:[%s5 + $0x38] sm:$0xf]
    %v159 = vld [vmem:[%s5 + $0x3c] sm:$0xff]
    %v160 = vld [vmem:[%s5 + $0x44] sm:$0xf]
    %v161 = vld [vmem:[%s5 + $0x48] sm:$0xff]
    %v162 = vld [vmem:[%s5 + $0x50] sm:$0xf]
    %v163 = vld [vmem:[%s5 + $0x54] sm:$0xff]
    %v164 = vld [vmem:[%s5 + $0x5c] sm:$0xf]
    %v165 = vld [vmem:[%s5 + $0x60] sm:$0xff]
    %v166 = vld [vmem:[%s5 + $0x68] sm:$0xf]
    %v167 = vld [vmem:[%s5 + $0x6c] sm:$0xff]
    %v168 = vld [vmem:[%s5 + $0x74] sm:$0xf]
    %v169 = vld [vmem:[%s5 + $0x78] sm:$0xff]
    %v170 = vld [vmem:[%s5 + $0x80] sm:$0xf]
    %v171 = vld [vmem:[%s5 + $0x84] sm:$0xff]
    %v172 = vld [vmem:[%s5 + $0x8c] sm:$0xf]
    %v173 = vld [vmem:[%s5 + $0x90] sm:$0xff]
    %v174 = vld [vmem:[%s5 + $0x98] sm:$0xf]
    %v175 = vld [vmem:[%s5 + $0x9c] sm:$0xff]
    %v176 = vld [vmem:[%s5 + $0xa4] sm:$0xf]
    %v177 = vld [vmem:[%s5 + $0xa8] sm:$0xff]
    %v178 = vld [vmem:[%s5 + $0xb0] sm:$0xf]
    %v179 = vld [vmem:[%s5 + $0xb4] sm:$0xff]
    %v180 = vld [vmem:[%s5 + $0xbc] sm:$0xf]
    %v181 = vld [vmem:[%s6] sm:$0xf]
    %v182 = vld [vmem:[%s6 + $0x4] sm:$0xf]
    %v183 = vld [vmem:[%s6 + $0x8] sm:$0xf]
    %v184 = vld [vmem:[%s6 + $0xc] sm:$0xf]
    %v185 = vld [vmem:[%s6 + $0x10] sm:$0xf]
    %v186 = vld [vmem:[%s6 + $0x14] sm:$0xf]
    %v187 = vld [vmem:[%s6 + $0x18] sm:$0xf]
    %v188 = vld [vmem:[%s6 + $0x1c] sm:$0xf]
    %v189 = vld [vmem:[%s6 + $0x20] sm:$0xf]
    %v190 = vld [vmem:[%s6 + $0x24] sm:$0xf]
    %v191 = vld [vmem:[%s6 + $0x28] sm:$0xf]
    %v192 = vld [vmem:[%s6 + $0x2c] sm:$0xf]
    %v193 = vld [vmem:[%s6 + $0x30] sm:$0xf]
    %v194 = vld [vmem:[%s6 + $0x34] sm:$0xf]
    %v195 = vld [vmem:[%s6 + $0x38] sm:$0xf]
    %v196 = vld [vmem:[%s6 + $0x3c] sm:$0xf]
    %v197 = vld [vmem:[%s7] sm:$0xff]
    %v198 = vld [vmem:[%s7 + $0x8] sm:$0xff]
    %v199 = vld [vmem:[%s7 + $0x10] sm:$0xff]
    %v200 = vld [vmem:[%s7 + $0x18] sm:$0xff]
    %v201 = vld [vmem:[%s7 + $0x20] sm:$0xff]
    %v202 = vld [vmem:[%s7 + $0x28] sm:$0xff]
    %v203 = vld [vmem:[%s7 + $0x30] sm:$0xff]
    %v204 = vld [vmem:[%s7 + $0x38] sm:$0xff]
    %v205 = vld [vmem:[%s7 + $0x40] sm:$0xff]
    %v206 = vld [vmem:[%s7 + $0x48] sm:$0xff]
    %v207 = vld [vmem:[%s7 + $0x50] sm:$0xff]
    %v208 = vld [vmem:[%s7 + $0x58] sm:$0xff]
    %v209 = vld [vmem:[%s7 + $0x60] sm:$0xff]
    %v210 = vld [vmem:[%s7 + $0x68] sm:$0xff]
    %v211 = vld [vmem:[%s7 + $0x70] sm:$0xff]
    %v212 = vld [vmem:[%s7 + $0x78] sm:$0xff]
    %v213 = vld [vmem:[%s8] sm:$0xf]
    %v214 = vld [vmem:[%s8 + $0x4] sm:$0xf]
    %v215 = vld [vmem:[%s8 + $0x8] sm:$0xf]
    %v216 = vld [vmem:[%s8 + $0xc] sm:$0xf]
    %v217 = vld [vmem:[%s8 + $0x10] sm:$0xf]
    %v218 = vld [vmem:[%s8 + $0x14] sm:$0xf]
    %v219 = vld [vmem:[%s8 + $0x18] sm:$0xf]
    %v220 = vld [vmem:[%s8 + $0x1c] sm:$0xf]
    %v221 = vld [vmem:[%s8 + $0x20] sm:$0xf]
    %v222 = vld [vmem:[%s8 + $0x24] sm:$0xf]
    %v223 = vld [vmem:[%s8 + $0x28] sm:$0xf]
    %v224 = vld [vmem:[%s8 + $0x2c] sm:$0xf]
    %v225 = vld [vmem:[%s8 + $0x30] sm:$0xf]
    %v226 = vld [vmem:[%s8 + $0x34] sm:$0xf]
    %v227 = vld [vmem:[%s8 + $0x38] sm:$0xf]
    %v228 = vld [vmem:[%s8 + $0x3c] sm:$0xf]
    %v229 = vld [vmem:[%s8 + $0x40] sm:$0xf]
    %v230 = vld [vmem:[%s8 + $0x44] sm:$0xf]
    %v231 = vld [vmem:[%s8 + $0x48] sm:$0xf]
    %v232 = vld [vmem:[%s8 + $0x4c] sm:$0xf]
    %v233 = vld [vmem:[%s8 + $0x50] sm:$0xf]
    %v234 = vld [vmem:[%s8 + $0x54] sm:$0xf]
    %v235 = vld [vmem:[%s8 + $0x58] sm:$0xf]
    %v236 = vld [vmem:[%s8 + $0x5c] sm:$0xf]
    %v237 = vld [vmem:[%s8 + $0x60] sm:$0xf]
    %v238 = vld [vmem:[%s8 + $0x64] sm:$0xf]
    %v239 = vld [vmem:[%s8 + $0x68] sm:$0xf]
    %v240 = vld [vmem:[%s8 + $0x6c] sm:$0xf]
    %v241 = vld [vmem:[%s8 + $0x70] sm:$0xf]
    %v242 = vld [vmem:[%s8 + $0x74] sm:$0xf]
    %v243 = vld [vmem:[%s8 + $0x78] sm:$0xf]
    %v244 = vld [vmem:[%s8 + $0x7c] sm:$0xf]
    %v245 = vld [vmem:[%s9] sm:$0x1]
    %v246 = vld [vmem:[%s10] sm:$0x1]
    %v247 = vmul.f32 %v145, %v145
    %v248 = vmul.f32 %v146, %v146
    %v249 = vmul.f32 %v147, %v147
    %v250 = vmul.f32 %v148, %v148
    %251 = vadd.xlane.f32.xlu0 %v247
    %v252 = vpop.xlane.xlu0 %251
    %253 = vadd.xlane.f32.xlu0 %v248
    %v254 = vpop.xlane.xlu0 %253
    %255 = vadd.xlane.f32.xlu0 %v249
    %v256 = vpop.xlane.xlu0 %255
    %257 = vadd.xlane.f32.xlu0 %v250
    %v258 = vpop.xlane.xlu0 %257
    %v259 = vrcp.pop 128.0
    %v260 = vmul.f32 %v252, %v259
    %v261 = vmul.f32 %v254, %v259
    %v262 = vmul.f32 %v256, %v259
    %v263 = vmul.f32 %v258, %v259
    %v264 = vadd.f32 %v260, 1e-06
    %v265 = vadd.f32 %v261, 1e-06
    %v266 = vadd.f32 %v262, 1e-06
    %v267 = vadd.f32 %v263, 1e-06
    %v268 = vrsqrt.pop %v264
    %v269 = vrsqrt.pop %v265
    %v270 = vrsqrt.pop %v266
    %v271 = vrsqrt.pop %v267
    %v272 = vmul.f32 %v145, %v268
    %v273 = vmul.f32 %v146, %v269
    %v274 = vmul.f32 %v147, %v270
    %v275 = vmul.f32 %v148, %v271
    %v277 = vlaneseq
    %v278 = vshrl.u32 %v277, 7
    %v279 = vsub.s32 0, %v278
    %v280 = vrot.slane %v245, %v279
    %v282 = vmul.f32 %v272, %v280
    %v283 = vmul.f32 %v273, %v280
    %v284 = vmul.f32 %v274, %v280
    %v285 = vmul.f32 %v275, %v280
    %v286 = vpack.c.bf16 %v283, %v282
    %v287 = vpack.c.bf16 %v285, %v284
    %v320 = vunpack.c.l.b16 %v149
    %v321 = vunpack.c.h.b16 %v149
    %v322 = vunpack.c.l.b16 %v150
    %v323 = vunpack.c.l.b16 %v151
    %v324 = vunpack.c.h.b16 %v151
    %v325 = vunpack.c.l.b16 %v152
    %v326 = vunpack.c.l.b16 %v153
    %v327 = vunpack.c.h.b16 %v153
    %v328 = vunpack.c.l.b16 %v154
    %v329 = vunpack.c.l.b16 %v155
    %v330 = vunpack.c.h.b16 %v155
    %v331 = vunpack.c.l.b16 %v156
    %v332 = vunpack.c.l.b16 %v157
    %v333 = vunpack.c.h.b16 %v157
    %v334 = vunpack.c.l.b16 %v158
    %v335 = vunpack.c.l.b16 %v159
    %v336 = vunpack.c.h.b16 %v159
    %v337 = vunpack.c.l.b16 %v160
    %v338 = vunpack.c.l.b16 %v161
    %v339 = vunpack.c.h.b16 %v161
    %v340 = vunpack.c.l.b16 %v162
    %v341 = vunpack.c.l.b16 %v163
    %v342 = vunpack.c.h.b16 %v163
    %v343 = vunpack.c.l.b16 %v164
    %v344 = vunpack.c.l.b16 %v165
    %v345 = vunpack.c.h.b16 %v165
    %v346 = vunpack.c.l.b16 %v166
    %v347 = vunpack.c.l.b16 %v167
    %v348 = vunpack.c.h.b16 %v167
    %v349 = vunpack.c.l.b16 %v168
    %v350 = vunpack.c.l.b16 %v169
    %v351 = vunpack.c.h.b16 %v169
    %v352 = vunpack.c.l.b16 %v170
    %v353 = vunpack.c.l.b16 %v171
    %v354 = vunpack.c.h.b16 %v171
    %v355 = vunpack.c.l.b16 %v172
    %v356 = vunpack.c.l.b16 %v173
    %v357 = vunpack.c.h.b16 %v173
    %v358 = vunpack.c.l.b16 %v174
    %v359 = vunpack.c.l.b16 %v175
    %v360 = vunpack.c.h.b16 %v175
    %v361 = vunpack.c.l.b16 %v176
    %v362 = vunpack.c.l.b16 %v177
    %v363 = vunpack.c.h.b16 %v177
    %v364 = vunpack.c.l.b16 %v178
    %v365 = vunpack.c.l.b16 %v179
    %v366 = vunpack.c.h.b16 %v179
    %v367 = vunpack.c.l.b16 %v180
    %v368 = vpack.c.b16 %v323, %v320
    %v369 = vpack.c.b16 %v324, %v321
    %v370 = vpack.c.b16 %v325, %v322
    %v371 = vpack.c.b16 %v329, %v326
    %v372 = vpack.c.b16 %v330, %v327
    %v373 = vpack.c.b16 %v331, %v328
    %v374 = vpack.c.b16 %v335, %v332
    %v375 = vpack.c.b16 %v336, %v333
    %v376 = vpack.c.b16 %v337, %v334
    %v377 = vpack.c.b16 %v341, %v338
    %v378 = vpack.c.b16 %v342, %v339
    %v379 = vpack.c.b16 %v343, %v340
    %v380 = vpack.c.b16 %v347, %v344
    %v381 = vpack.c.b16 %v348, %v345
    %v382 = vpack.c.b16 %v349, %v346
    %v383 = vpack.c.b16 %v353, %v350
    %v384 = vpack.c.b16 %v354, %v351
    %v385 = vpack.c.b16 %v355, %v352
    %v386 = vpack.c.b16 %v359, %v356
    %v387 = vpack.c.b16 %v360, %v357
    %v388 = vpack.c.b16 %v361, %v358
    %v389 = vpack.c.b16 %v365, %v362
    %v390 = vpack.c.b16 %v366, %v363
    %v391 = vpack.c.b16 %v367, %v364
    %416 = vmatprep.subr.bf16.mxu0 %v390
    %417 = vmatpush1.bf16.msra.mxu0 %v389
    %418 = vmatprep.subr.bf16.mxu0 %v387
    %419 = vmatpush1.bf16.msra.mxu0 %v386
    %420 = vmatprep.subr.bf16.mxu0 %v384
    %421 = vmatpush1.bf16.msra.mxu0 %v383
    %422 = vmatprep.subr.bf16.mxu0 %v381
    %423 = vmatpush1.bf16.msra.mxu0 %v380
    %424 = vmatprep.subr.bf16.mxu0 %v378
    %425 = vmatpush1.bf16.msra.mxu0 %v377
    %426 = vmatprep.subr.bf16.mxu0 %v375
    %427 = vmatpush1.bf16.msra.mxu0 %v374
    %428 = vmatprep.subr.bf16.mxu0 %v372
    %429 = vmatpush1.bf16.msra.mxu0 %v371
    %430 = vmatprep.subr.bf16.mxu0 %v369
    %431 = vmatpush1.bf16.msra.mxu0 %v368
    %432 = vmatprep.subr.bf16.mxu0 0
    %433 = vmatpush2.bf16.msra.mxu0 0
    %434 = vmatprep.subr.bf16.mxu0 0
    %435 = vmatpush2.bf16.msra.mxu0 0
    %436 = vmatprep.subr.bf16.mxu0 0
    %437 = vmatpush2.bf16.msra.mxu0 0
    %438 = vmatprep.subr.bf16.mxu0 0
    %439 = vmatpush2.bf16.msra.mxu0 0
    %440 = vmatprep.subr.bf16.mxu0 0
    %441 = vmatpush2.bf16.msra.mxu0 0
    %442 = vmatprep.subr.bf16.mxu0 0
    %443 = vmatpush2.bf16.msra.mxu0 0
    %444 = vmatprep.subr.bf16.mxu0 0
    %445 = vmatpush2.bf16.msra.mxu0 0
    %446 = vmatprep.subr.bf16.mxu0 0
    %447 = vmatpush2.bf16.msra.mxu0 0
    %448 = vmatprep.mubr.bf16.mxu0 0
    %449 = vmatmul.mubr.bf16.gmra.mxu0 %v286
    %v450 = vpop.f32.mrf.mxu0
    %v451 = vadd.f32 0.0, %v450
    %v452 = vpop.f32.mrf.mxu0
    %v453 = vadd.f32 0.0, %v452
    %v454 = vpop.f32.mrf.mxu0
    %v455 = vadd.f32 0.0, %v454
    %v456 = vpop.f32.mrf.mxu0
    %v457 = vadd.f32 0.0, %v456
    %458 = vmatprep.mubr.bf16.mxu0 0
    %459 = vmatmul.mubr.bf16.gmra.mxu0 %v287
    %v460 = vpop.f32.mrf.mxu0
    %v461 = vadd.f32 0.0, %v460
    %v462 = vpop.f32.mrf.mxu0
    %v463 = vadd.f32 0.0, %v462
    %v464 = vpop.f32.mrf.mxu0
    %v465 = vadd.f32 0.0, %v464
    %v466 = vpop.f32.mrf.mxu0
    %v467 = vadd.f32 0.0, %v466
    %468 = vdwg.mxu0
    %469 = vmatprep.subr.bf16.mxu0 0
    %470 = vmatpush1.bf16.msra.mxu0 %v391
    %471 = vmatprep.subr.bf16.mxu0 0
    %472 = vmatpush1.bf16.msra.mxu0 %v388
    %473 = vmatprep.subr.bf16.mxu0 0
    %474 = vmatpush1.bf16.msra.mxu0 %v385
    %475 = vmatprep.subr.bf16.mxu0 0
    %476 = vmatpush1.bf16.msra.mxu0 %v382
    %477 = vmatprep.subr.bf16.mxu0 0
    %478 = vmatpush1.bf16.msra.mxu0 %v379
    %479 = vmatprep.subr.bf16.mxu0 0
    %480 = vmatpush1.bf16.msra.mxu0 %v376
    %481 = vmatprep.subr.bf16.mxu0 0
    %482 = vmatpush1.bf16.msra.mxu0 %v373
    %483 = vmatprep.subr.bf16.mxu0 0
    %484 = vmatpush1.bf16.msra.mxu0 %v370
    %485 = vmatprep.subr.bf16.mxu0 0
    %486 = vmatpush2.bf16.msra.mxu0 0
    %487 = vmatprep.subr.bf16.mxu0 0
    %488 = vmatpush2.bf16.msra.mxu0 0
    %489 = vmatprep.subr.bf16.mxu0 0
    %490 = vmatpush2.bf16.msra.mxu0 0
    %491 = vmatprep.subr.bf16.mxu0 0
    %492 = vmatpush2.bf16.msra.mxu0 0
    %493 = vmatprep.subr.bf16.mxu0 0
    %494 = vmatpush2.bf16.msra.mxu0 0
    %495 = vmatprep.subr.bf16.mxu0 0
    %496 = vmatpush2.bf16.msra.mxu0 0
    %497 = vmatprep.subr.bf16.mxu0 0
    %498 = vmatpush2.bf16.msra.mxu0 0
    %499 = vmatprep.subr.bf16.mxu0 0
    %500 = vmatpush2.bf16.msra.mxu0 0
    %501 = vmatprep.mubr.bf16.mxu0 0
    %502 = vmatmul.mubr.bf16.gmra.mxu0 %v286
    %v503 = vpop.f32.mrf.mxu0
    %v504 = vadd.f32 0.0, %v503
    %v505 = vpop.f32.mrf.mxu0
    %v506 = vpop.f32.mrf.mxu0
    %v507 = vadd.f32 0.0, %v506
    %v508 = vpop.f32.mrf.mxu0
    %509 = vmatprep.mubr.bf16.mxu0 0
    %510 = vmatmul.mubr.bf16.gmra.mxu0 %v287
    %v511 = vpop.f32.mrf.mxu0
    %v512 = vadd.f32 0.0, %v511
    %v513 = vpop.f32.mrf.mxu0
    %v514 = vpop.f32.mrf.mxu0
    %v515 = vadd.f32 0.0, %v514
    %v516 = vpop.f32.mrf.mxu0
    %517 = vdwg.mxu0
    %v518 = vpack.c.bf16 %v455, %v451
    %v519 = vpack.c.bf16 %v457, %v453
    %v520 = vpack.c.bf16 %v507, %v504
    %v521 = vpack.c.bf16 %v465, %v461
    %v522 = vpack.c.bf16 %v467, %v463
    %v523 = vpack.c.bf16 %v515, %v512
    %524 = vmatprep.subr.bf16.mxu0 0
    %525 = vmatpush1.bf16.xpose.msra.mxu0 0
    %526 = vmatprep.subr.bf16.mxu0 0
    %527 = vmatpush1.bf16.xpose.msra.mxu0 0
    %528 = vmatprep.subr.bf16.mxu0 0
    %529 = vmatpush1.bf16.xpose.msra.mxu0 0
    %530 = vmatprep.subr.bf16.mxu0 0
    %531 = vmatpush1.bf16.xpose.msra.mxu0 0
    %532 = vmatprep.subr.bf16.mxu0 0
    %533 = vmatpush1.bf16.xpose.msra.mxu0 0
    %534 = vmatprep.subr.bf16.mxu0 0
    %535 = vmatpush1.bf16.xpose.msra.mxu0 0
    %536 = vmatprep.subr.bf16.mxu0 0
    %537 = vmatpush1.bf16.xpose.msra.mxu0 0
    %538 = vmatprep.subr.bf16.mxu0 0
    %539 = vmatpush1.bf16.xpose.msra.mxu0 %v519
    %540 = vmatprep.subr.bf16.mxu0 0
    %541 = vmatpush2.bf16.xpose.msra.mxu0 0
    %542 = vmatprep.subr.bf16.mxu0 0
    %543 = vmatpush2.bf16.xpose.msra.mxu0 0
    %544 = vmatprep.subr.bf16.mxu0 0
    %545 = vmatpush2.bf16.xpose.msra.mxu0 0
    %546 = vmatprep.subr.bf16.mxu0 0
    %547 = vmatpush2.bf16.xpose.msra.mxu0 0
    %548 = vmatprep.subr.bf16.mxu0 0
    %549 = vmatpush2.bf16.xpose.msra.mxu0 0
    %550 = vmatprep.subr.bf16.mxu0 0
    %551 = vmatpush2.bf16.xpose.msra.mxu0 0
    %552 = vmatprep.subr.bf16.mxu0 0
    %553 = vmatpush2.bf16.xpose.msra.mxu0 0
    %554 = vmatprep.subr.bf16.mxu0 0
    %555 = vmatpush2.bf16.xpose.msra.mxu0 0
    %556 = vmatprep.mubr.bf16.mxu0 0
    %557 = vmatmul.mubr.bf16.gmra.mxu0 %v518
    %v558 = vpop.f32.mrf.mxu0
    %v559 = vadd.f32 0.0, %v558
    %v560 = vpop.f32.mrf.mxu0
    %v561 = vpop.f32.mrf.mxu0
    %v562 = vadd.f32 0.0, %v561
    %v563 = vpop.f32.mrf.mxu0
    %564 = vdwg.mxu0
    %565 = vmatprep.subr.bf16.mxu0 0
    %566 = vmatpush1.bf16.xpose.msra.mxu0 0
    %567 = vmatprep.subr.bf16.mxu0 0
    %568 = vmatpush1.bf16.xpose.msra.mxu0 0
    %569 = vmatprep.subr.bf16.mxu0 0
    %570 = vmatpush1.bf16.xpose.msra.mxu0 0
    %571 = vmatprep.subr.bf16.mxu0 0
    %572 = vmatpush1.bf16.xpose.msra.mxu0 0
    %573 = vmatprep.subr.bf16.mxu0 0
    %574 = vmatpush1.bf16.xpose.msra.mxu0 0
    %575 = vmatprep.subr.bf16.mxu0 0
    %576 = vmatpush1.bf16.xpose.msra.mxu0 0
    %577 = vmatprep.subr.bf16.mxu0 0
    %578 = vmatpush1.bf16.xpose.msra.mxu0 0
    %579 = vmatprep.subr.bf16.mxu0 0
    %580 = vmatpush1.bf16.xpose.msra.mxu0 %v522
    %581 = vmatprep.subr.bf16.mxu0 0
    %582 = vmatpush2.bf16.xpose.msra.mxu0 0
    %583 = vmatprep.subr.bf16.mxu0 0
    %584 = vmatpush2.bf16.xpose.msra.mxu0 0
    %585 = vmatprep.subr.bf16.mxu0 0
    %586 = vmatpush2.bf16.xpose.msra.mxu0 0
    %587 = vmatprep.subr.bf16.mxu0 0
    %588 = vmatpush2.bf16.xpose.msra.mxu0 0
    %589 = vmatprep.subr.bf16.mxu0 0
    %590 = vmatpush2.bf16.xpose.msra.mxu0 0
    %591 = vmatprep.subr.bf16.mxu0 0
    %592 = vmatpush2.bf16.xpose.msra.mxu0 0
    %593 = vmatprep.subr.bf16.mxu0 0
    %594 = vmatpush2.bf16.xpose.msra.mxu0 0
    %595 = vmatprep.subr.bf16.mxu0 0
    %596 = vmatpush2.bf16.xpose.msra.mxu0 0
    %597 = vmatprep.mubr.bf16.mxu0 0
    %598 = vmatmul.mubr.bf16.gmra.mxu0 %v521
    %v599 = vpop.f32.mrf.mxu0
    %v600 = vadd.f32 0.0, %v599
    %v601 = vpop.f32.mrf.mxu0
    %v602 = vpop.f32.mrf.mxu0
    %v603 = vadd.f32 0.0, %v602
    %v604 = vpop.f32.mrf.mxu0
    %605 = vdwg.mxu0
    %v606 = vlaneseq
    %v607 = vand.u32 %v606, 127
    %vm608 = vcmp.lt.s32.totalorder %v607, 11
    %v609 = vsel %vm608, 1, 0
    %vm610 = vcmp.eq.s32.totalorder %v609, 1
    %v611 = vsel %vm610, %v559, -1e+30
    %v612 = vsel %vm610, %v562, -1e+30
    %v613 = vsel %vm610, %v600, -1e+30
    %v614 = vsel %vm610, %v603, -1e+30
    %vm615 = vcmask 130048
    %v616 = vsel %vm615, %v611, -inf
    %617 = vmax.xlane.f32.xlu0 %v616
    %v618 = vpop.xlane.xlu0 %617
    %v619 = vsel %vm615, %v612, -inf
    %620 = vmax.xlane.f32.xlu0 %v619
    %v621 = vpop.xlane.xlu0 %620
    %v622 = vsel %vm615, %v613, -inf
    %623 = vmax.xlane.f32.xlu0 %v622
    %v624 = vpop.xlane.xlu0 %623
    %v625 = vsel %vm615, %v614, -inf
    %626 = vmax.xlane.f32.xlu0 %v625
    %v627 = vpop.xlane.xlu0 %626
    %v628 = vsub.f32 %v611, %v618
    %v629 = vsub.f32 %v612, %v621
    %v630 = vsub.f32 %v613, %v624
    %v631 = vsub.f32 %v614, %v627
    %v632 = vmul.f32 %v628, 1.442695
    %v633 = vpow.pop %v632
    %v634 = vmul.f32 %v629, 1.442695
    %v635 = vpow.pop %v634
    %v636 = vmul.f32 %v630, 1.442695
    %v637 = vpow.pop %v636
    %v638 = vmul.f32 %v631, 1.442695
    %v639 = vpow.pop %v638
    %v640 = vsel %vm615, %v633, 0.0
    %641 = vadd.xlane.f32.xlu0 %v640
    %v642 = vpop.xlane.xlu0 %641
    %v643 = vsel %vm615, %v635, 0.0
    %644 = vadd.xlane.f32.xlu0 %v643
    %v645 = vpop.xlane.xlu0 %644
    %v646 = vsel %vm615, %v637, 0.0
    %647 = vadd.xlane.f32.xlu0 %v646
    %v648 = vpop.xlane.xlu0 %647
    %v649 = vsel %vm615, %v639, 0.0
    %650 = vadd.xlane.f32.xlu0 %v649
    %v651 = vpop.xlane.xlu0 %650
    %v652 = vrcp.pop %v642
    %v653 = vrcp.pop %v645
    %v654 = vrcp.pop %v648
    %v655 = vrcp.pop %v651
    %v656 = vmul.f32 %v633, %v652
    %v657 = vmul.f32 %v635, %v653
    %v658 = vmul.f32 %v637, %v654
    %v659 = vmul.f32 %v639, %v655
    %v660 = vpack.c.bf16 %v657, %v656
    %v661 = vpack.c.bf16 %v659, %v658
    %v663 = vsel %vm615, %v660, 0
    %665 = vmatprep.subr.bf16.mxu0 0
    %666 = vmatpush1.bf16.msra.mxu0 0
    %667 = vmatprep.subr.bf16.mxu0 0
    %668 = vmatpush1.bf16.msra.mxu0 0
    %669 = vmatprep.subr.bf16.mxu0 0
    %670 = vmatpush1.bf16.msra.mxu0 0
    %671 = vmatprep.subr.bf16.mxu0 0
    %672 = vmatpush1.bf16.msra.mxu0 0
    %673 = vmatprep.subr.bf16.mxu0 0
    %674 = vmatpush1.bf16.msra.mxu0 0
    %675 = vmatprep.subr.bf16.mxu0 0
    %676 = vmatpush1.bf16.msra.mxu0 0
    %677 = vmatprep.subr.bf16.mxu0 0
    %678 = vmatpush1.bf16.msra.mxu0 0
    %679 = vmatprep.subr.bf16.mxu0 0
    %680 = vmatpush1.bf16.msra.mxu0 %v520
    %681 = vmatprep.subr.bf16.mxu0 0
    %682 = vmatpush2.bf16.msra.mxu0 0
    %683 = vmatprep.subr.bf16.mxu0 0
    %684 = vmatpush2.bf16.msra.mxu0 0
    %685 = vmatprep.subr.bf16.mxu0 0
    %686 = vmatpush2.bf16.msra.mxu0 0
    %687 = vmatprep.subr.bf16.mxu0 0
    %688 = vmatpush2.bf16.msra.mxu0 0
    %689 = vmatprep.subr.bf16.mxu0 0
    %690 = vmatpush2.bf16.msra.mxu0 0
    %691 = vmatprep.subr.bf16.mxu0 0
    %692 = vmatpush2.bf16.msra.mxu0 0
    %693 = vmatprep.subr.bf16.mxu0 0
    %694 = vmatpush2.bf16.msra.mxu0 0
    %695 = vmatprep.subr.bf16.mxu0 0
    %696 = vmatpush2.bf16.msra.mxu0 0
    %697 = vmatprep.mubr.bf16.mxu0 0
    %698 = vmatmul.mubr.bf16.gmra.mxu0 %v663
    %v699 = vpop.f32.mrf.mxu0
    %v700 = vadd.f32 0.0, %v699
    %v701 = vpop.f32.mrf.mxu0
    %v702 = vpop.f32.mrf.mxu0
    %v703 = vadd.f32 0.0, %v702
    %v704 = vpop.f32.mrf.mxu0
    %705 = vdwg.mxu0
    %v707 = vsel %vm615, %v661, 0
    %709 = vmatprep.subr.bf16.mxu0 0
    %710 = vmatpush1.bf16.msra.mxu0 0
    %711 = vmatprep.subr.bf16.mxu0 0
    %712 = vmatpush1.bf16.msra.mxu0 0
    %713 = vmatprep.subr.bf16.mxu0 0
    %714 = vmatpush1.bf16.msra.mxu0 0
    %715 = vmatprep.subr.bf16.mxu0 0
    %716 = vmatpush1.bf16.msra.mxu0 0
    %717 = vmatprep.subr.bf16.mxu0 0
    %718 = vmatpush1.bf16.msra.mxu0 0
    %719 = vmatprep.subr.bf16.mxu0 0
    %720 = vmatpush1.bf16.msra.mxu0 0
    %721 = vmatprep.subr.bf16.mxu0 0
    %722 = vmatpush1.bf16.msra.mxu0 0
    %723 = vmatprep.subr.bf16.mxu0 0
    %724 = vmatpush1.bf16.msra.mxu0 %v523
    %725 = vmatprep.subr.bf16.mxu0 0
    %726 = vmatpush2.bf16.msra.mxu0 0
    %727 = vmatprep.subr.bf16.mxu0 0
    %728 = vmatpush2.bf16.msra.mxu0 0
    %729 = vmatprep.subr.bf16.mxu0 0
    %730 = vmatpush2.bf16.msra.mxu0 0
    %731 = vmatprep.subr.bf16.mxu0 0
    %732 = vmatpush2.bf16.msra.mxu0 0
    %733 = vmatprep.subr.bf16.mxu0 0
    %734 = vmatpush2.bf16.msra.mxu0 0
    %735 = vmatprep.subr.bf16.mxu0 0
    %736 = vmatpush2.bf16.msra.mxu0 0
    %737 = vmatprep.subr.bf16.mxu0 0
    %738 = vmatpush2.bf16.msra.mxu0 0
    %739 = vmatprep.subr.bf16.mxu0 0
    %740 = vmatpush2.bf16.msra.mxu0 0
    %741 = vmatprep.mubr.bf16.mxu0 0
    %742 = vmatmul.mubr.bf16.gmra.mxu0 %v707
    %v743 = vpop.f32.mrf.mxu0
    %v744 = vadd.f32 0.0, %v743
    %v745 = vpop.f32.mrf.mxu0
    %v746 = vpop.f32.mrf.mxu0
    %v747 = vadd.f32 0.0, %v746
    %v748 = vpop.f32.mrf.mxu0
    %749 = vdwg.mxu0
    %v750 = vpack.c.bf16 %v703, %v700
    %v751 = vpack.c.bf16 %v747, %v744
    %v768 = vunpack.c.l.b16 %v181
    %v769 = vunpack.c.l.b16 %v182
    %v770 = vunpack.c.l.b16 %v183
    %v771 = vunpack.c.l.b16 %v184
    %v772 = vunpack.c.l.b16 %v185
    %v773 = vunpack.c.l.b16 %v186
    %v774 = vunpack.c.l.b16 %v187
    %v775 = vunpack.c.l.b16 %v188
    %v776 = vunpack.c.l.b16 %v189
    %v777 = vunpack.c.l.b16 %v190
    %v778 = vunpack.c.l.b16 %v191
    %v779 = vunpack.c.l.b16 %v192
    %v780 = vunpack.c.l.b16 %v193
    %v781 = vunpack.c.l.b16 %v194
    %v782 = vunpack.c.l.b16 %v195
    %v783 = vunpack.c.l.b16 %v196
    %v784 = vpack.c.b16 %v769, %v768
    %v785 = vpack.c.b16 %v771, %v770
    %v786 = vpack.c.b16 %v773, %v772
    %v787 = vpack.c.b16 %v775, %v774
    %v788 = vpack.c.b16 %v777, %v776
    %v789 = vpack.c.b16 %v779, %v778
    %v790 = vpack.c.b16 %v781, %v780
    %v791 = vpack.c.b16 %v783, %v782
    %800 = vmatprep.subr.bf16.mxu0 0
    %801 = vmatpush1.bf16.msra.mxu0 %v791
    %802 = vmatprep.subr.bf16.mxu0 0
    %803 = vmatpush1.bf16.msra.mxu0 %v790
    %804 = vmatprep.subr.bf16.mxu0 0
    %805 = vmatpush1.bf16.msra.mxu0 %v789
    %806 = vmatprep.subr.bf16.mxu0 0
    %807 = vmatpush1.bf16.msra.mxu0 %v788
    %808 = vmatprep.subr.bf16.mxu0 0
    %809 = vmatpush1.bf16.msra.mxu0 %v787
    %810 = vmatprep.subr.bf16.mxu0 0
    %811 = vmatpush1.bf16.msra.mxu0 %v786
    %812 = vmatprep.subr.bf16.mxu0 0
    %813 = vmatpush1.bf16.msra.mxu0 %v785
    %814 = vmatprep.subr.bf16.mxu0 0
    %815 = vmatpush1.bf16.msra.mxu0 %v784
    %816 = vmatprep.subr.bf16.mxu0 0
    %817 = vmatpush2.bf16.msra.mxu0 0
    %818 = vmatprep.subr.bf16.mxu0 0
    %819 = vmatpush2.bf16.msra.mxu0 0
    %820 = vmatprep.subr.bf16.mxu0 0
    %821 = vmatpush2.bf16.msra.mxu0 0
    %822 = vmatprep.subr.bf16.mxu0 0
    %823 = vmatpush2.bf16.msra.mxu0 0
    %824 = vmatprep.subr.bf16.mxu0 0
    %825 = vmatpush2.bf16.msra.mxu0 0
    %826 = vmatprep.subr.bf16.mxu0 0
    %827 = vmatpush2.bf16.msra.mxu0 0
    %828 = vmatprep.subr.bf16.mxu0 0
    %829 = vmatpush2.bf16.msra.mxu0 0
    %830 = vmatprep.subr.bf16.mxu0 0
    %831 = vmatpush2.bf16.msra.mxu0 0
    %832 = vmatprep.mubr.bf16.mxu0 0
    %833 = vmatmul.mubr.bf16.gmra.mxu0 %v750
    %v834 = vpop.f32.mrf.mxu0
    %v835 = vadd.f32 0.0, %v834
    %v836 = vpop.f32.mrf.mxu0
    %v837 = vpop.f32.mrf.mxu0
    %v838 = vadd.f32 0.0, %v837
    %v839 = vpop.f32.mrf.mxu0
    %840 = vmatprep.mubr.bf16.mxu0 0
    %841 = vmatmul.mubr.bf16.gmra.mxu0 %v751
    %v842 = vpop.f32.mrf.mxu0
    %v843 = vadd.f32 0.0, %v842
    %v844 = vpop.f32.mrf.mxu0
    %v845 = vpop.f32.mrf.mxu0
    %v846 = vadd.f32 0.0, %v845
    %v847 = vpop.f32.mrf.mxu0
    %848 = vdwg.mxu0
    %v849 = vadd.f32 %v145, %v835
    %v850 = vadd.f32 %v146, %v838
    %v851 = vadd.f32 %v147, %v843
    %v852 = vadd.f32 %v148, %v846
    %v853 = vmul.f32 %v849, %v849
    %v854 = vmul.f32 %v850, %v850
    %v855 = vmul.f32 %v851, %v851
    %v856 = vmul.f32 %v852, %v852
    %857 = vadd.xlane.f32.xlu0 %v853
    %v858 = vpop.xlane.xlu0 %857
    %859 = vadd.xlane.f32.xlu0 %v854
    %v860 = vpop.xlane.xlu0 %859
    %861 = vadd.xlane.f32.xlu0 %v855
    %v862 = vpop.xlane.xlu0 %861
    %863 = vadd.xlane.f32.xlu0 %v856
    %v864 = vpop.xlane.xlu0 %863
    %v865 = vmul.f32 %v858, %v259
    %v866 = vmul.f32 %v860, %v259
    %v867 = vmul.f32 %v862, %v259
    %v868 = vmul.f32 %v864, %v259
    %v869 = vadd.f32 %v865, 1e-06
    %v870 = vadd.f32 %v866, 1e-06
    %v871 = vadd.f32 %v867, 1e-06
    %v872 = vadd.f32 %v868, 1e-06
    %v873 = vrsqrt.pop %v869
    %v874 = vrsqrt.pop %v870
    %v875 = vrsqrt.pop %v871
    %v876 = vrsqrt.pop %v872
    %v877 = vmul.f32 %v849, %v873
    %v878 = vmul.f32 %v850, %v874
    %v879 = vmul.f32 %v851, %v875
    %v880 = vmul.f32 %v852, %v876
    %v882 = vlaneseq
    %v883 = vshrl.u32 %v882, 7
    %v884 = vsub.s32 0, %v883
    %v885 = vrot.slane %v246, %v884
    %v887 = vmul.f32 %v877, %v885
    %v888 = vmul.f32 %v878, %v885
    %v889 = vmul.f32 %v879, %v885
    %v890 = vmul.f32 %v880, %v885
    %v891 = vpack.c.bf16 %v888, %v887
    %v892 = vpack.c.bf16 %v890, %v889
    %v909 = vunpack.c.l.b16 %v197
    %v910 = vunpack.c.h.b16 %v197
    %v911 = vunpack.c.l.b16 %v198
    %v912 = vunpack.c.h.b16 %v198
    %v913 = vunpack.c.l.b16 %v199
    %v914 = vunpack.c.h.b16 %v199
    %v915 = vunpack.c.l.b16 %v200
    %v916 = vunpack.c.h.b16 %v200
    %v917 = vunpack.c.l.b16 %v201
    %v918 = vunpack.c.h.b16 %v201
    %v919 = vunpack.c.l.b16 %v202
    %v920 = vunpack.c.h.b16 %v202
    %v921 = vunpack.c.l.b16 %v203
    %v922 = vunpack.c.h.b16 %v203
    %v923 = vunpack.c.l.b16 %v204
    %v924 = vunpack.c.h.b16 %v204
    %v925 = vunpack.c.l.b16 %v205
    %v926 = vunpack.c.h.b16 %v205
    %v927 = vunpack.c.l.b16 %v206
    %v928 = vunpack.c.h.b16 %v206
    %v929 = vunpack.c.l.b16 %v207
    %v930 = vunpack.c.h.b16 %v207
    %v931 = vunpack.c.l.b16 %v208
    %v932 = vunpack.c.h.b16 %v208
    %v933 = vunpack.c.l.b16 %v209
    %v934 = vunpack.c.h.b16 %v209
    %v935 = vunpack.c.l.b16 %v210
    %v936 = vunpack.c.h.b16 %v210
    %v937 = vunpack.c.l.b16 %v211
    %v938 = vunpack.c.h.b16 %v211
    %v939 = vunpack.c.l.b16 %v212
    %v940 = vunpack.c.h.b16 %v212
    %v941 = vpack.c.b16 %v911, %v909
    %v942 = vpack.c.b16 %v912, %v910
    %v943 = vpack.c.b16 %v915, %v913
    %v944 = vpack.c.b16 %v916, %v914
    %v945 = vpack.c.b16 %v919, %v917
    %v946 = vpack.c.b16 %v920, %v918
    %v947 = vpack.c.b16 %v923, %v921
    %v948 = vpack.c.b16 %v924, %v922
    %v949 = vpack.c.b16 %v927, %v925
    %v950 = vpack.c.b16 %v928, %v926
    %v951 = vpack.c.b16 %v931, %v929
    %v952 = vpack.c.b16 %v932, %v930
    %v953 = vpack.c.b16 %v935, %v933
    %v954 = vpack.c.b16 %v936, %v934
    %v955 = vpack.c.b16 %v939, %v937
    %v956 = vpack.c.b16 %v940, %v938
    %973 = vmatprep.subr.bf16.mxu0 %v956
    %974 = vmatpush1.bf16.msra.mxu0 %v955
    %975 = vmatprep.subr.bf16.mxu0 %v954
    %976 = vmatpush1.bf16.msra.mxu0 %v953
    %977 = vmatprep.subr.bf16.mxu0 %v952
    %978 = vmatpush1.bf16.msra.mxu0 %v951
    %979 = vmatprep.subr.bf16.mxu0 %v950
    %980 = vmatpush1.bf16.msra.mxu0 %v949
    %981 = vmatprep.subr.bf16.mxu0 %v948
    %982 = vmatpush1.bf16.msra.mxu0 %v947
    %983 = vmatprep.subr.bf16.mxu0 %v946
    %984 = vmatpush1.bf16.msra.mxu0 %v945
    %985 = vmatprep.subr.bf16.mxu0 %v944
    %986 = vmatpush1.bf16.msra.mxu0 %v943
    %987 = vmatprep.subr.bf16.mxu0 %v942
    %988 = vmatpush1.bf16.msra.mxu0 %v941
    %989 = vmatprep.subr.bf16.mxu0 0
    %990 = vmatpush2.bf16.msra.mxu0 0
    %991 = vmatprep.subr.bf16.mxu0 0
    %992 = vmatpush2.bf16.msra.mxu0 0
    %993 = vmatprep.subr.bf16.mxu0 0
    %994 = vmatpush2.bf16.msra.mxu0 0
    %995 = vmatprep.subr.bf16.mxu0 0
    %996 = vmatpush2.bf16.msra.mxu0 0
    %997 = vmatprep.subr.bf16.mxu0 0
    %998 = vmatpush2.bf16.msra.mxu0 0
    %999 = vmatprep.subr.bf16.mxu0 0
    %1000 = vmatpush2.bf16.msra.mxu0 0
    %1001 = vmatprep.subr.bf16.mxu0 0
    %1002 = vmatpush2.bf16.msra.mxu0 0
    %1003 = vmatprep.subr.bf16.mxu0 0
    %1004 = vmatpush2.bf16.msra.mxu0 0
    %1005 = vmatprep.mubr.bf16.mxu0 0
    %1006 = vmatmul.mubr.bf16.gmra.mxu0 %v891
    %v1007 = vpop.f32.mrf.mxu0
    %v1008 = vadd.f32 0.0, %v1007
    %v1009 = vpop.f32.mrf.mxu0
    %v1010 = vadd.f32 0.0, %v1009
    %v1011 = vpop.f32.mrf.mxu0
    %v1012 = vadd.f32 0.0, %v1011
    %v1013 = vpop.f32.mrf.mxu0
    %v1014 = vadd.f32 0.0, %v1013
    %1015 = vmatprep.mubr.bf16.mxu0 0
    %1016 = vmatmul.mubr.bf16.gmra.mxu0 %v892
    %v1017 = vpop.f32.mrf.mxu0
    %v1018 = vadd.f32 0.0, %v1017
    %v1019 = vpop.f32.mrf.mxu0
    %v1020 = vadd.f32 0.0, %v1019
    %v1021 = vpop.f32.mrf.mxu0
    %v1022 = vadd.f32 0.0, %v1021
    %v1023 = vpop.f32.mrf.mxu0
    %v1024 = vadd.f32 0.0, %v1023
    %1025 = vdwg.mxu0
    %v1026 = vmax.f32 %v1008, 0.0
    %v1027 = vmax.f32 %v1010, 0.0
    %v1028 = vmax.f32 %v1012, 0.0
    %v1029 = vmax.f32 %v1014, 0.0
    %v1030 = vmax.f32 %v1018, 0.0
    %v1031 = vmax.f32 %v1020, 0.0
    %v1032 = vmax.f32 %v1022, 0.0
    %v1033 = vmax.f32 %v1024, 0.0
    %v1034 = vpack.c.bf16 %v1028, %v1026
    %v1035 = vpack.c.bf16 %v1029, %v1027
    %v1036 = vpack.c.bf16 %v1032, %v1030
    %v1037 = vpack.c.bf16 %v1033, %v1031
    %v1070 = vunpack.c.l.b16 %v213
    %v1071 = vunpack.c.l.b16 %v214
    %v1072 = vunpack.c.l.b16 %v215
    %v1073 = vunpack.c.l.b16 %v216
    %v1074 = vunpack.c.l.b16 %v217
    %v1075 = vunpack.c.l.b16 %v218
    %v1076 = vunpack.c.l.b16 %v219
    %v1077 = vunpack.c.l.b16 %v220
    %v1078 = vunpack.c.l.b16 %v221
    %v1079 = vunpack.c.l.b16 %v222
    %v1080 = vunpack.c.l.b16 %v223
    %v1081 = vunpack.c.l.b16 %v224
    %v1082 = vunpack.c.l.b16 %v225
    %v1083 = vunpack.c.l.b16 %v226
    %v1084 = vunpack.c.l.b16 %v227
    %v1085 = vunpack.c.l.b16 %v228
    %v1086 = vunpack.c.l.b16 %v229
    %v1087 = vunpack.c.l.b16 %v230
    %v1088 = vunpack.c.l.b16 %v231
    %v1089 = vunpack.c.l.b16 %v232
    %v1090 = vunpack.c.l.b16 %v233
    %v1091 = vunpack.c.l.b16 %v234
    %v1092 = vunpack.c.l.b16 %v235
    %v1093 = vunpack.c.l.b16 %v236
    %v1094 = vunpack.c.l.b16 %v237
    %v1095 = vunpack.c.l.b16 %v238
    %v1096 = vunpack.c.l.b16 %v239
    %v1097 = vunpack.c.l.b16 %v240
    %v1098 = vunpack.c.l.b16 %v241
    %v1099 = vunpack.c.l.b16 %v242
    %v1100 = vunpack.c.l.b16 %v243
    %v1101 = vunpack.c.l.b16 %v244
    %v1102 = vpack.c.b16 %v1071, %v1070
    %v1103 = vpack.c.b16 %v1073, %v1072
    %v1104 = vpack.c.b16 %v1075, %v1074
    %v1105 = vpack.c.b16 %v1077, %v1076
    %v1106 = vpack.c.b16 %v1079, %v1078
    %v1107 = vpack.c.b16 %v1081, %v1080
    %v1108 = vpack.c.b16 %v1083, %v1082
    %v1109 = vpack.c.b16 %v1085, %v1084
    %v1110 = vpack.c.b16 %v1087, %v1086
    %v1111 = vpack.c.b16 %v1089, %v1088
    %v1112 = vpack.c.b16 %v1091, %v1090
    %v1113 = vpack.c.b16 %v1093, %v1092
    %v1114 = vpack.c.b16 %v1095, %v1094
    %v1115 = vpack.c.b16 %v1097, %v1096
    %v1116 = vpack.c.b16 %v1099, %v1098
    %v1117 = vpack.c.b16 %v1101, %v1100
    %1134 = vmatprep.subr.bf16.mxu0 0
    %1135 = vmatpush1.bf16.msra.mxu0 %v1109
    %1136 = vmatprep.subr.bf16.mxu0 0
    %1137 = vmatpush1.bf16.msra.mxu0 %v1108
    %1138 = vmatprep.subr.bf16.mxu0 0
    %1139 = vmatpush1.bf16.msra.mxu0 %v1107
    %1140 = vmatprep.subr.bf16.mxu0 0
    %1141 = vmatpush1.bf16.msra.mxu0 %v1106
    %1142 = vmatprep.subr.bf16.mxu0 0
    %1143 = vmatpush1.bf16.msra.mxu0 %v1105
    %1144 = vmatprep.subr.bf16.mxu0 0
    %1145 = vmatpush1.bf16.msra.mxu0 %v1104
    %1146 = vmatprep.subr.bf16.mxu0 0
    %1147 = vmatpush1.bf16.msra.mxu0 %v1103
    %1148 = vmatprep.subr.bf16.mxu0 0
    %1149 = vmatpush1.bf16.msra.mxu0 %v1102
    %1150 = vmatprep.subr.bf16.mxu0 0
    %1151 = vmatpush2.bf16.msra.mxu0 %v1117
    %1152 = vmatprep.subr.bf16.mxu0 0
    %1153 = vmatpush2.bf16.msra.mxu0 %v1116
    %1154 = vmatprep.subr.bf16.mxu0 0
    %1155 = vmatpush2.bf16.msra.mxu0 %v1115
    %1156 = vmatprep.subr.bf16.mxu0 0
    %1157 = vmatpush2.bf16.msra.mxu0 %v1114
    %1158 = vmatprep.subr.bf16.mxu0 0
    %1159 = vmatpush2.bf16.msra.mxu0 %v1113
    %1160 = vmatprep.subr.bf16.mxu0 0
    %1161 = vmatpush2.bf16.msra.mxu0 %v1112
    %1162 = vmatprep.subr.bf16.mxu0 0
    %1163 = vmatpush2.bf16.msra.mxu0 %v1111
    %1164 = vmatprep.subr.bf16.mxu0 0
    %1165 = vmatpush2.bf16.msra.mxu0 %v1110
    %1166 = vmatprep.mubr.bf16.mxu0 %v1035
    %1167 = vmatmul.mubr.bf16.gmra.mxu0 %v1034
    %v1168 = vpop.f32.mrf.mxu0
    %v1169 = vadd.f32 0.0, %v1168
    %v1170 = vpop.f32.mrf.mxu0
    %v1171 = vpop.f32.mrf.mxu0
    %v1172 = vadd.f32 0.0, %v1171
    %v1173 = vpop.f32.mrf.mxu0
    %1174 = vmatprep.mubr.bf16.mxu0 %v1037
    %1175 = vmatmul.mubr.bf16.gmra.mxu0 %v1036
    %v1176 = vpop.f32.mrf.mxu0
    %v1177 = vadd.f32 0.0, %v1176
    %v1178 = vpop.f32.mrf.mxu0
    %v1179 = vpop.f32.mrf.mxu0
    %v1180 = vadd.f32 0.0, %v1179
    %v1181 = vpop.f32.mrf.mxu0
    %1182 = vdwg.mxu0
    %v1183 = vadd.f32 %v849, %v1169
    %v1184 = vadd.f32 %v850, %v1172
    %v1185 = vadd.f32 %v851, %v1177
    %v1186 = vadd.f32 %v852, %v1180
    %v1187 = vld [vmem:[%s4] sm:$0x3]
    %v1188 = vlaneseq
    %v1189 = vshrl.u32 %v1188, 7
    %v1190 = vsub.s32 0, %v1189
    %v1191 = vrot.slane %v1187, %v1190
    %v1192 = vadd.f32 %v1183, %v1191
    %v1193 = vadd.f32 %v1185, %v1191
    %v1194 = vld [vmem:[%s2] sm:$0xf]
    %v1195 = vld [vmem:[%s2 + $0x4] sm:$0xf]
    %v1196 = vld [vmem:[%s2 + $0x8] sm:$0xf]
    %v1197 = vld [vmem:[%s2 + $0xc] sm:$0xf]
    %v1198 = vld [vmem:[%s2 + $0x10] sm:$0xf]
    %v1199 = vld [vmem:[%s2 + $0x14] sm:$0xf]
    %v1200 = vld [vmem:[%s2 + $0x18] sm:$0xf]
    %v1201 = vld [vmem:[%s2 + $0x1c] sm:$0xf]
    %v1202 = vld [vmem:[%s2 + $0x20] sm:$0xf]
    %v1203 = vld [vmem:[%s2 + $0x24] sm:$0xf]
    %v1204 = vld [vmem:[%s2 + $0x28] sm:$0xf]
    %v1205 = vld [vmem:[%s2 + $0x2c] sm:$0xf]
    %v1206 = vld [vmem:[%s3] sm:$0xf]
    %v1207 = vld [vmem:[%s3 + $0x4] sm:$0xf]
    %v1208 = vld [vmem:[%s3 + $0x8] sm:$0xf]
    %v1209 = vld [vmem:[%s3 + $0xc] sm:$0xf]
    %v1210 = vld [vmem:[%s3 + $0x10] sm:$0xf]
    %v1211 = vld [vmem:[%s3 + $0x14] sm:$0xf]
    %v1212 = vld [vmem:[%s3 + $0x18] sm:$0xf]
    %v1213 = vld [vmem:[%s3 + $0x1c] sm:$0xf]
    %v1214 = vld [vmem:[%s3 + $0x20] sm:$0xf]
    %v1215 = vld [vmem:[%s3 + $0x24] sm:$0xf]
    %v1216 = vld [vmem:[%s3 + $0x28] sm:$0xf]
    %v1217 = vld [vmem:[%s3 + $0x2c] sm:$0xf]
    %v1218 = vld [vmem:[%s3 + $0x30] sm:$0xf]
    %v1219 = vld [vmem:[%s3 + $0x34] sm:$0xf]
    %v1220 = vld [vmem:[%s3 + $0x38] sm:$0xf]
    %v1221 = vld [vmem:[%s3 + $0x3c] sm:$0xf]
    %v1234 = vunpack.c.l.b16 %v1194
    %v1235 = vunpack.c.l.b16 %v1195
    %v1236 = vunpack.c.l.b16 %v1196
    %v1237 = vunpack.c.l.b16 %v1197
    %v1238 = vunpack.c.l.b16 %v1198
    %v1239 = vunpack.c.l.b16 %v1199
    %v1240 = vunpack.c.l.b16 %v1200
    %v1241 = vunpack.c.l.b16 %v1201
    %v1242 = vunpack.c.l.b16 %v1202
    %v1243 = vunpack.c.l.b16 %v1203
    %v1244 = vunpack.c.l.b16 %v1204
    %v1245 = vunpack.c.l.b16 %v1205
    %v1246 = vpack.c.b16 %v1235, %v1234
    %v1247 = vpack.c.b16 %v1237, %v1236
    %v1248 = vpack.c.b16 %v1239, %v1238
    %v1249 = vpack.c.b16 %v1241, %v1240
    %v1250 = vpack.c.b16 %v1243, %v1242
    %v1251 = vpack.c.b16 %v1245, %v1244
    %v1274 = vunpack.c.l.b16 %v1206
    %v1275 = vunpack.c.l.b16 %v1207
    %v1276 = vunpack.c.l.b16 %v1208
    %v1277 = vunpack.c.l.b16 %v1209
    %v1278 = vunpack.c.l.b16 %v1210
    %v1279 = vunpack.c.l.b16 %v1211
    %v1280 = vunpack.c.l.b16 %v1212
    %v1281 = vunpack.c.l.b16 %v1213
    %v1282 = vunpack.c.l.b16 %v1214
    %v1283 = vunpack.c.l.b16 %v1215
    %v1284 = vunpack.c.l.b16 %v1216
    %v1285 = vunpack.c.l.b16 %v1217
    %v1286 = vunpack.c.l.b16 %v1218
    %v1287 = vunpack.c.l.b16 %v1219
    %v1288 = vunpack.c.l.b16 %v1220
    %v1289 = vunpack.c.l.b16 %v1221
    %v1290 = vpack.c.b16 %v1275, %v1274
    %v1291 = vpack.c.b16 %v1277, %v1276
    %v1292 = vpack.c.b16 %v1279, %v1278
    %v1293 = vpack.c.b16 %v1281, %v1280
    %v1294 = vpack.c.b16 %v1283, %v1282
    %v1295 = vpack.c.b16 %v1285, %v1284
    %v1296 = vpack.c.b16 %v1287, %v1286
    %v1297 = vpack.c.b16 %v1289, %v1288
    %1306 = vmatprep.subr.bf16.mxu0 0
    %1307 = vmatpush1.bf16.msra.mxu0 %v1297
    %1308 = vmatprep.subr.bf16.mxu0 0
    %1309 = vmatpush1.bf16.msra.mxu0 %v1296
    %1310 = vmatprep.subr.bf16.mxu0 0
    %1311 = vmatpush1.bf16.msra.mxu0 %v1295
    %1312 = vmatprep.subr.bf16.mxu0 0
    %1313 = vmatpush1.bf16.msra.mxu0 %v1294
    %1314 = vmatprep.subr.bf16.mxu0 0
    %1315 = vmatpush1.bf16.msra.mxu0 %v1293
    %1316 = vmatprep.subr.bf16.mxu0 0
    %1317 = vmatpush1.bf16.msra.mxu0 %v1292
    %1318 = vmatprep.subr.bf16.mxu0 0
    %1319 = vmatpush1.bf16.msra.mxu0 %v1291
    %1320 = vmatprep.subr.bf16.mxu0 0
    %1321 = vmatpush1.bf16.msra.mxu0 %v1290
    %1322 = vmatprep.subr.bf16.mxu0 0
    %1323 = vmatpush2.bf16.msra.mxu0 0
    %1324 = vmatprep.subr.bf16.mxu0 0
    %1325 = vmatpush2.bf16.msra.mxu0 0
    %1326 = vmatprep.subr.bf16.mxu0 0
    %1327 = vmatpush2.bf16.msra.mxu0 0
    %1328 = vmatprep.subr.bf16.mxu0 0
    %1329 = vmatpush2.bf16.msra.mxu0 0
    %1330 = vmatprep.subr.bf16.mxu0 0
    %1331 = vmatpush2.bf16.msra.mxu0 0
    %1332 = vmatprep.subr.bf16.mxu0 0
    %1333 = vmatpush2.bf16.msra.mxu0 0
    %1334 = vmatprep.subr.bf16.mxu0 0
    %1335 = vmatpush2.bf16.msra.mxu0 0
    %1336 = vmatprep.subr.bf16.mxu0 0
    %1337 = vmatpush2.bf16.msra.mxu0 0
    %1338 = vmatprep.mubr.bf16.mxu0 0
    %1339 = vmatmul.mubr.bf16.gmra.mxu0 %v1246
    %v1340 = vpop.f32.mrf.mxu0
    %v1341 = vadd.f32 0.0, %v1340
    %v1342 = vpop.f32.mrf.mxu0
    %v1343 = vpop.f32.mrf.mxu0
    %v1344 = vadd.f32 0.0, %v1343
    %v1345 = vpop.f32.mrf.mxu0
    %1346 = vmatprep.mubr.bf16.mxu0 0
    %1347 = vmatmul.mubr.bf16.gmra.mxu0 %v1247
    %v1348 = vpop.f32.mrf.mxu0
    %v1349 = vadd.f32 0.0, %v1348
    %v1350 = vpop.f32.mrf.mxu0
    %v1351 = vpop.f32.mrf.mxu0
    %v1352 = vadd.f32 0.0, %v1351
    %v1353 = vpop.f32.mrf.mxu0
    %1354 = vmatprep.mubr.bf16.mxu0 0
    %1355 = vmatmul.mubr.bf16.gmra.mxu0 %v1248
    %v1356 = vpop.f32.mrf.mxu0
    %v1357 = vadd.f32 0.0, %v1356
    %v1358 = vpop.f32.mrf.mxu0
    %v1359 = vpop.f32.mrf.mxu0
    %v1360 = vadd.f32 0.0, %v1359
    %v1361 = vpop.f32.mrf.mxu0
    %1362 = vmatprep.mubr.bf16.mxu0 0
    %1363 = vmatmul.mubr.bf16.gmra.mxu0 %v1249
    %v1364 = vpop.f32.mrf.mxu0
    %v1365 = vadd.f32 0.0, %v1364
    %v1366 = vpop.f32.mrf.mxu0
    %v1367 = vpop.f32.mrf.mxu0
    %v1368 = vadd.f32 0.0, %v1367
    %v1369 = vpop.f32.mrf.mxu0
    %1370 = vmatprep.mubr.bf16.mxu0 0
    %1371 = vmatmul.mubr.bf16.gmra.mxu0 %v1250
    %v1372 = vpop.f32.mrf.mxu0
    %v1373 = vadd.f32 0.0, %v1372
    %v1374 = vpop.f32.mrf.mxu0
    %v1375 = vpop.f32.mrf.mxu0
    %v1376 = vadd.f32 0.0, %v1375
    %v1377 = vpop.f32.mrf.mxu0
    %1378 = vmatprep.mubr.bf16.mxu0 0
    %1379 = vmatmul.mubr.bf16.gmra.mxu0 %v1251
    %v1380 = vpop.f32.mrf.mxu0
    %v1381 = vadd.f32 0.0, %v1380
    %v1382 = vpop.f32.mrf.mxu0
    %v1383 = vpop.f32.mrf.mxu0
    %v1384 = vadd.f32 0.0, %v1383
    %v1385 = vpop.f32.mrf.mxu0
    %1386 = vdwg.mxu0
    %v1390 = vunpack.c.l.s4 1966171168
    %v1391 = vunpack.c.0.s8 %v1390
    %v1392 = vlaneseq
    %v1393 = vshrl.u32 %v1392, 7
    %v1394 = vsub.s32 %v1391, %v1393
    %v1395 = vrot.slane %v1184, %v1394
    %v1396 = vcombine.high %v1395, %v1395
    %v1398 = vunpack.c.l.s4 1966171168
    %v1399 = vunpack.c.0.s8 %v1398
    %v1400 = vlaneseq
    %v1401 = vshrl.u32 %v1400, 7
    %v1402 = vsub.s32 %v1399, %v1401
    %v1403 = vrot.slane %v1395, %v1402
    %v1405 = vunpack.c.l.s4 1966171168
    %v1406 = vunpack.c.0.s8 %v1405
    %v1407 = vlaneseq
    %v1408 = vshrl.u32 %v1407, 7
    %v1409 = vsub.s32 %v1406, %v1408
    %v1410 = vrot.slane %v1396, %v1409
    %v1411 = vcombine.high %v1403, %v1403
    %v1413 = vunpack.c.l.s4 1966171168
    %v1414 = vunpack.c.0.s8 %v1413
    %v1415 = vlaneseq
    %v1416 = vshrl.u32 %v1415, 7
    %v1417 = vsub.s32 %v1414, %v1416
    %v1418 = vrot.slane %v1186, %v1417
    %v1419 = vcombine.high %v1418, %v1418
    %v1421 = vunpack.c.l.s4 1966171168
    %v1422 = vunpack.c.0.s8 %v1421
    %v1423 = vlaneseq
    %v1424 = vshrl.u32 %v1423, 7
    %v1425 = vsub.s32 %v1422, %v1424
    %v1426 = vrot.slane %v1418, %v1425
    %v1428 = vunpack.c.l.s4 1966171168
    %v1429 = vunpack.c.0.s8 %v1428
    %v1430 = vlaneseq
    %v1431 = vshrl.u32 %v1430, 7
    %v1432 = vsub.s32 %v1429, %v1431
    %v1433 = vrot.slane %v1419, %v1432
    %v1434 = vcombine.high %v1426, %v1426
    %v1435 = vlaneseq
    %v1436 = vshrl.u32 %v1435, 7
    %v1437 = vsub.s32 0, %v1436
    %v1438 = vrot.slane %v1403, %v1437
    %v1439 = vlaneseq
    %v1440 = vshrl.u32 %v1439, 7
    %v1441 = vsub.s32 0, %v1440
    %v1442 = vrot.slane %v1410, %v1441
    %v1443 = vlaneseq
    %v1444 = vshrl.u32 %v1443, 7
    %v1445 = vsub.s32 0, %v1444
    %v1446 = vrot.slane %v1411, %v1445
    %v1447 = vlaneseq
    %v1448 = vshrl.u32 %v1447, 7
    %v1449 = vsub.s32 0, %v1448
    %v1450 = vrot.slane %v1426, %v1449
    %v1451 = vlaneseq
    %v1452 = vshrl.u32 %v1451, 7
    %v1453 = vsub.s32 0, %v1452
    %v1454 = vrot.slane %v1433, %v1453
    %v1455 = vlaneseq
    %v1456 = vshrl.u32 %v1455, 7
    %v1457 = vsub.s32 0, %v1456
    %v1458 = vrot.slane %v1434, %v1457
    %v1465 = vadd.f32 %v1341, %v1438
    %v1466 = vadd.f32 %v1344, %v1438
    %v1467 = vadd.f32 %v1349, %v1442
    %v1468 = vadd.f32 %v1352, %v1442
    %v1469 = vadd.f32 %v1357, %v1446
    %v1470 = vadd.f32 %v1360, %v1446
    %v1471 = vadd.f32 %v1365, %v1450
    %v1472 = vadd.f32 %v1368, %v1450
    %v1473 = vadd.f32 %v1373, %v1454
    %v1474 = vadd.f32 %v1376, %v1454
    %v1475 = vadd.f32 %v1381, %v1458
    %v1476 = vadd.f32 %v1384, %v1458
    %v1477 = vlaneseq
    %v1478 = vshrl.u32 %v1477, 7
    %v1479 = vsub.s32 1, %v1478
    %v1480 = vrot.slane %v1187, %v1479
    %v1481 = vadd.f32 %v1465, %v1480
    %v1482 = vadd.f32 %v1466, %v1480
    %v1483 = vadd.f32 %v1467, %v1480
    %v1484 = vadd.f32 %v1468, %v1480
    %v1485 = vadd.f32 %v1469, %v1480
    %v1486 = vadd.f32 %v1470, %v1480
    %v1487 = vadd.f32 %v1471, %v1480
    %v1488 = vadd.f32 %v1472, %v1480
    %v1489 = vadd.f32 %v1473, %v1480
    %v1490 = vadd.f32 %v1474, %v1480
    %v1491 = vadd.f32 %v1475, %v1480
    %v1492 = vadd.f32 %v1476, %v1480
    %1493 = vst [vmem:[%s17] sm:$0xff] %v1192
    %1494 = vst [vmem:[%s17 + $0x40] sm:$0xff] %v1193
    %1495 = vst [vmem:[%s17 + $0x8] sm:$0xff] %v1481
    %1496 = vst [vmem:[%s17 + $0x10] sm:$0xff] %v1482
    %1497 = vst [vmem:[%s17 + $0x18] sm:$0xff] %v1483
    %1498 = vst [vmem:[%s17 + $0x20] sm:$0xff] %v1484
    %1499 = vst [vmem:[%s17 + $0x28] sm:$0xff] %v1485
    %1500 = vst [vmem:[%s17 + $0x30] sm:$0xff] %v1486
    %1501 = vst [vmem:[%s17 + $0x48] sm:$0xff] %v1487
    %1502 = vst [vmem:[%s17 + $0x50] sm:$0xff] %v1488
    %1503 = vst [vmem:[%s17 + $0x58] sm:$0xff] %v1489
    %1504 = vst [vmem:[%s17 + $0x60] sm:$0xff] %v1490
    %1505 = vst [vmem:[%s17 + $0x68] sm:$0xff] %v1491
    %1506 = vst [vmem:[%s17 + $0x70] sm:$0xff] %v1492
    %1507 = vst [vmem:[%s17 + $0x38] sm:$0xff] 0.0
    %1508 = vst [vmem:[%s17 + $0x78] sm:$0xff] 0.0
    %v1509 = vld [vmem:[%s17] sm:$0xff]
    %v1510 = vld [vmem:[%s17 + $0x8] sm:$0xff]
    %v1511 = vld [vmem:[%s17 + $0x10] sm:$0xff]
    %v1512 = vld [vmem:[%s17 + $0x18] sm:$0xff]
    %v1513 = vld [vmem:[%s17 + $0x20] sm:$0xff]
    %v1514 = vld [vmem:[%s17 + $0x28] sm:$0xff]
    %v1515 = vld [vmem:[%s17 + $0x30] sm:$0xff]
    %v1516 = vld [vmem:[%s17 + $0x38] sm:$0xff]
    %v1517 = vld [vmem:[%s17 + $0x40] sm:$0xff]
    %v1518 = vld [vmem:[%s17 + $0x48] sm:$0xff]
    %v1519 = vld [vmem:[%s17 + $0x50] sm:$0xff]
    %v1520 = vld [vmem:[%s17 + $0x58] sm:$0xff]
    %v1521 = vld [vmem:[%s17 + $0x60] sm:$0xff]
    %v1522 = vld [vmem:[%s17 + $0x68] sm:$0xff]
    %v1523 = vld [vmem:[%s17 + $0x70] sm:$0xff]
    %v1524 = vld [vmem:[%s17 + $0x78] sm:$0xff]
    %v1525 = vld [vmem:[%s11] sm:$0xff]
    %v1526 = vld [vmem:[%s11 + $0x8] sm:$0xf]
    %v1527 = vld [vmem:[%s11 + $0xc] sm:$0xff]
    %v1528 = vld [vmem:[%s11 + $0x14] sm:$0xf]
    %v1529 = vld [vmem:[%s11 + $0x18] sm:$0xff]
    %v1530 = vld [vmem:[%s11 + $0x20] sm:$0xf]
    %v1531 = vld [vmem:[%s11 + $0x24] sm:$0xff]
    %v1532 = vld [vmem:[%s11 + $0x2c] sm:$0xf]
    %v1533 = vld [vmem:[%s11 + $0x30] sm:$0xff]
    %v1534 = vld [vmem:[%s11 + $0x38] sm:$0xf]
    %v1535 = vld [vmem:[%s11 + $0x3c] sm:$0xff]
    %v1536 = vld [vmem:[%s11 + $0x44] sm:$0xf]
    %v1537 = vld [vmem:[%s11 + $0x48] sm:$0xff]
    %v1538 = vld [vmem:[%s11 + $0x50] sm:$0xf]
    %v1539 = vld [vmem:[%s11 + $0x54] sm:$0xff]
    %v1540 = vld [vmem:[%s11 + $0x5c] sm:$0xf]
    %v1541 = vld [vmem:[%s11 + $0x60] sm:$0xff]
    %v1542 = vld [vmem:[%s11 + $0x68] sm:$0xf]
    %v1543 = vld [vmem:[%s11 + $0x6c] sm:$0xff]
    %v1544 = vld [vmem:[%s11 + $0x74] sm:$0xf]
    %v1545 = vld [vmem:[%s11 + $0x78] sm:$0xff]
    %v1546 = vld [vmem:[%s11 + $0x80] sm:$0xf]
    %v1547 = vld [vmem:[%s11 + $0x84] sm:$0xff]
    %v1548 = vld [vmem:[%s11 + $0x8c] sm:$0xf]
    %v1549 = vld [vmem:[%s11 + $0x90] sm:$0xff]
    %v1550 = vld [vmem:[%s11 + $0x98] sm:$0xf]
    %v1551 = vld [vmem:[%s11 + $0x9c] sm:$0xff]
    %v1552 = vld [vmem:[%s11 + $0xa4] sm:$0xf]
    %v1553 = vld [vmem:[%s11 + $0xa8] sm:$0xff]
    %v1554 = vld [vmem:[%s11 + $0xb0] sm:$0xf]
    %v1555 = vld [vmem:[%s11 + $0xb4] sm:$0xff]
    %v1556 = vld [vmem:[%s11 + $0xbc] sm:$0xf]
    %v1557 = vld [vmem:[%s12] sm:$0xf]
    %v1558 = vld [vmem:[%s12 + $0x4] sm:$0xf]
    %v1559 = vld [vmem:[%s12 + $0x8] sm:$0xf]
    %v1560 = vld [vmem:[%s12 + $0xc] sm:$0xf]
    %v1561 = vld [vmem:[%s12 + $0x10] sm:$0xf]
    %v1562 = vld [vmem:[%s12 + $0x14] sm:$0xf]
    %v1563 = vld [vmem:[%s12 + $0x18] sm:$0xf]
    %v1564 = vld [vmem:[%s12 + $0x1c] sm:$0xf]
    %v1565 = vld [vmem:[%s12 + $0x20] sm:$0xf]
    %v1566 = vld [vmem:[%s12 + $0x24] sm:$0xf]
    %v1567 = vld [vmem:[%s12 + $0x28] sm:$0xf]
    %v1568 = vld [vmem:[%s12 + $0x2c] sm:$0xf]
    %v1569 = vld [vmem:[%s12 + $0x30] sm:$0xf]
    %v1570 = vld [vmem:[%s12 + $0x34] sm:$0xf]
    %v1571 = vld [vmem:[%s12 + $0x38] sm:$0xf]
    %v1572 = vld [vmem:[%s12 + $0x3c] sm:$0xf]
    %v1573 = vld [vmem:[%s13] sm:$0xff]
    %v1574 = vld [vmem:[%s13 + $0x8] sm:$0xff]
    %v1575 = vld [vmem:[%s13 + $0x10] sm:$0xff]
    %v1576 = vld [vmem:[%s13 + $0x18] sm:$0xff]
    %v1577 = vld [vmem:[%s13 + $0x20] sm:$0xff]
    %v1578 = vld [vmem:[%s13 + $0x28] sm:$0xff]
    %v1579 = vld [vmem:[%s13 + $0x30] sm:$0xff]
    %v1580 = vld [vmem:[%s13 + $0x38] sm:$0xff]
    %v1581 = vld [vmem:[%s13 + $0x40] sm:$0xff]
    %v1582 = vld [vmem:[%s13 + $0x48] sm:$0xff]
    %v1583 = vld [vmem:[%s13 + $0x50] sm:$0xff]
    %v1584 = vld [vmem:[%s13 + $0x58] sm:$0xff]
    %v1585 = vld [vmem:[%s13 + $0x60] sm:$0xff]
    %v1586 = vld [vmem:[%s13 + $0x68] sm:$0xff]
    %v1587 = vld [vmem:[%s13 + $0x70] sm:$0xff]
    %v1588 = vld [vmem:[%s13 + $0x78] sm:$0xff]
    %v1589 = vld [vmem:[%s14] sm:$0xf]
    %v1590 = vld [vmem:[%s14 + $0x4] sm:$0xf]
    %v1591 = vld [vmem:[%s14 + $0x8] sm:$0xf]
    %v1592 = vld [vmem:[%s14 + $0xc] sm:$0xf]
    %v1593 = vld [vmem:[%s14 + $0x10] sm:$0xf]
    %v1594 = vld [vmem:[%s14 + $0x14] sm:$0xf]
    %v1595 = vld [vmem:[%s14 + $0x18] sm:$0xf]
    %v1596 = vld [vmem:[%s14 + $0x1c] sm:$0xf]
    %v1597 = vld [vmem:[%s14 + $0x20] sm:$0xf]
    %v1598 = vld [vmem:[%s14 + $0x24] sm:$0xf]
    %v1599 = vld [vmem:[%s14 + $0x28] sm:$0xf]
    %v1600 = vld [vmem:[%s14 + $0x2c] sm:$0xf]
    %v1601 = vld [vmem:[%s14 + $0x30] sm:$0xf]
    %v1602 = vld [vmem:[%s14 + $0x34] sm:$0xf]
    %v1603 = vld [vmem:[%s14 + $0x38] sm:$0xf]
    %v1604 = vld [vmem:[%s14 + $0x3c] sm:$0xf]
    %v1605 = vld [vmem:[%s14 + $0x40] sm:$0xf]
    %v1606 = vld [vmem:[%s14 + $0x44] sm:$0xf]
    %v1607 = vld [vmem:[%s14 + $0x48] sm:$0xf]
    %v1608 = vld [vmem:[%s14 + $0x4c] sm:$0xf]
    %v1609 = vld [vmem:[%s14 + $0x50] sm:$0xf]
    %v1610 = vld [vmem:[%s14 + $0x54] sm:$0xf]
    %v1611 = vld [vmem:[%s14 + $0x58] sm:$0xf]
    %v1612 = vld [vmem:[%s14 + $0x5c] sm:$0xf]
    %v1613 = vld [vmem:[%s14 + $0x60] sm:$0xf]
    %v1614 = vld [vmem:[%s14 + $0x64] sm:$0xf]
    %v1615 = vld [vmem:[%s14 + $0x68] sm:$0xf]
    %v1616 = vld [vmem:[%s14 + $0x6c] sm:$0xf]
    %v1617 = vld [vmem:[%s14 + $0x70] sm:$0xf]
    %v1618 = vld [vmem:[%s14 + $0x74] sm:$0xf]
    %v1619 = vld [vmem:[%s14 + $0x78] sm:$0xf]
    %v1620 = vld [vmem:[%s14 + $0x7c] sm:$0xf]
    %v1621 = vld [vmem:[%s15] sm:$0x1]
    %v1622 = vld [vmem:[%s16] sm:$0x1]
    %v1623 = vmul.f32 %v1509, %v1509
    %v1624 = vmul.f32 %v1510, %v1510
    %v1625 = vmul.f32 %v1511, %v1511
    %v1626 = vmul.f32 %v1512, %v1512
    %v1627 = vmul.f32 %v1513, %v1513
    %v1628 = vmul.f32 %v1514, %v1514
    %v1629 = vmul.f32 %v1515, %v1515
    %v1630 = vmul.f32 %v1516, %v1516
    %v1631 = vmul.f32 %v1517, %v1517
    %v1632 = vmul.f32 %v1518, %v1518
    %v1633 = vmul.f32 %v1519, %v1519
    %v1634 = vmul.f32 %v1520, %v1520
    %v1635 = vmul.f32 %v1521, %v1521
    %v1636 = vmul.f32 %v1522, %v1522
    %v1637 = vmul.f32 %v1523, %v1523
    %v1638 = vmul.f32 %v1524, %v1524
    %1639 = vadd.xlane.f32.xlu0 %v1623
    %v1640 = vpop.xlane.xlu0 %1639
    %1641 = vadd.xlane.f32.xlu0 %v1624
    %v1642 = vpop.xlane.xlu0 %1641
    %1643 = vadd.xlane.f32.xlu0 %v1625
    %v1644 = vpop.xlane.xlu0 %1643
    %1645 = vadd.xlane.f32.xlu0 %v1626
    %v1646 = vpop.xlane.xlu0 %1645
    %1647 = vadd.xlane.f32.xlu0 %v1627
    %v1648 = vpop.xlane.xlu0 %1647
    %1649 = vadd.xlane.f32.xlu0 %v1628
    %v1650 = vpop.xlane.xlu0 %1649
    %1651 = vadd.xlane.f32.xlu0 %v1629
    %v1652 = vpop.xlane.xlu0 %1651
    %1653 = vadd.xlane.f32.xlu0 %v1630
    %v1654 = vpop.xlane.xlu0 %1653
    %1655 = vadd.xlane.f32.xlu0 %v1631
    %v1656 = vpop.xlane.xlu0 %1655
    %1657 = vadd.xlane.f32.xlu0 %v1632
    %v1658 = vpop.xlane.xlu0 %1657
    %1659 = vadd.xlane.f32.xlu0 %v1633
    %v1660 = vpop.xlane.xlu0 %1659
    %1661 = vadd.xlane.f32.xlu0 %v1634
    %v1662 = vpop.xlane.xlu0 %1661
    %1663 = vadd.xlane.f32.xlu0 %v1635
    %v1664 = vpop.xlane.xlu0 %1663
    %1665 = vadd.xlane.f32.xlu0 %v1636
    %v1666 = vpop.xlane.xlu0 %1665
    %1667 = vadd.xlane.f32.xlu0 %v1637
    %v1668 = vpop.xlane.xlu0 %1667
    %1669 = vadd.xlane.f32.xlu0 %v1638
    %v1670 = vpop.xlane.xlu0 %1669
    %v1671 = vmul.f32 %v1640, %v259
    %v1672 = vmul.f32 %v1642, %v259
    %v1673 = vmul.f32 %v1644, %v259
    %v1674 = vmul.f32 %v1646, %v259
    %v1675 = vmul.f32 %v1648, %v259
    %v1676 = vmul.f32 %v1650, %v259
    %v1677 = vmul.f32 %v1652, %v259
    %v1678 = vmul.f32 %v1654, %v259
    %v1679 = vmul.f32 %v1656, %v259
    %v1680 = vmul.f32 %v1658, %v259
    %v1681 = vmul.f32 %v1660, %v259
    %v1682 = vmul.f32 %v1662, %v259
    %v1683 = vmul.f32 %v1664, %v259
    %v1684 = vmul.f32 %v1666, %v259
    %v1685 = vmul.f32 %v1668, %v259
    %v1686 = vmul.f32 %v1670, %v259
    %v1687 = vadd.f32 %v1671, 1e-06
    %v1688 = vadd.f32 %v1672, 1e-06
    %v1689 = vadd.f32 %v1673, 1e-06
    %v1690 = vadd.f32 %v1674, 1e-06
    %v1691 = vadd.f32 %v1675, 1e-06
    %v1692 = vadd.f32 %v1676, 1e-06
    %v1693 = vadd.f32 %v1677, 1e-06
    %v1694 = vadd.f32 %v1678, 1e-06
    %v1695 = vadd.f32 %v1679, 1e-06
    %v1696 = vadd.f32 %v1680, 1e-06
    %v1697 = vadd.f32 %v1681, 1e-06
    %v1698 = vadd.f32 %v1682, 1e-06
    %v1699 = vadd.f32 %v1683, 1e-06
    %v1700 = vadd.f32 %v1684, 1e-06
    %v1701 = vadd.f32 %v1685, 1e-06
    %v1702 = vadd.f32 %v1686, 1e-06
    %v1703 = vrsqrt.pop %v1687
    %v1704 = vrsqrt.pop %v1688
    %v1705 = vrsqrt.pop %v1689
    %v1706 = vrsqrt.pop %v1690
    %v1707 = vrsqrt.pop %v1691
    %v1708 = vrsqrt.pop %v1692
    %v1709 = vrsqrt.pop %v1693
    %v1710 = vrsqrt.pop %v1694
    %v1711 = vrsqrt.pop %v1695
    %v1712 = vrsqrt.pop %v1696
    %v1713 = vrsqrt.pop %v1697
    %v1714 = vrsqrt.pop %v1698
    %v1715 = vrsqrt.pop %v1699
    %v1716 = vrsqrt.pop %v1700
    %v1717 = vrsqrt.pop %v1701
    %v1718 = vrsqrt.pop %v1702
    %v1719 = vmul.f32 %v1509, %v1703
    %v1720 = vmul.f32 %v1510, %v1704
    %v1721 = vmul.f32 %v1511, %v1705
    %v1722 = vmul.f32 %v1512, %v1706
    %v1723 = vmul.f32 %v1513, %v1707
    %v1724 = vmul.f32 %v1514, %v1708
    %v1725 = vmul.f32 %v1515, %v1709
    %v1726 = vmul.f32 %v1516, %v1710
    %v1727 = vmul.f32 %v1517, %v1711
    %v1728 = vmul.f32 %v1518, %v1712
    %v1729 = vmul.f32 %v1519, %v1713
    %v1730 = vmul.f32 %v1520, %v1714
    %v1731 = vmul.f32 %v1521, %v1715
    %v1732 = vmul.f32 %v1522, %v1716
    %v1733 = vmul.f32 %v1523, %v1717
    %v1734 = vmul.f32 %v1524, %v1718
    %v1736 = vlaneseq
    %v1737 = vshrl.u32 %v1736, 7
    %v1738 = vsub.s32 0, %v1737
    %v1739 = vrot.slane %v1621, %v1738
    %v1741 = vmul.f32 %v1719, %v1739
    %v1742 = vmul.f32 %v1720, %v1739
    %v1743 = vmul.f32 %v1721, %v1739
    %v1744 = vmul.f32 %v1722, %v1739
    %v1745 = vmul.f32 %v1723, %v1739
    %v1746 = vmul.f32 %v1724, %v1739
    %v1747 = vmul.f32 %v1725, %v1739
    %v1748 = vmul.f32 %v1726, %v1739
    %v1749 = vmul.f32 %v1727, %v1739
    %v1750 = vmul.f32 %v1728, %v1739
    %v1751 = vmul.f32 %v1729, %v1739
    %v1752 = vmul.f32 %v1730, %v1739
    %v1753 = vmul.f32 %v1731, %v1739
    %v1754 = vmul.f32 %v1732, %v1739
    %v1755 = vmul.f32 %v1733, %v1739
    %v1756 = vmul.f32 %v1734, %v1739
    %v1757 = vpack.c.bf16 %v1742, %v1741
    %v1758 = vpack.c.bf16 %v1744, %v1743
    %v1759 = vpack.c.bf16 %v1746, %v1745
    %v1760 = vpack.c.bf16 %v1748, %v1747
    %v1761 = vpack.c.bf16 %v1750, %v1749
    %v1762 = vpack.c.bf16 %v1752, %v1751
    %v1763 = vpack.c.bf16 %v1754, %v1753
    %v1764 = vpack.c.bf16 %v1756, %v1755
    %v1797 = vunpack.c.l.b16 %v1525
    %v1798 = vunpack.c.h.b16 %v1525
    %v1799 = vunpack.c.l.b16 %v1526
    %v1800 = vunpack.c.l.b16 %v1527
    %v1801 = vunpack.c.h.b16 %v1527
    %v1802 = vunpack.c.l.b16 %v1528
    %v1803 = vunpack.c.l.b16 %v1529
    %v1804 = vunpack.c.h.b16 %v1529
    %v1805 = vunpack.c.l.b16 %v1530
    %v1806 = vunpack.c.l.b16 %v1531
    %v1807 = vunpack.c.h.b16 %v1531
    %v1808 = vunpack.c.l.b16 %v1532
    %v1809 = vunpack.c.l.b16 %v1533
    %v1810 = vunpack.c.h.b16 %v1533
    %v1811 = vunpack.c.l.b16 %v1534
    %v1812 = vunpack.c.l.b16 %v1535
    %v1813 = vunpack.c.h.b16 %v1535
    %v1814 = vunpack.c.l.b16 %v1536
    %v1815 = vunpack.c.l.b16 %v1537
    %v1816 = vunpack.c.h.b16 %v1537
    %v1817 = vunpack.c.l.b16 %v1538
    %v1818 = vunpack.c.l.b16 %v1539
    %v1819 = vunpack.c.h.b16 %v1539
    %v1820 = vunpack.c.l.b16 %v1540
    %v1821 = vunpack.c.l.b16 %v1541
    %v1822 = vunpack.c.h.b16 %v1541
    %v1823 = vunpack.c.l.b16 %v1542
    %v1824 = vunpack.c.l.b16 %v1543
    %v1825 = vunpack.c.h.b16 %v1543
    %v1826 = vunpack.c.l.b16 %v1544
    %v1827 = vunpack.c.l.b16 %v1545
    %v1828 = vunpack.c.h.b16 %v1545
    %v1829 = vunpack.c.l.b16 %v1546
    %v1830 = vunpack.c.l.b16 %v1547
    %v1831 = vunpack.c.h.b16 %v1547
    %v1832 = vunpack.c.l.b16 %v1548
    %v1833 = vunpack.c.l.b16 %v1549
    %v1834 = vunpack.c.h.b16 %v1549
    %v1835 = vunpack.c.l.b16 %v1550
    %v1836 = vunpack.c.l.b16 %v1551
    %v1837 = vunpack.c.h.b16 %v1551
    %v1838 = vunpack.c.l.b16 %v1552
    %v1839 = vunpack.c.l.b16 %v1553
    %v1840 = vunpack.c.h.b16 %v1553
    %v1841 = vunpack.c.l.b16 %v1554
    %v1842 = vunpack.c.l.b16 %v1555
    %v1843 = vunpack.c.h.b16 %v1555
    %v1844 = vunpack.c.l.b16 %v1556
    %v1845 = vpack.c.b16 %v1800, %v1797
    %v1846 = vpack.c.b16 %v1801, %v1798
    %v1847 = vpack.c.b16 %v1802, %v1799
    %v1848 = vpack.c.b16 %v1806, %v1803
    %v1849 = vpack.c.b16 %v1807, %v1804
    %v1850 = vpack.c.b16 %v1808, %v1805
    %v1851 = vpack.c.b16 %v1812, %v1809
    %v1852 = vpack.c.b16 %v1813, %v1810
    %v1853 = vpack.c.b16 %v1814, %v1811
    %v1854 = vpack.c.b16 %v1818, %v1815
    %v1855 = vpack.c.b16 %v1819, %v1816
    %v1856 = vpack.c.b16 %v1820, %v1817
    %v1857 = vpack.c.b16 %v1824, %v1821
    %v1858 = vpack.c.b16 %v1825, %v1822
    %v1859 = vpack.c.b16 %v1826, %v1823
    %v1860 = vpack.c.b16 %v1830, %v1827
    %v1861 = vpack.c.b16 %v1831, %v1828
    %v1862 = vpack.c.b16 %v1832, %v1829
    %v1863 = vpack.c.b16 %v1836, %v1833
    %v1864 = vpack.c.b16 %v1837, %v1834
    %v1865 = vpack.c.b16 %v1838, %v1835
    %v1866 = vpack.c.b16 %v1842, %v1839
    %v1867 = vpack.c.b16 %v1843, %v1840
    %v1868 = vpack.c.b16 %v1844, %v1841
    %1893 = vmatprep.subr.bf16.mxu0 %v1867
    %1894 = vmatpush1.bf16.msra.mxu0 %v1866
    %1895 = vmatprep.subr.bf16.mxu0 %v1864
    %1896 = vmatpush1.bf16.msra.mxu0 %v1863
    %1897 = vmatprep.subr.bf16.mxu0 %v1861
    %1898 = vmatpush1.bf16.msra.mxu0 %v1860
    %1899 = vmatprep.subr.bf16.mxu0 %v1858
    %1900 = vmatpush1.bf16.msra.mxu0 %v1857
    %1901 = vmatprep.subr.bf16.mxu0 %v1855
    %1902 = vmatpush1.bf16.msra.mxu0 %v1854
    %1903 = vmatprep.subr.bf16.mxu0 %v1852
    %1904 = vmatpush1.bf16.msra.mxu0 %v1851
    %1905 = vmatprep.subr.bf16.mxu0 %v1849
    %1906 = vmatpush1.bf16.msra.mxu0 %v1848
    %1907 = vmatprep.subr.bf16.mxu0 %v1846
    %1908 = vmatpush1.bf16.msra.mxu0 %v1845
    %1909 = vmatprep.subr.bf16.mxu0 0
    %1910 = vmatpush2.bf16.msra.mxu0 0
    %1911 = vmatprep.subr.bf16.mxu0 0
    %1912 = vmatpush2.bf16.msra.mxu0 0
    %1913 = vmatprep.subr.bf16.mxu0 0
    %1914 = vmatpush2.bf16.msra.mxu0 0
    %1915 = vmatprep.subr.bf16.mxu0 0
    %1916 = vmatpush2.bf16.msra.mxu0 0
    %1917 = vmatprep.subr.bf16.mxu0 0
    %1918 = vmatpush2.bf16.msra.mxu0 0
    %1919 = vmatprep.subr.bf16.mxu0 0
    %1920 = vmatpush2.bf16.msra.mxu0 0
    %1921 = vmatprep.subr.bf16.mxu0 0
    %1922 = vmatpush2.bf16.msra.mxu0 0
    %1923 = vmatprep.subr.bf16.mxu0 0
    %1924 = vmatpush2.bf16.msra.mxu0 0
    %1925 = vmatprep.mubr.bf16.mxu0 0
    %1926 = vmatmul.mubr.bf16.gmra.mxu0 %v1757
    %v1927 = vpop.f32.mrf.mxu0
    %v1928 = vadd.f32 0.0, %v1927
    %v1929 = vpop.f32.mrf.mxu0
    %v1930 = vadd.f32 0.0, %v1929
    %v1931 = vpop.f32.mrf.mxu0
    %v1932 = vadd.f32 0.0, %v1931
    %v1933 = vpop.f32.mrf.mxu0
    %v1934 = vadd.f32 0.0, %v1933
    %1935 = vmatprep.mubr.bf16.mxu0 0
    %1936 = vmatmul.mubr.bf16.gmra.mxu0 %v1758
    %v1937 = vpop.f32.mrf.mxu0
    %v1938 = vadd.f32 0.0, %v1937
    %v1939 = vpop.f32.mrf.mxu0
    %v1940 = vadd.f32 0.0, %v1939
    %v1941 = vpop.f32.mrf.mxu0
    %v1942 = vadd.f32 0.0, %v1941
    %v1943 = vpop.f32.mrf.mxu0
    %v1944 = vadd.f32 0.0, %v1943
    %1945 = vmatprep.mubr.bf16.mxu0 0
    %1946 = vmatmul.mubr.bf16.gmra.mxu0 %v1759
    %v1947 = vpop.f32.mrf.mxu0
    %v1948 = vadd.f32 0.0, %v1947
    %v1949 = vpop.f32.mrf.mxu0
    %v1950 = vadd.f32 0.0, %v1949
    %v1951 = vpop.f32.mrf.mxu0
    %v1952 = vadd.f32 0.0, %v1951
    %v1953 = vpop.f32.mrf.mxu0
    %v1954 = vadd.f32 0.0, %v1953
    %1955 = vmatprep.mubr.bf16.mxu0 0
    %1956 = vmatmul.mubr.bf16.gmra.mxu0 %v1760
    %v1957 = vpop.f32.mrf.mxu0
    %v1958 = vadd.f32 0.0, %v1957
    %v1959 = vpop.f32.mrf.mxu0
    %v1960 = vadd.f32 0.0, %v1959
    %v1961 = vpop.f32.mrf.mxu0
    %v1962 = vadd.f32 0.0, %v1961
    %v1963 = vpop.f32.mrf.mxu0
    %v1964 = vadd.f32 0.0, %v1963
    %1965 = vmatprep.mubr.bf16.mxu0 0
    %1966 = vmatmul.mubr.bf16.gmra.mxu0 %v1761
    %v1967 = vpop.f32.mrf.mxu0
    %v1968 = vadd.f32 0.0, %v1967
    %v1969 = vpop.f32.mrf.mxu0
    %v1970 = vadd.f32 0.0, %v1969
    %v1971 = vpop.f32.mrf.mxu0
    %v1972 = vadd.f32 0.0, %v1971
    %v1973 = vpop.f32.mrf.mxu0
    %v1974 = vadd.f32 0.0, %v1973
    %1975 = vmatprep.mubr.bf16.mxu0 0
    %1976 = vmatmul.mubr.bf16.gmra.mxu0 %v1762
    %v1977 = vpop.f32.mrf.mxu0
    %v1978 = vadd.f32 0.0, %v1977
    %v1979 = vpop.f32.mrf.mxu0
    %v1980 = vadd.f32 0.0, %v1979
    %v1981 = vpop.f32.mrf.mxu0
    %v1982 = vadd.f32 0.0, %v1981
    %v1983 = vpop.f32.mrf.mxu0
    %v1984 = vadd.f32 0.0, %v1983
    %1985 = vmatprep.mubr.bf16.mxu0 0
    %1986 = vmatmul.mubr.bf16.gmra.mxu0 %v1763
    %v1987 = vpop.f32.mrf.mxu0
    %v1988 = vadd.f32 0.0, %v1987
    %v1989 = vpop.f32.mrf.mxu0
    %v1990 = vadd.f32 0.0, %v1989
    %v1991 = vpop.f32.mrf.mxu0
    %v1992 = vadd.f32 0.0, %v1991
    %v1993 = vpop.f32.mrf.mxu0
    %v1994 = vadd.f32 0.0, %v1993
    %1995 = vmatprep.mubr.bf16.mxu0 0
    %1996 = vmatmul.mubr.bf16.gmra.mxu0 %v1764
    %v1997 = vpop.f32.mrf.mxu0
    %v1998 = vadd.f32 0.0, %v1997
    %v1999 = vpop.f32.mrf.mxu0
    %v2000 = vadd.f32 0.0, %v1999
    %v2001 = vpop.f32.mrf.mxu0
    %v2002 = vadd.f32 0.0, %v2001
    %v2003 = vpop.f32.mrf.mxu0
    %v2004 = vadd.f32 0.0, %v2003
    %2005 = vdwg.mxu0
    %2006 = vmatprep.subr.bf16.mxu0 0
    %2007 = vmatpush1.bf16.msra.mxu0 %v1868
    %2008 = vmatprep.subr.bf16.mxu0 0
    %2009 = vmatpush1.bf16.msra.mxu0 %v1865
    %2010 = vmatprep.subr.bf16.mxu0 0
    %2011 = vmatpush1.bf16.msra.mxu0 %v1862
    %2012 = vmatprep.subr.bf16.mxu0 0
    %2013 = vmatpush1.bf16.msra.mxu0 %v1859
    %2014 = vmatprep.subr.bf16.mxu0 0
    %2015 = vmatpush1.bf16.msra.mxu0 %v1856
    %2016 = vmatprep.subr.bf16.mxu0 0
    %2017 = vmatpush1.bf16.msra.mxu0 %v1853
    %2018 = vmatprep.subr.bf16.mxu0 0
    %2019 = vmatpush1.bf16.msra.mxu0 %v1850
    %2020 = vmatprep.subr.bf16.mxu0 0
    %2021 = vmatpush1.bf16.msra.mxu0 %v1847
    %2022 = vmatprep.subr.bf16.mxu0 0
    %2023 = vmatpush2.bf16.msra.mxu0 0
    %2024 = vmatprep.subr.bf16.mxu0 0
    %2025 = vmatpush2.bf16.msra.mxu0 0
    %2026 = vmatprep.subr.bf16.mxu0 0
    %2027 = vmatpush2.bf16.msra.mxu0 0
    %2028 = vmatprep.subr.bf16.mxu0 0
    %2029 = vmatpush2.bf16.msra.mxu0 0
    %2030 = vmatprep.subr.bf16.mxu0 0
    %2031 = vmatpush2.bf16.msra.mxu0 0
    %2032 = vmatprep.subr.bf16.mxu0 0
    %2033 = vmatpush2.bf16.msra.mxu0 0
    %2034 = vmatprep.subr.bf16.mxu0 0
    %2035 = vmatpush2.bf16.msra.mxu0 0
    %2036 = vmatprep.subr.bf16.mxu0 0
    %2037 = vmatpush2.bf16.msra.mxu0 0
    %2038 = vmatprep.mubr.bf16.mxu0 0
    %2039 = vmatmul.mubr.bf16.gmra.mxu0 %v1757
    %v2040 = vpop.f32.mrf.mxu0
    %v2041 = vadd.f32 0.0, %v2040
    %v2042 = vpop.f32.mrf.mxu0
    %v2043 = vpop.f32.mrf.mxu0
    %v2044 = vadd.f32 0.0, %v2043
    %v2045 = vpop.f32.mrf.mxu0
    %2046 = vmatprep.mubr.bf16.mxu0 0
    %2047 = vmatmul.mubr.bf16.gmra.mxu0 %v1758
    %v2048 = vpop.f32.mrf.mxu0
    %v2049 = vadd.f32 0.0, %v2048
    %v2050 = vpop.f32.mrf.mxu0
    %v2051 = vpop.f32.mrf.mxu0
    %v2052 = vadd.f32 0.0, %v2051
    %v2053 = vpop.f32.mrf.mxu0
    %2054 = vmatprep.mubr.bf16.mxu0 0
    %2055 = vmatmul.mubr.bf16.gmra.mxu0 %v1759
    %v2056 = vpop.f32.mrf.mxu0
    %v2057 = vadd.f32 0.0, %v2056
    %v2058 = vpop.f32.mrf.mxu0
    %v2059 = vpop.f32.mrf.mxu0
    %v2060 = vadd.f32 0.0, %v2059
    %v2061 = vpop.f32.mrf.mxu0
    %2062 = vmatprep.mubr.bf16.mxu0 0
    %2063 = vmatmul.mubr.bf16.gmra.mxu0 %v1760
    %v2064 = vpop.f32.mrf.mxu0
    %v2065 = vadd.f32 0.0, %v2064
    %v2066 = vpop.f32.mrf.mxu0
    %v2067 = vpop.f32.mrf.mxu0
    %v2068 = vadd.f32 0.0, %v2067
    %v2069 = vpop.f32.mrf.mxu0
    %2070 = vmatprep.mubr.bf16.mxu0 0
    %2071 = vmatmul.mubr.bf16.gmra.mxu0 %v1761
    %v2072 = vpop.f32.mrf.mxu0
    %v2073 = vadd.f32 0.0, %v2072
    %v2074 = vpop.f32.mrf.mxu0
    %v2075 = vpop.f32.mrf.mxu0
    %v2076 = vadd.f32 0.0, %v2075
    %v2077 = vpop.f32.mrf.mxu0
    %2078 = vmatprep.mubr.bf16.mxu0 0
    %2079 = vmatmul.mubr.bf16.gmra.mxu0 %v1762
    %v2080 = vpop.f32.mrf.mxu0
    %v2081 = vadd.f32 0.0, %v2080
    %v2082 = vpop.f32.mrf.mxu0
    %v2083 = vpop.f32.mrf.mxu0
    %v2084 = vadd.f32 0.0, %v2083
    %v2085 = vpop.f32.mrf.mxu0
    %2086 = vmatprep.mubr.bf16.mxu0 0
    %2087 = vmatmul.mubr.bf16.gmra.mxu0 %v1763
    %v2088 = vpop.f32.mrf.mxu0
    %v2089 = vadd.f32 0.0, %v2088
    %v2090 = vpop.f32.mrf.mxu0
    %v2091 = vpop.f32.mrf.mxu0
    %v2092 = vadd.f32 0.0, %v2091
    %v2093 = vpop.f32.mrf.mxu0
    %2094 = vmatprep.mubr.bf16.mxu0 0
    %2095 = vmatmul.mubr.bf16.gmra.mxu0 %v1764
    %v2096 = vpop.f32.mrf.mxu0
    %v2097 = vadd.f32 0.0, %v2096
    %v2098 = vpop.f32.mrf.mxu0
    %v2099 = vpop.f32.mrf.mxu0
    %v2100 = vadd.f32 0.0, %v2099
    %v2101 = vpop.f32.mrf.mxu0
    %2102 = vdwg.mxu0
    %v2103 = vpack.c.bf16 %v1932, %v1928
    %v2104 = vpack.c.bf16 %v1934, %v1930
    %v2105 = vpack.c.bf16 %v2044, %v2041
    %v2106 = vpack.c.bf16 %v1942, %v1938
    %v2107 = vpack.c.bf16 %v1944, %v1940
    %v2108 = vpack.c.bf16 %v2052, %v2049
    %v2109 = vpack.c.bf16 %v1952, %v1948
    %v2110 = vpack.c.bf16 %v1954, %v1950
    %v2111 = vpack.c.bf16 %v2060, %v2057
    %v2112 = vpack.c.bf16 %v1962, %v1958
    %v2113 = vpack.c.bf16 %v1964, %v1960
    %v2114 = vpack.c.bf16 %v2068, %v2065
    %v2115 = vpack.c.bf16 %v1972, %v1968
    %v2116 = vpack.c.bf16 %v1974, %v1970
    %v2117 = vpack.c.bf16 %v2076, %v2073
    %v2118 = vpack.c.bf16 %v1982, %v1978
    %v2119 = vpack.c.bf16 %v1984, %v1980
    %v2120 = vpack.c.bf16 %v2084, %v2081
    %v2121 = vpack.c.bf16 %v1992, %v1988
    %v2122 = vpack.c.bf16 %v1994, %v1990
    %v2123 = vpack.c.bf16 %v2092, %v2089
    %v2124 = vpack.c.bf16 %v2002, %v1998
    %v2125 = vpack.c.bf16 %v2004, %v2000
    %v2126 = vpack.c.bf16 %v2100, %v2097
    %2127 = vmatprep.subr.bf16.mxu0 0
    %2128 = vmatpush1.bf16.xpose.msra.mxu0 0
    %2129 = vmatprep.subr.bf16.mxu0 0
    %2130 = vmatpush1.bf16.xpose.msra.mxu0 0
    %2131 = vmatprep.subr.bf16.mxu0 0
    %2132 = vmatpush1.bf16.xpose.msra.mxu0 0
    %2133 = vmatprep.subr.bf16.mxu0 0
    %2134 = vmatpush1.bf16.xpose.msra.mxu0 0
    %2135 = vmatprep.subr.bf16.mxu0 0
    %2136 = vmatpush1.bf16.xpose.msra.mxu0 %v2113
    %2137 = vmatprep.subr.bf16.mxu0 0
    %2138 = vmatpush1.bf16.xpose.msra.mxu0 %v2110
    %2139 = vmatprep.subr.bf16.mxu0 0
    %2140 = vmatpush1.bf16.xpose.msra.mxu0 %v2107
    %2141 = vmatprep.subr.bf16.mxu0 0
    %2142 = vmatpush1.bf16.xpose.msra.mxu0 %v2104
    %2143 = vmatprep.subr.bf16.mxu0 0
    %2144 = vmatpush2.bf16.xpose.msra.mxu0 0
    %2145 = vmatprep.subr.bf16.mxu0 0
    %2146 = vmatpush2.bf16.xpose.msra.mxu0 0
    %2147 = vmatprep.subr.bf16.mxu0 0
    %2148 = vmatpush2.bf16.xpose.msra.mxu0 0
    %2149 = vmatprep.subr.bf16.mxu0 0
    %2150 = vmatpush2.bf16.xpose.msra.mxu0 0
    %2151 = vmatprep.subr.bf16.mxu0 0
    %2152 = vmatpush2.bf16.xpose.msra.mxu0 0
    %2153 = vmatprep.subr.bf16.mxu0 0
    %2154 = vmatpush2.bf16.xpose.msra.mxu0 0
    %2155 = vmatprep.subr.bf16.mxu0 0
    %2156 = vmatpush2.bf16.xpose.msra.mxu0 0
    %2157 = vmatprep.subr.bf16.mxu0 0
    %2158 = vmatpush2.bf16.xpose.msra.mxu0 0
    %2159 = vmatprep.mubr.bf16.mxu0 0
    %2160 = vmatmul.mubr.bf16.gmra.mxu0 %v2103
    %v2161 = vpop.f32.mrf.mxu0
    %v2162 = vadd.f32 0.0, %v2161
    %v2163 = vpop.f32.mrf.mxu0
    %v2164 = vpop.f32.mrf.mxu0
    %v2165 = vadd.f32 0.0, %v2164
    %v2166 = vpop.f32.mrf.mxu0
    %2167 = vmatprep.mubr.bf16.mxu0 0
    %2168 = vmatmul.mubr.bf16.gmra.mxu0 %v2106
    %v2169 = vpop.f32.mrf.mxu0
    %v2170 = vadd.f32 0.0, %v2169
    %v2171 = vpop.f32.mrf.mxu0
    %v2172 = vpop.f32.mrf.mxu0
    %v2173 = vadd.f32 0.0, %v2172
    %v2174 = vpop.f32.mrf.mxu0
    %2175 = vmatprep.mubr.bf16.mxu0 0
    %2176 = vmatmul.mubr.bf16.gmra.mxu0 %v2109
    %v2177 = vpop.f32.mrf.mxu0
    %v2178 = vadd.f32 0.0, %v2177
    %v2179 = vpop.f32.mrf.mxu0
    %v2180 = vpop.f32.mrf.mxu0
    %v2181 = vadd.f32 0.0, %v2180
    %v2182 = vpop.f32.mrf.mxu0
    %2183 = vmatprep.mubr.bf16.mxu0 0
    %2184 = vmatmul.mubr.bf16.gmra.mxu0 %v2112
    %v2185 = vpop.f32.mrf.mxu0
    %v2186 = vadd.f32 0.0, %v2185
    %v2187 = vpop.f32.mrf.mxu0
    %v2188 = vpop.f32.mrf.mxu0
    %v2189 = vadd.f32 0.0, %v2188
    %v2190 = vpop.f32.mrf.mxu0
    %2191 = vdwg.mxu0
    %2192 = vmatprep.subr.bf16.mxu0 0
    %2193 = vmatpush1.bf16.xpose.msra.mxu0 0
    %2194 = vmatprep.subr.bf16.mxu0 0
    %2195 = vmatpush1.bf16.xpose.msra.mxu0 0
    %2196 = vmatprep.subr.bf16.mxu0 0
    %2197 = vmatpush1.bf16.xpose.msra.mxu0 0
    %2198 = vmatprep.subr.bf16.mxu0 0
    %2199 = vmatpush1.bf16.xpose.msra.mxu0 0
    %2200 = vmatprep.subr.bf16.mxu0 0
    %2201 = vmatpush1.bf16.xpose.msra.mxu0 %v2125
    %2202 = vmatprep.subr.bf16.mxu0 0
    %2203 = vmatpush1.bf16.xpose.msra.mxu0 %v2122
    %2204 = vmatprep.subr.bf16.mxu0 0
    %2205 = vmatpush1.bf16.xpose.msra.mxu0 %v2119
    %2206 = vmatprep.subr.bf16.mxu0 0
    %2207 = vmatpush1.bf16.xpose.msra.mxu0 %v2116
    %2208 = vmatprep.subr.bf16.mxu0 0
    %2209 = vmatpush2.bf16.xpose.msra.mxu0 0
    %2210 = vmatprep.subr.bf16.mxu0 0
    %2211 = vmatpush2.bf16.xpose.msra.mxu0 0
    %2212 = vmatprep.subr.bf16.mxu0 0
    %2213 = vmatpush2.bf16.xpose.msra.mxu0 0
    %2214 = vmatprep.subr.bf16.mxu0 0
    %2215 = vmatpush2.bf16.xpose.msra.mxu0 0
    %2216 = vmatprep.subr.bf16.mxu0 0
    %2217 = vmatpush2.bf16.xpose.msra.mxu0 0
    %2218 = vmatprep.subr.bf16.mxu0 0
    %2219 = vmatpush2.bf16.xpose.msra.mxu0 0
    %2220 = vmatprep.subr.bf16.mxu0 0
    %2221 = vmatpush2.bf16.xpose.msra.mxu0 0
    %2222 = vmatprep.subr.bf16.mxu0 0
    %2223 = vmatpush2.bf16.xpose.msra.mxu0 0
    %2224 = vmatprep.mubr.bf16.mxu0 0
    %2225 = vmatmul.mubr.bf16.gmra.mxu0 %v2115
    %v2226 = vpop.f32.mrf.mxu0
    %v2227 = vadd.f32 0.0, %v2226
    %v2228 = vpop.f32.mrf.mxu0
    %v2229 = vpop.f32.mrf.mxu0
    %v2230 = vadd.f32 0.0, %v2229
    %v2231 = vpop.f32.mrf.mxu0
    %2232 = vmatprep.mubr.bf16.mxu0 0
    %2233 = vmatmul.mubr.bf16.gmra.mxu0 %v2118
    %v2234 = vpop.f32.mrf.mxu0
    %v2235 = vadd.f32 0.0, %v2234
    %v2236 = vpop.f32.mrf.mxu0
    %v2237 = vpop.f32.mrf.mxu0
    %v2238 = vadd.f32 0.0, %v2237
    %v2239 = vpop.f32.mrf.mxu0
    %2240 = vmatprep.mubr.bf16.mxu0 0
    %2241 = vmatmul.mubr.bf16.gmra.mxu0 %v2121
    %v2242 = vpop.f32.mrf.mxu0
    %v2243 = vadd.f32 0.0, %v2242
    %v2244 = vpop.f32.mrf.mxu0
    %v2245 = vpop.f32.mrf.mxu0
    %v2246 = vadd.f32 0.0, %v2245
    %v2247 = vpop.f32.mrf.mxu0
    %2248 = vmatprep.mubr.bf16.mxu0 0
    %2249 = vmatmul.mubr.bf16.gmra.mxu0 %v2124
    %v2250 = vpop.f32.mrf.mxu0
    %v2251 = vadd.f32 0.0, %v2250
    %v2252 = vpop.f32.mrf.mxu0
    %v2253 = vpop.f32.mrf.mxu0
    %v2254 = vadd.f32 0.0, %v2253
    %v2255 = vpop.f32.mrf.mxu0
    %2256 = vdwg.mxu0
    %vm2257 = vcmp.lt.s32.totalorder %v607, 56
    %v2258 = vsel %vm2257, 1, 0
    %vm2259 = vcmp.eq.s32.totalorder %v2258, 1
    %v2260 = vsel %vm2259, %v2162, -1e+30
    %v2261 = vsel %vm2259, %v2165, -1e+30
    %v2262 = vsel %vm2259, %v2170, -1e+30
    %v2263 = vsel %vm2259, %v2173, -1e+30
    %v2264 = vsel %vm2259, %v2178, -1e+30
    %v2265 = vsel %vm2259, %v2181, -1e+30
    %v2266 = vsel %vm2259, %v2186, -1e+30
    %v2267 = vsel %vm2259, %v2189, -1e+30
    %v2268 = vsel %vm2259, %v2227, -1e+30
    %v2269 = vsel %vm2259, %v2230, -1e+30
    %v2270 = vsel %vm2259, %v2235, -1e+30
    %v2271 = vsel %vm2259, %v2238, -1e+30
    %v2272 = vsel %vm2259, %v2243, -1e+30
    %v2273 = vsel %vm2259, %v2246, -1e+30
    %v2274 = vsel %vm2259, %v2251, -1e+30
    %v2275 = vsel %vm2259, %v2254, -1e+30
    %vm2276 = vcmask 523264
    %v2277 = vsel %vm2276, %v2260, -inf
    %2278 = vmax.xlane.f32.xlu0 %v2277
    %v2279 = vpop.xlane.xlu0 %2278
    %v2280 = vsel %vm2276, %v2261, -inf
    %2281 = vmax.xlane.f32.xlu0 %v2280
    %v2282 = vpop.xlane.xlu0 %2281
    %v2283 = vsel %vm2276, %v2262, -inf
    %2284 = vmax.xlane.f32.xlu0 %v2283
    %v2285 = vpop.xlane.xlu0 %2284
    %v2286 = vsel %vm2276, %v2263, -inf
    %2287 = vmax.xlane.f32.xlu0 %v2286
    %v2288 = vpop.xlane.xlu0 %2287
    %v2289 = vsel %vm2276, %v2264, -inf
    %2290 = vmax.xlane.f32.xlu0 %v2289
    %v2291 = vpop.xlane.xlu0 %2290
    %v2292 = vsel %vm2276, %v2265, -inf
    %2293 = vmax.xlane.f32.xlu0 %v2292
    %v2294 = vpop.xlane.xlu0 %2293
    %v2295 = vsel %vm2276, %v2266, -inf
    %2296 = vmax.xlane.f32.xlu0 %v2295
    %v2297 = vpop.xlane.xlu0 %2296
    %v2298 = vsel %vm2276, %v2267, -inf
    %2299 = vmax.xlane.f32.xlu0 %v2298
    %v2300 = vpop.xlane.xlu0 %2299
    %v2301 = vsel %vm2276, %v2268, -inf
    %2302 = vmax.xlane.f32.xlu0 %v2301
    %v2303 = vpop.xlane.xlu0 %2302
    %v2304 = vsel %vm2276, %v2269, -inf
    %2305 = vmax.xlane.f32.xlu0 %v2304
    %v2306 = vpop.xlane.xlu0 %2305
    %v2307 = vsel %vm2276, %v2270, -inf
    %2308 = vmax.xlane.f32.xlu0 %v2307
    %v2309 = vpop.xlane.xlu0 %2308
    %v2310 = vsel %vm2276, %v2271, -inf
    %2311 = vmax.xlane.f32.xlu0 %v2310
    %v2312 = vpop.xlane.xlu0 %2311
    %v2313 = vsel %vm2276, %v2272, -inf
    %2314 = vmax.xlane.f32.xlu0 %v2313
    %v2315 = vpop.xlane.xlu0 %2314
    %v2316 = vsel %vm2276, %v2273, -inf
    %2317 = vmax.xlane.f32.xlu0 %v2316
    %v2318 = vpop.xlane.xlu0 %2317
    %v2319 = vsel %vm2276, %v2274, -inf
    %2320 = vmax.xlane.f32.xlu0 %v2319
    %v2321 = vpop.xlane.xlu0 %2320
    %v2322 = vsel %vm2276, %v2275, -inf
    %2323 = vmax.xlane.f32.xlu0 %v2322
    %v2324 = vpop.xlane.xlu0 %2323
    %v2325 = vsub.f32 %v2260, %v2279
    %v2326 = vsub.f32 %v2261, %v2282
    %v2327 = vsub.f32 %v2262, %v2285
    %v2328 = vsub.f32 %v2263, %v2288
    %v2329 = vsub.f32 %v2264, %v2291
    %v2330 = vsub.f32 %v2265, %v2294
    %v2331 = vsub.f32 %v2266, %v2297
    %v2332 = vsub.f32 %v2267, %v2300
    %v2333 = vsub.f32 %v2268, %v2303
    %v2334 = vsub.f32 %v2269, %v2306
    %v2335 = vsub.f32 %v2270, %v2309
    %v2336 = vsub.f32 %v2271, %v2312
    %v2337 = vsub.f32 %v2272, %v2315
    %v2338 = vsub.f32 %v2273, %v2318
    %v2339 = vsub.f32 %v2274, %v2321
    %v2340 = vsub.f32 %v2275, %v2324
    %v2341 = vmul.f32 %v2325, 1.442695
    %v2342 = vpow.pop %v2341
    %v2343 = vmul.f32 %v2326, 1.442695
    %v2344 = vpow.pop %v2343
    %v2345 = vmul.f32 %v2327, 1.442695
    %v2346 = vpow.pop %v2345
    %v2347 = vmul.f32 %v2328, 1.442695
    %v2348 = vpow.pop %v2347
    %v2349 = vmul.f32 %v2329, 1.442695
    %v2350 = vpow.pop %v2349
    %v2351 = vmul.f32 %v2330, 1.442695
    %v2352 = vpow.pop %v2351
    %v2353 = vmul.f32 %v2331, 1.442695
    %v2354 = vpow.pop %v2353
    %v2355 = vmul.f32 %v2332, 1.442695
    %v2356 = vpow.pop %v2355
    %v2357 = vmul.f32 %v2333, 1.442695
    %v2358 = vpow.pop %v2357
    %v2359 = vmul.f32 %v2334, 1.442695
    %v2360 = vpow.pop %v2359
    %v2361 = vmul.f32 %v2335, 1.442695
    %v2362 = vpow.pop %v2361
    %v2363 = vmul.f32 %v2336, 1.442695
    %v2364 = vpow.pop %v2363
    %v2365 = vmul.f32 %v2337, 1.442695
    %v2366 = vpow.pop %v2365
    %v2367 = vmul.f32 %v2338, 1.442695
    %v2368 = vpow.pop %v2367
    %v2369 = vmul.f32 %v2339, 1.442695
    %v2370 = vpow.pop %v2369
    %v2371 = vmul.f32 %v2340, 1.442695
    %v2372 = vpow.pop %v2371
    %v2373 = vsel %vm2276, %v2342, 0.0
    %2374 = vadd.xlane.f32.xlu0 %v2373
    %v2375 = vpop.xlane.xlu0 %2374
    %v2376 = vsel %vm2276, %v2344, 0.0
    %2377 = vadd.xlane.f32.xlu0 %v2376
    %v2378 = vpop.xlane.xlu0 %2377
    %v2379 = vsel %vm2276, %v2346, 0.0
    %2380 = vadd.xlane.f32.xlu0 %v2379
    %v2381 = vpop.xlane.xlu0 %2380
    %v2382 = vsel %vm2276, %v2348, 0.0
    %2383 = vadd.xlane.f32.xlu0 %v2382
    %v2384 = vpop.xlane.xlu0 %2383
    %v2385 = vsel %vm2276, %v2350, 0.0
    %2386 = vadd.xlane.f32.xlu0 %v2385
    %v2387 = vpop.xlane.xlu0 %2386
    %v2388 = vsel %vm2276, %v2352, 0.0
    %2389 = vadd.xlane.f32.xlu0 %v2388
    %v2390 = vpop.xlane.xlu0 %2389
    %v2391 = vsel %vm2276, %v2354, 0.0
    %2392 = vadd.xlane.f32.xlu0 %v2391
    %v2393 = vpop.xlane.xlu0 %2392
    %v2394 = vsel %vm2276, %v2356, 0.0
    %2395 = vadd.xlane.f32.xlu0 %v2394
    %v2396 = vpop.xlane.xlu0 %2395
    %v2397 = vsel %vm2276, %v2358, 0.0
    %2398 = vadd.xlane.f32.xlu0 %v2397
    %v2399 = vpop.xlane.xlu0 %2398
    %v2400 = vsel %vm2276, %v2360, 0.0
    %2401 = vadd.xlane.f32.xlu0 %v2400
    %v2402 = vpop.xlane.xlu0 %2401
    %v2403 = vsel %vm2276, %v2362, 0.0
    %2404 = vadd.xlane.f32.xlu0 %v2403
    %v2405 = vpop.xlane.xlu0 %2404
    %v2406 = vsel %vm2276, %v2364, 0.0
    %2407 = vadd.xlane.f32.xlu0 %v2406
    %v2408 = vpop.xlane.xlu0 %2407
    %v2409 = vsel %vm2276, %v2366, 0.0
    %2410 = vadd.xlane.f32.xlu0 %v2409
    %v2411 = vpop.xlane.xlu0 %2410
    %v2412 = vsel %vm2276, %v2368, 0.0
    %2413 = vadd.xlane.f32.xlu0 %v2412
    %v2414 = vpop.xlane.xlu0 %2413
    %v2415 = vsel %vm2276, %v2370, 0.0
    %2416 = vadd.xlane.f32.xlu0 %v2415
    %v2417 = vpop.xlane.xlu0 %2416
    %v2418 = vsel %vm2276, %v2372, 0.0
    %2419 = vadd.xlane.f32.xlu0 %v2418
    %v2420 = vpop.xlane.xlu0 %2419
    %v2421 = vrcp.pop %v2375
    %v2422 = vrcp.pop %v2378
    %v2423 = vrcp.pop %v2381
    %v2424 = vrcp.pop %v2384
    %v2425 = vrcp.pop %v2387
    %v2426 = vrcp.pop %v2390
    %v2427 = vrcp.pop %v2393
    %v2428 = vrcp.pop %v2396
    %v2429 = vrcp.pop %v2399
    %v2430 = vrcp.pop %v2402
    %v2431 = vrcp.pop %v2405
    %v2432 = vrcp.pop %v2408
    %v2433 = vrcp.pop %v2411
    %v2434 = vrcp.pop %v2414
    %v2435 = vrcp.pop %v2417
    %v2436 = vrcp.pop %v2420
    %v2437 = vmul.f32 %v2342, %v2421
    %v2438 = vmul.f32 %v2344, %v2422
    %v2439 = vmul.f32 %v2346, %v2423
    %v2440 = vmul.f32 %v2348, %v2424
    %v2441 = vmul.f32 %v2350, %v2425
    %v2442 = vmul.f32 %v2352, %v2426
    %v2443 = vmul.f32 %v2354, %v2427
    %v2444 = vmul.f32 %v2356, %v2428
    %v2445 = vmul.f32 %v2358, %v2429
    %v2446 = vmul.f32 %v2360, %v2430
    %v2447 = vmul.f32 %v2362, %v2431
    %v2448 = vmul.f32 %v2364, %v2432
    %v2449 = vmul.f32 %v2366, %v2433
    %v2450 = vmul.f32 %v2368, %v2434
    %v2451 = vmul.f32 %v2370, %v2435
    %v2452 = vmul.f32 %v2372, %v2436
    %v2453 = vpack.c.bf16 %v2438, %v2437
    %v2454 = vpack.c.bf16 %v2440, %v2439
    %v2455 = vpack.c.bf16 %v2442, %v2441
    %v2456 = vpack.c.bf16 %v2444, %v2443
    %v2457 = vpack.c.bf16 %v2446, %v2445
    %v2458 = vpack.c.bf16 %v2448, %v2447
    %v2459 = vpack.c.bf16 %v2450, %v2449
    %v2460 = vpack.c.bf16 %v2452, %v2451
    %v2462 = vsel %vm2276, %v2453, 0
    %v2465 = vsel %vm2276, %v2454, 0
    %v2468 = vsel %vm2276, %v2455, 0
    %v2471 = vsel %vm2276, %v2456, 0
    %2473 = vmatprep.subr.bf16.mxu0 0
    %2474 = vmatpush1.bf16.msra.mxu0 0
    %2475 = vmatprep.subr.bf16.mxu0 0
    %2476 = vmatpush1.bf16.msra.mxu0 0
    %2477 = vmatprep.subr.bf16.mxu0 0
    %2478 = vmatpush1.bf16.msra.mxu0 0
    %2479 = vmatprep.subr.bf16.mxu0 0
    %2480 = vmatpush1.bf16.msra.mxu0 0
    %2481 = vmatprep.subr.bf16.mxu0 0
    %2482 = vmatpush1.bf16.msra.mxu0 %v2114
    %2483 = vmatprep.subr.bf16.mxu0 0
    %2484 = vmatpush1.bf16.msra.mxu0 %v2111
    %2485 = vmatprep.subr.bf16.mxu0 0
    %2486 = vmatpush1.bf16.msra.mxu0 %v2108
    %2487 = vmatprep.subr.bf16.mxu0 0
    %2488 = vmatpush1.bf16.msra.mxu0 %v2105
    %2489 = vmatprep.subr.bf16.mxu0 0
    %2490 = vmatpush2.bf16.msra.mxu0 0
    %2491 = vmatprep.subr.bf16.mxu0 0
    %2492 = vmatpush2.bf16.msra.mxu0 0
    %2493 = vmatprep.subr.bf16.mxu0 0
    %2494 = vmatpush2.bf16.msra.mxu0 0
    %2495 = vmatprep.subr.bf16.mxu0 0
    %2496 = vmatpush2.bf16.msra.mxu0 0
    %2497 = vmatprep.subr.bf16.mxu0 0
    %2498 = vmatpush2.bf16.msra.mxu0 0
    %2499 = vmatprep.subr.bf16.mxu0 0
    %2500 = vmatpush2.bf16.msra.mxu0 0
    %2501 = vmatprep.subr.bf16.mxu0 0
    %2502 = vmatpush2.bf16.msra.mxu0 0
    %2503 = vmatprep.subr.bf16.mxu0 0
    %2504 = vmatpush2.bf16.msra.mxu0 0
    %2505 = vmatprep.mubr.bf16.mxu0 0
    %2506 = vmatmul.mubr.bf16.gmra.mxu0 %v2462
    %v2507 = vpop.f32.mrf.mxu0
    %v2508 = vadd.f32 0.0, %v2507
    %v2509 = vpop.f32.mrf.mxu0
    %v2510 = vpop.f32.mrf.mxu0
    %v2511 = vadd.f32 0.0, %v2510
    %v2512 = vpop.f32.mrf.mxu0
    %2513 = vmatprep.mubr.bf16.mxu0 0
    %2514 = vmatmul.mubr.bf16.gmra.mxu0 %v2465
    %v2515 = vpop.f32.mrf.mxu0
    %v2516 = vadd.f32 0.0, %v2515
    %v2517 = vpop.f32.mrf.mxu0
    %v2518 = vpop.f32.mrf.mxu0
    %v2519 = vadd.f32 0.0, %v2518
    %v2520 = vpop.f32.mrf.mxu0
    %2521 = vmatprep.mubr.bf16.mxu0 0
    %2522 = vmatmul.mubr.bf16.gmra.mxu0 %v2468
    %v2523 = vpop.f32.mrf.mxu0
    %v2524 = vadd.f32 0.0, %v2523
    %v2525 = vpop.f32.mrf.mxu0
    %v2526 = vpop.f32.mrf.mxu0
    %v2527 = vadd.f32 0.0, %v2526
    %v2528 = vpop.f32.mrf.mxu0
    %2529 = vmatprep.mubr.bf16.mxu0 0
    %2530 = vmatmul.mubr.bf16.gmra.mxu0 %v2471
    %v2531 = vpop.f32.mrf.mxu0
    %v2532 = vadd.f32 0.0, %v2531
    %v2533 = vpop.f32.mrf.mxu0
    %v2534 = vpop.f32.mrf.mxu0
    %v2535 = vadd.f32 0.0, %v2534
    %v2536 = vpop.f32.mrf.mxu0
    %2537 = vdwg.mxu0
    %v2539 = vsel %vm2276, %v2457, 0
    %v2542 = vsel %vm2276, %v2458, 0
    %v2545 = vsel %vm2276, %v2459, 0
    %v2548 = vsel %vm2276, %v2460, 0
    %2550 = vmatprep.subr.bf16.mxu0 0
    %2551 = vmatpush1.bf16.msra.mxu0 0
    %2552 = vmatprep.subr.bf16.mxu0 0
    %2553 = vmatpush1.bf16.msra.mxu0 0
    %2554 = vmatprep.subr.bf16.mxu0 0
    %2555 = vmatpush1.bf16.msra.mxu0 0
    %2556 = vmatprep.subr.bf16.mxu0 0
    %2557 = vmatpush1.bf16.msra.mxu0 0
    %2558 = vmatprep.subr.bf16.mxu0 0
    %2559 = vmatpush1.bf16.msra.mxu0 %v2126
    %2560 = vmatprep.subr.bf16.mxu0 0
    %2561 = vmatpush1.bf16.msra.mxu0 %v2123
    %2562 = vmatprep.subr.bf16.mxu0 0
    %2563 = vmatpush1.bf16.msra.mxu0 %v2120
    %2564 = vmatprep.subr.bf16.mxu0 0
    %2565 = vmatpush1.bf16.msra.mxu0 %v2117
    %2566 = vmatprep.subr.bf16.mxu0 0
    %2567 = vmatpush2.bf16.msra.mxu0 0
    %2568 = vmatprep.subr.bf16.mxu0 0
    %2569 = vmatpush2.bf16.msra.mxu0 0
    %2570 = vmatprep.subr.bf16.mxu0 0
    %2571 = vmatpush2.bf16.msra.mxu0 0
    %2572 = vmatprep.subr.bf16.mxu0 0
    %2573 = vmatpush2.bf16.msra.mxu0 0
    %2574 = vmatprep.subr.bf16.mxu0 0
    %2575 = vmatpush2.bf16.msra.mxu0 0
    %2576 = vmatprep.subr.bf16.mxu0 0
    %2577 = vmatpush2.bf16.msra.mxu0 0
    %2578 = vmatprep.subr.bf16.mxu0 0
    %2579 = vmatpush2.bf16.msra.mxu0 0
    %2580 = vmatprep.subr.bf16.mxu0 0
    %2581 = vmatpush2.bf16.msra.mxu0 0
    %2582 = vmatprep.mubr.bf16.mxu0 0
    %2583 = vmatmul.mubr.bf16.gmra.mxu0 %v2539
    %v2584 = vpop.f32.mrf.mxu0
    %v2585 = vadd.f32 0.0, %v2584
    %v2586 = vpop.f32.mrf.mxu0
    %v2587 = vpop.f32.mrf.mxu0
    %v2588 = vadd.f32 0.0, %v2587
    %v2589 = vpop.f32.mrf.mxu0
    %2590 = vmatprep.mubr.bf16.mxu0 0
    %2591 = vmatmul.mubr.bf16.gmra.mxu0 %v2542
    %v2592 = vpop.f32.mrf.mxu0
    %v2593 = vadd.f32 0.0, %v2592
    %v2594 = vpop.f32.mrf.mxu0
    %v2595 = vpop.f32.mrf.mxu0
    %v2596 = vadd.f32 0.0, %v2595
    %v2597 = vpop.f32.mrf.mxu0
    %2598 = vmatprep.mubr.bf16.mxu0 0
    %2599 = vmatmul.mubr.bf16.gmra.mxu0 %v2545
    %v2600 = vpop.f32.mrf.mxu0
    %v2601 = vadd.f32 0.0, %v2600
    %v2602 = vpop.f32.mrf.mxu0
    %v2603 = vpop.f32.mrf.mxu0
    %v2604 = vadd.f32 0.0, %v2603
    %v2605 = vpop.f32.mrf.mxu0
    %2606 = vmatprep.mubr.bf16.mxu0 0
    %2607 = vmatmul.mubr.bf16.gmra.mxu0 %v2548
    %v2608 = vpop.f32.mrf.mxu0
    %v2609 = vadd.f32 0.0, %v2608
    %v2610 = vpop.f32.mrf.mxu0
    %v2611 = vpop.f32.mrf.mxu0
    %v2612 = vadd.f32 0.0, %v2611
    %v2613 = vpop.f32.mrf.mxu0
    %2614 = vdwg.mxu0
    %v2615 = vpack.c.bf16 %v2511, %v2508
    %v2616 = vpack.c.bf16 %v2519, %v2516
    %v2617 = vpack.c.bf16 %v2527, %v2524
    %v2618 = vpack.c.bf16 %v2535, %v2532
    %v2619 = vpack.c.bf16 %v2588, %v2585
    %v2620 = vpack.c.bf16 %v2596, %v2593
    %v2621 = vpack.c.bf16 %v2604, %v2601
    %v2622 = vpack.c.bf16 %v2612, %v2609
    %v2639 = vunpack.c.l.b16 %v1557
    %v2640 = vunpack.c.l.b16 %v1558
    %v2641 = vunpack.c.l.b16 %v1559
    %v2642 = vunpack.c.l.b16 %v1560
    %v2643 = vunpack.c.l.b16 %v1561
    %v2644 = vunpack.c.l.b16 %v1562
    %v2645 = vunpack.c.l.b16 %v1563
    %v2646 = vunpack.c.l.b16 %v1564
    %v2647 = vunpack.c.l.b16 %v1565
    %v2648 = vunpack.c.l.b16 %v1566
    %v2649 = vunpack.c.l.b16 %v1567
    %v2650 = vunpack.c.l.b16 %v1568
    %v2651 = vunpack.c.l.b16 %v1569
    %v2652 = vunpack.c.l.b16 %v1570
    %v2653 = vunpack.c.l.b16 %v1571
    %v2654 = vunpack.c.l.b16 %v1572
    %v2655 = vpack.c.b16 %v2640, %v2639
    %v2656 = vpack.c.b16 %v2642, %v2641
    %v2657 = vpack.c.b16 %v2644, %v2643
    %v2658 = vpack.c.b16 %v2646, %v2645
    %v2659 = vpack.c.b16 %v2648, %v2647
    %v2660 = vpack.c.b16 %v2650, %v2649
    %v2661 = vpack.c.b16 %v2652, %v2651
    %v2662 = vpack.c.b16 %v2654, %v2653
    %2671 = vmatprep.subr.bf16.mxu0 0
    %2672 = vmatpush1.bf16.msra.mxu0 %v2662
    %2673 = vmatprep.subr.bf16.mxu0 0
    %2674 = vmatpush1.bf16.msra.mxu0 %v2661
    %2675 = vmatprep.subr.bf16.mxu0 0
    %2676 = vmatpush1.bf16.msra.mxu0 %v2660
    %2677 = vmatprep.subr.bf16.mxu0 0
    %2678 = vmatpush1.bf16.msra.mxu0 %v2659
    %2679 = vmatprep.subr.bf16.mxu0 0
    %2680 = vmatpush1.bf16.msra.mxu0 %v2658
    %2681 = vmatprep.subr.bf16.mxu0 0
    %2682 = vmatpush1.bf16.msra.mxu0 %v2657
    %2683 = vmatprep.subr.bf16.mxu0 0
    %2684 = vmatpush1.bf16.msra.mxu0 %v2656
    %2685 = vmatprep.subr.bf16.mxu0 0
    %2686 = vmatpush1.bf16.msra.mxu0 %v2655
    %2687 = vmatprep.subr.bf16.mxu0 0
    %2688 = vmatpush2.bf16.msra.mxu0 0
    %2689 = vmatprep.subr.bf16.mxu0 0
    %2690 = vmatpush2.bf16.msra.mxu0 0
    %2691 = vmatprep.subr.bf16.mxu0 0
    %2692 = vmatpush2.bf16.msra.mxu0 0
    %2693 = vmatprep.subr.bf16.mxu0 0
    %2694 = vmatpush2.bf16.msra.mxu0 0
    %2695 = vmatprep.subr.bf16.mxu0 0
    %2696 = vmatpush2.bf16.msra.mxu0 0
    %2697 = vmatprep.subr.bf16.mxu0 0
    %2698 = vmatpush2.bf16.msra.mxu0 0
    %2699 = vmatprep.subr.bf16.mxu0 0
    %2700 = vmatpush2.bf16.msra.mxu0 0
    %2701 = vmatprep.subr.bf16.mxu0 0
    %2702 = vmatpush2.bf16.msra.mxu0 0
    %2703 = vmatprep.mubr.bf16.mxu0 0
    %2704 = vmatmul.mubr.bf16.gmra.mxu0 %v2615
    %v2705 = vpop.f32.mrf.mxu0
    %v2706 = vadd.f32 0.0, %v2705
    %v2707 = vpop.f32.mrf.mxu0
    %v2708 = vpop.f32.mrf.mxu0
    %v2709 = vadd.f32 0.0, %v2708
    %v2710 = vpop.f32.mrf.mxu0
    %2711 = vmatprep.mubr.bf16.mxu0 0
    %2712 = vmatmul.mubr.bf16.gmra.mxu0 %v2616
    %v2713 = vpop.f32.mrf.mxu0
    %v2714 = vadd.f32 0.0, %v2713
    %v2715 = vpop.f32.mrf.mxu0
    %v2716 = vpop.f32.mrf.mxu0
    %v2717 = vadd.f32 0.0, %v2716
    %v2718 = vpop.f32.mrf.mxu0
    %2719 = vmatprep.mubr.bf16.mxu0 0
    %2720 = vmatmul.mubr.bf16.gmra.mxu0 %v2617
    %v2721 = vpop.f32.mrf.mxu0
    %v2722 = vadd.f32 0.0, %v2721
    %v2723 = vpop.f32.mrf.mxu0
    %v2724 = vpop.f32.mrf.mxu0
    %v2725 = vadd.f32 0.0, %v2724
    %v2726 = vpop.f32.mrf.mxu0
    %2727 = vmatprep.mubr.bf16.mxu0 0
    %2728 = vmatmul.mubr.bf16.gmra.mxu0 %v2618
    %v2729 = vpop.f32.mrf.mxu0
    %v2730 = vadd.f32 0.0, %v2729
    %v2731 = vpop.f32.mrf.mxu0
    %v2732 = vpop.f32.mrf.mxu0
    %v2733 = vadd.f32 0.0, %v2732
    %v2734 = vpop.f32.mrf.mxu0
    %2735 = vmatprep.mubr.bf16.mxu0 0
    %2736 = vmatmul.mubr.bf16.gmra.mxu0 %v2619
    %v2737 = vpop.f32.mrf.mxu0
    %v2738 = vadd.f32 0.0, %v2737
    %v2739 = vpop.f32.mrf.mxu0
    %v2740 = vpop.f32.mrf.mxu0
    %v2741 = vadd.f32 0.0, %v2740
    %v2742 = vpop.f32.mrf.mxu0
    %2743 = vmatprep.mubr.bf16.mxu0 0
    %2744 = vmatmul.mubr.bf16.gmra.mxu0 %v2620
    %v2745 = vpop.f32.mrf.mxu0
    %v2746 = vadd.f32 0.0, %v2745
    %v2747 = vpop.f32.mrf.mxu0
    %v2748 = vpop.f32.mrf.mxu0
    %v2749 = vadd.f32 0.0, %v2748
    %v2750 = vpop.f32.mrf.mxu0
    %2751 = vmatprep.mubr.bf16.mxu0 0
    %2752 = vmatmul.mubr.bf16.gmra.mxu0 %v2621
    %v2753 = vpop.f32.mrf.mxu0
    %v2754 = vadd.f32 0.0, %v2753
    %v2755 = vpop.f32.mrf.mxu0
    %v2756 = vpop.f32.mrf.mxu0
    %v2757 = vadd.f32 0.0, %v2756
    %v2758 = vpop.f32.mrf.mxu0
    %2759 = vmatprep.mubr.bf16.mxu0 0
    %2760 = vmatmul.mubr.bf16.gmra.mxu0 %v2622
    %v2761 = vpop.f32.mrf.mxu0
    %v2762 = vadd.f32 0.0, %v2761
    %v2763 = vpop.f32.mrf.mxu0
    %v2764 = vpop.f32.mrf.mxu0
    %v2765 = vadd.f32 0.0, %v2764
    %v2766 = vpop.f32.mrf.mxu0
    %2767 = vdwg.mxu0
    %v2768 = vadd.f32 %v1509, %v2706
    %v2769 = vadd.f32 %v1510, %v2709
    %v2770 = vadd.f32 %v1511, %v2714
    %v2771 = vadd.f32 %v1512, %v2717
    %v2772 = vadd.f32 %v1513, %v2722
    %v2773 = vadd.f32 %v1514, %v2725
    %v2774 = vadd.f32 %v1515, %v2730
    %v2775 = vadd.f32 %v1516, %v2733
    %v2776 = vadd.f32 %v1517, %v2738
    %v2777 = vadd.f32 %v1518, %v2741
    %v2778 = vadd.f32 %v1519, %v2746
    %v2779 = vadd.f32 %v1520, %v2749
    %v2780 = vadd.f32 %v1521, %v2754
    %v2781 = vadd.f32 %v1522, %v2757
    %v2782 = vadd.f32 %v1523, %v2762
    %v2783 = vadd.f32 %v1524, %v2765
    %v2784 = vmul.f32 %v2768, %v2768
    %v2785 = vmul.f32 %v2769, %v2769
    %v2786 = vmul.f32 %v2770, %v2770
    %v2787 = vmul.f32 %v2771, %v2771
    %v2788 = vmul.f32 %v2772, %v2772
    %v2789 = vmul.f32 %v2773, %v2773
    %v2790 = vmul.f32 %v2774, %v2774
    %v2791 = vmul.f32 %v2775, %v2775
    %v2792 = vmul.f32 %v2776, %v2776
    %v2793 = vmul.f32 %v2777, %v2777
    %v2794 = vmul.f32 %v2778, %v2778
    %v2795 = vmul.f32 %v2779, %v2779
    %v2796 = vmul.f32 %v2780, %v2780
    %v2797 = vmul.f32 %v2781, %v2781
    %v2798 = vmul.f32 %v2782, %v2782
    %v2799 = vmul.f32 %v2783, %v2783
    %2800 = vadd.xlane.f32.xlu0 %v2784
    %v2801 = vpop.xlane.xlu0 %2800
    %2802 = vadd.xlane.f32.xlu0 %v2785
    %v2803 = vpop.xlane.xlu0 %2802
    %2804 = vadd.xlane.f32.xlu0 %v2786
    %v2805 = vpop.xlane.xlu0 %2804
    %2806 = vadd.xlane.f32.xlu0 %v2787
    %v2807 = vpop.xlane.xlu0 %2806
    %2808 = vadd.xlane.f32.xlu0 %v2788
    %v2809 = vpop.xlane.xlu0 %2808
    %2810 = vadd.xlane.f32.xlu0 %v2789
    %v2811 = vpop.xlane.xlu0 %2810
    %2812 = vadd.xlane.f32.xlu0 %v2790
    %v2813 = vpop.xlane.xlu0 %2812
    %2814 = vadd.xlane.f32.xlu0 %v2791
    %v2815 = vpop.xlane.xlu0 %2814
    %2816 = vadd.xlane.f32.xlu0 %v2792
    %v2817 = vpop.xlane.xlu0 %2816
    %2818 = vadd.xlane.f32.xlu0 %v2793
    %v2819 = vpop.xlane.xlu0 %2818
    %2820 = vadd.xlane.f32.xlu0 %v2794
    %v2821 = vpop.xlane.xlu0 %2820
    %2822 = vadd.xlane.f32.xlu0 %v2795
    %v2823 = vpop.xlane.xlu0 %2822
    %2824 = vadd.xlane.f32.xlu0 %v2796
    %v2825 = vpop.xlane.xlu0 %2824
    %2826 = vadd.xlane.f32.xlu0 %v2797
    %v2827 = vpop.xlane.xlu0 %2826
    %2828 = vadd.xlane.f32.xlu0 %v2798
    %v2829 = vpop.xlane.xlu0 %2828
    %2830 = vadd.xlane.f32.xlu0 %v2799
    %v2831 = vpop.xlane.xlu0 %2830
    %v2832 = vmul.f32 %v2801, %v259
    %v2833 = vmul.f32 %v2803, %v259
    %v2834 = vmul.f32 %v2805, %v259
    %v2835 = vmul.f32 %v2807, %v259
    %v2836 = vmul.f32 %v2809, %v259
    %v2837 = vmul.f32 %v2811, %v259
    %v2838 = vmul.f32 %v2813, %v259
    %v2839 = vmul.f32 %v2815, %v259
    %v2840 = vmul.f32 %v2817, %v259
    %v2841 = vmul.f32 %v2819, %v259
    %v2842 = vmul.f32 %v2821, %v259
    %v2843 = vmul.f32 %v2823, %v259
    %v2844 = vmul.f32 %v2825, %v259
    %v2845 = vmul.f32 %v2827, %v259
    %v2846 = vmul.f32 %v2829, %v259
    %v2847 = vmul.f32 %v2831, %v259
    %v2848 = vadd.f32 %v2832, 1e-06
    %v2849 = vadd.f32 %v2833, 1e-06
    %v2850 = vadd.f32 %v2834, 1e-06
    %v2851 = vadd.f32 %v2835, 1e-06
    %v2852 = vadd.f32 %v2836, 1e-06
    %v2853 = vadd.f32 %v2837, 1e-06
    %v2854 = vadd.f32 %v2838, 1e-06
    %v2855 = vadd.f32 %v2839, 1e-06
    %v2856 = vadd.f32 %v2840, 1e-06
    %v2857 = vadd.f32 %v2841, 1e-06
    %v2858 = vadd.f32 %v2842, 1e-06
    %v2859 = vadd.f32 %v2843, 1e-06
    %v2860 = vadd.f32 %v2844, 1e-06
    %v2861 = vadd.f32 %v2845, 1e-06
    %v2862 = vadd.f32 %v2846, 1e-06
    %v2863 = vadd.f32 %v2847, 1e-06
    %v2864 = vrsqrt.pop %v2848
    %v2865 = vrsqrt.pop %v2849
    %v2866 = vrsqrt.pop %v2850
    %v2867 = vrsqrt.pop %v2851
    %v2868 = vrsqrt.pop %v2852
    %v2869 = vrsqrt.pop %v2853
    %v2870 = vrsqrt.pop %v2854
    %v2871 = vrsqrt.pop %v2855
    %v2872 = vrsqrt.pop %v2856
    %v2873 = vrsqrt.pop %v2857
    %v2874 = vrsqrt.pop %v2858
    %v2875 = vrsqrt.pop %v2859
    %v2876 = vrsqrt.pop %v2860
    %v2877 = vrsqrt.pop %v2861
    %v2878 = vrsqrt.pop %v2862
    %v2879 = vrsqrt.pop %v2863
    %v2880 = vmul.f32 %v2768, %v2864
    %v2881 = vmul.f32 %v2769, %v2865
    %v2882 = vmul.f32 %v2770, %v2866
    %v2883 = vmul.f32 %v2771, %v2867
    %v2884 = vmul.f32 %v2772, %v2868
    %v2885 = vmul.f32 %v2773, %v2869
    %v2886 = vmul.f32 %v2774, %v2870
    %v2887 = vmul.f32 %v2775, %v2871
    %v2888 = vmul.f32 %v2776, %v2872
    %v2889 = vmul.f32 %v2777, %v2873
    %v2890 = vmul.f32 %v2778, %v2874
    %v2891 = vmul.f32 %v2779, %v2875
    %v2892 = vmul.f32 %v2780, %v2876
    %v2893 = vmul.f32 %v2781, %v2877
    %v2894 = vmul.f32 %v2782, %v2878
    %v2895 = vmul.f32 %v2783, %v2879
    %v2897 = vlaneseq
    %v2898 = vshrl.u32 %v2897, 7
    %v2899 = vsub.s32 0, %v2898
    %v2900 = vrot.slane %v1622, %v2899
    %v2902 = vmul.f32 %v2880, %v2900
    %v2903 = vmul.f32 %v2881, %v2900
    %v2904 = vmul.f32 %v2882, %v2900
    %v2905 = vmul.f32 %v2883, %v2900
    %v2906 = vmul.f32 %v2884, %v2900
    %v2907 = vmul.f32 %v2885, %v2900
    %v2908 = vmul.f32 %v2886, %v2900
    %v2909 = vmul.f32 %v2887, %v2900
    %v2910 = vmul.f32 %v2888, %v2900
    %v2911 = vmul.f32 %v2889, %v2900
    %v2912 = vmul.f32 %v2890, %v2900
    %v2913 = vmul.f32 %v2891, %v2900
    %v2914 = vmul.f32 %v2892, %v2900
    %v2915 = vmul.f32 %v2893, %v2900
    %v2916 = vmul.f32 %v2894, %v2900
    %v2917 = vmul.f32 %v2895, %v2900
    %v2918 = vpack.c.bf16 %v2903, %v2902
    %v2919 = vpack.c.bf16 %v2905, %v2904
    %v2920 = vpack.c.bf16 %v2907, %v2906
    %v2921 = vpack.c.bf16 %v2909, %v2908
    %v2922 = vpack.c.bf16 %v2911, %v2910
    %v2923 = vpack.c.bf16 %v2913, %v2912
    %v2924 = vpack.c.bf16 %v2915, %v2914
    %v2925 = vpack.c.bf16 %v2917, %v2916
    %v2942 = vunpack.c.l.b16 %v1573
    %v2943 = vunpack.c.h.b16 %v1573
    %v2944 = vunpack.c.l.b16 %v1574
    %v2945 = vunpack.c.h.b16 %v1574
    %v2946 = vunpack.c.l.b16 %v1575
    %v2947 = vunpack.c.h.b16 %v1575
    %v2948 = vunpack.c.l.b16 %v1576
    %v2949 = vunpack.c.h.b16 %v1576
    %v2950 = vunpack.c.l.b16 %v1577
    %v2951 = vunpack.c.h.b16 %v1577
    %v2952 = vunpack.c.l.b16 %v1578
    %v2953 = vunpack.c.h.b16 %v1578
    %v2954 = vunpack.c.l.b16 %v1579
    %v2955 = vunpack.c.h.b16 %v1579
    %v2956 = vunpack.c.l.b16 %v1580
    %v2957 = vunpack.c.h.b16 %v1580
    %v2958 = vunpack.c.l.b16 %v1581
    %v2959 = vunpack.c.h.b16 %v1581
    %v2960 = vunpack.c.l.b16 %v1582
    %v2961 = vunpack.c.h.b16 %v1582
    %v2962 = vunpack.c.l.b16 %v1583
    %v2963 = vunpack.c.h.b16 %v1583
    %v2964 = vunpack.c.l.b16 %v1584
    %v2965 = vunpack.c.h.b16 %v1584
    %v2966 = vunpack.c.l.b16 %v1585
    %v2967 = vunpack.c.h.b16 %v1585
    %v2968 = vunpack.c.l.b16 %v1586
    %v2969 = vunpack.c.h.b16 %v1586
    %v2970 = vunpack.c.l.b16 %v1587
    %v2971 = vunpack.c.h.b16 %v1587
    %v2972 = vunpack.c.l.b16 %v1588
    %v2973 = vunpack.c.h.b16 %v1588
    %v2974 = vpack.c.b16 %v2944, %v2942
    %v2975 = vpack.c.b16 %v2945, %v2943
    %v2976 = vpack.c.b16 %v2948, %v2946
    %v2977 = vpack.c.b16 %v2949, %v2947
    %v2978 = vpack.c.b16 %v2952, %v2950
    %v2979 = vpack.c.b16 %v2953, %v2951
    %v2980 = vpack.c.b16 %v2956, %v2954
    %v2981 = vpack.c.b16 %v2957, %v2955
    %v2982 = vpack.c.b16 %v2960, %v2958
    %v2983 = vpack.c.b16 %v2961, %v2959
    %v2984 = vpack.c.b16 %v2964, %v2962
    %v2985 = vpack.c.b16 %v2965, %v2963
    %v2986 = vpack.c.b16 %v2968, %v2966
    %v2987 = vpack.c.b16 %v2969, %v2967
    %v2988 = vpack.c.b16 %v2972, %v2970
    %v2989 = vpack.c.b16 %v2973, %v2971
    %3006 = vmatprep.subr.bf16.mxu0 %v2989
    %3007 = vmatpush1.bf16.msra.mxu0 %v2988
    %3008 = vmatprep.subr.bf16.mxu0 %v2987
    %3009 = vmatpush1.bf16.msra.mxu0 %v2986
    %3010 = vmatprep.subr.bf16.mxu0 %v2985
    %3011 = vmatpush1.bf16.msra.mxu0 %v2984
    %3012 = vmatprep.subr.bf16.mxu0 %v2983
    %3013 = vmatpush1.bf16.msra.mxu0 %v2982
    %3014 = vmatprep.subr.bf16.mxu0 %v2981
    %3015 = vmatpush1.bf16.msra.mxu0 %v2980
    %3016 = vmatprep.subr.bf16.mxu0 %v2979
    %3017 = vmatpush1.bf16.msra.mxu0 %v2978
    %3018 = vmatprep.subr.bf16.mxu0 %v2977
    %3019 = vmatpush1.bf16.msra.mxu0 %v2976
    %3020 = vmatprep.subr.bf16.mxu0 %v2975
    %3021 = vmatpush1.bf16.msra.mxu0 %v2974
    %3022 = vmatprep.subr.bf16.mxu0 0
    %3023 = vmatpush2.bf16.msra.mxu0 0
    %3024 = vmatprep.subr.bf16.mxu0 0
    %3025 = vmatpush2.bf16.msra.mxu0 0
    %3026 = vmatprep.subr.bf16.mxu0 0
    %3027 = vmatpush2.bf16.msra.mxu0 0
    %3028 = vmatprep.subr.bf16.mxu0 0
    %3029 = vmatpush2.bf16.msra.mxu0 0
    %3030 = vmatprep.subr.bf16.mxu0 0
    %3031 = vmatpush2.bf16.msra.mxu0 0
    %3032 = vmatprep.subr.bf16.mxu0 0
    %3033 = vmatpush2.bf16.msra.mxu0 0
    %3034 = vmatprep.subr.bf16.mxu0 0
    %3035 = vmatpush2.bf16.msra.mxu0 0
    %3036 = vmatprep.subr.bf16.mxu0 0
    %3037 = vmatpush2.bf16.msra.mxu0 0
    %3038 = vmatprep.mubr.bf16.mxu0 0
    %3039 = vmatmul.mubr.bf16.gmra.mxu0 %v2918
    %v3040 = vpop.f32.mrf.mxu0
    %v3041 = vadd.f32 0.0, %v3040
    %v3042 = vpop.f32.mrf.mxu0
    %v3043 = vadd.f32 0.0, %v3042
    %v3044 = vpop.f32.mrf.mxu0
    %v3045 = vadd.f32 0.0, %v3044
    %v3046 = vpop.f32.mrf.mxu0
    %v3047 = vadd.f32 0.0, %v3046
    %3048 = vmatprep.mubr.bf16.mxu0 0
    %3049 = vmatmul.mubr.bf16.gmra.mxu0 %v2919
    %v3050 = vpop.f32.mrf.mxu0
    %v3051 = vadd.f32 0.0, %v3050
    %v3052 = vpop.f32.mrf.mxu0
    %v3053 = vadd.f32 0.0, %v3052
    %v3054 = vpop.f32.mrf.mxu0
    %v3055 = vadd.f32 0.0, %v3054
    %v3056 = vpop.f32.mrf.mxu0
    %v3057 = vadd.f32 0.0, %v3056
    %3058 = vmatprep.mubr.bf16.mxu0 0
    %3059 = vmatmul.mubr.bf16.gmra.mxu0 %v2920
    %v3060 = vpop.f32.mrf.mxu0
    %v3061 = vadd.f32 0.0, %v3060
    %v3062 = vpop.f32.mrf.mxu0
    %v3063 = vadd.f32 0.0, %v3062
    %v3064 = vpop.f32.mrf.mxu0
    %v3065 = vadd.f32 0.0, %v3064
    %v3066 = vpop.f32.mrf.mxu0
    %v3067 = vadd.f32 0.0, %v3066
    %3068 = vmatprep.mubr.bf16.mxu0 0
    %3069 = vmatmul.mubr.bf16.gmra.mxu0 %v2921
    %v3070 = vpop.f32.mrf.mxu0
    %v3071 = vadd.f32 0.0, %v3070
    %v3072 = vpop.f32.mrf.mxu0
    %v3073 = vadd.f32 0.0, %v3072
    %v3074 = vpop.f32.mrf.mxu0
    %v3075 = vadd.f32 0.0, %v3074
    %v3076 = vpop.f32.mrf.mxu0
    %v3077 = vadd.f32 0.0, %v3076
    %3078 = vmatprep.mubr.bf16.mxu0 0
    %3079 = vmatmul.mubr.bf16.gmra.mxu0 %v2922
    %v3080 = vpop.f32.mrf.mxu0
    %v3081 = vadd.f32 0.0, %v3080
    %v3082 = vpop.f32.mrf.mxu0
    %v3083 = vadd.f32 0.0, %v3082
    %v3084 = vpop.f32.mrf.mxu0
    %v3085 = vadd.f32 0.0, %v3084
    %v3086 = vpop.f32.mrf.mxu0
    %v3087 = vadd.f32 0.0, %v3086
    %3088 = vmatprep.mubr.bf16.mxu0 0
    %3089 = vmatmul.mubr.bf16.gmra.mxu0 %v2923
    %v3090 = vpop.f32.mrf.mxu0
    %v3091 = vadd.f32 0.0, %v3090
    %v3092 = vpop.f32.mrf.mxu0
    %v3093 = vadd.f32 0.0, %v3092
    %v3094 = vpop.f32.mrf.mxu0
    %v3095 = vadd.f32 0.0, %v3094
    %v3096 = vpop.f32.mrf.mxu0
    %v3097 = vadd.f32 0.0, %v3096
    %3098 = vmatprep.mubr.bf16.mxu0 0
    %3099 = vmatmul.mubr.bf16.gmra.mxu0 %v2924
    %v3100 = vpop.f32.mrf.mxu0
    %v3101 = vadd.f32 0.0, %v3100
    %v3102 = vpop.f32.mrf.mxu0
    %v3103 = vadd.f32 0.0, %v3102
    %v3104 = vpop.f32.mrf.mxu0
    %v3105 = vadd.f32 0.0, %v3104
    %v3106 = vpop.f32.mrf.mxu0
    %v3107 = vadd.f32 0.0, %v3106
    %3108 = vmatprep.mubr.bf16.mxu0 0
    %3109 = vmatmul.mubr.bf16.gmra.mxu0 %v2925
    %v3110 = vpop.f32.mrf.mxu0
    %v3111 = vadd.f32 0.0, %v3110
    %v3112 = vpop.f32.mrf.mxu0
    %v3113 = vadd.f32 0.0, %v3112
    %v3114 = vpop.f32.mrf.mxu0
    %v3115 = vadd.f32 0.0, %v3114
    %v3116 = vpop.f32.mrf.mxu0
    %v3117 = vadd.f32 0.0, %v3116
    %3118 = vdwg.mxu0
    %v3119 = vmax.f32 %v3041, 0.0
    %v3120 = vmax.f32 %v3043, 0.0
    %v3121 = vmax.f32 %v3045, 0.0
    %v3122 = vmax.f32 %v3047, 0.0
    %v3123 = vmax.f32 %v3051, 0.0
    %v3124 = vmax.f32 %v3053, 0.0
    %v3125 = vmax.f32 %v3055, 0.0
    %v3126 = vmax.f32 %v3057, 0.0
    %v3127 = vmax.f32 %v3061, 0.0
    %v3128 = vmax.f32 %v3063, 0.0
    %v3129 = vmax.f32 %v3065, 0.0
    %v3130 = vmax.f32 %v3067, 0.0
    %v3131 = vmax.f32 %v3071, 0.0
    %v3132 = vmax.f32 %v3073, 0.0
    %v3133 = vmax.f32 %v3075, 0.0
    %v3134 = vmax.f32 %v3077, 0.0
    %v3135 = vmax.f32 %v3081, 0.0
    %v3136 = vmax.f32 %v3083, 0.0
    %v3137 = vmax.f32 %v3085, 0.0
    %v3138 = vmax.f32 %v3087, 0.0
    %v3139 = vmax.f32 %v3091, 0.0
    %v3140 = vmax.f32 %v3093, 0.0
    %v3141 = vmax.f32 %v3095, 0.0
    %v3142 = vmax.f32 %v3097, 0.0
    %v3143 = vmax.f32 %v3101, 0.0
    %v3144 = vmax.f32 %v3103, 0.0
    %v3145 = vmax.f32 %v3105, 0.0
    %v3146 = vmax.f32 %v3107, 0.0
    %v3147 = vmax.f32 %v3111, 0.0
    %v3148 = vmax.f32 %v3113, 0.0
    %v3149 = vmax.f32 %v3115, 0.0
    %v3150 = vmax.f32 %v3117, 0.0
    %v3151 = vpack.c.bf16 %v3121, %v3119
    %v3152 = vpack.c.bf16 %v3122, %v3120
    %v3153 = vpack.c.bf16 %v3125, %v3123
    %v3154 = vpack.c.bf16 %v3126, %v3124
    %v3155 = vpack.c.bf16 %v3129, %v3127
    %v3156 = vpack.c.bf16 %v3130, %v3128
    %v3157 = vpack.c.bf16 %v3133, %v3131
    %v3158 = vpack.c.bf16 %v3134, %v3132
    %v3159 = vpack.c.bf16 %v3137, %v3135
    %v3160 = vpack.c.bf16 %v3138, %v3136
    %v3161 = vpack.c.bf16 %v3141, %v3139
    %v3162 = vpack.c.bf16 %v3142, %v3140
    %v3163 = vpack.c.bf16 %v3145, %v3143
    %v3164 = vpack.c.bf16 %v3146, %v3144
    %v3165 = vpack.c.bf16 %v3149, %v3147
    %v3166 = vpack.c.bf16 %v3150, %v3148
    %v3199 = vunpack.c.l.b16 %v1589
    %v3200 = vunpack.c.l.b16 %v1590
    %v3201 = vunpack.c.l.b16 %v1591
    %v3202 = vunpack.c.l.b16 %v1592
    %v3203 = vunpack.c.l.b16 %v1593
    %v3204 = vunpack.c.l.b16 %v1594
    %v3205 = vunpack.c.l.b16 %v1595
    %v3206 = vunpack.c.l.b16 %v1596
    %v3207 = vunpack.c.l.b16 %v1597
    %v3208 = vunpack.c.l.b16 %v1598
    %v3209 = vunpack.c.l.b16 %v1599
    %v3210 = vunpack.c.l.b16 %v1600
    %v3211 = vunpack.c.l.b16 %v1601
    %v3212 = vunpack.c.l.b16 %v1602
    %v3213 = vunpack.c.l.b16 %v1603
    %v3214 = vunpack.c.l.b16 %v1604
    %v3215 = vunpack.c.l.b16 %v1605
    %v3216 = vunpack.c.l.b16 %v1606
    %v3217 = vunpack.c.l.b16 %v1607
    %v3218 = vunpack.c.l.b16 %v1608
    %v3219 = vunpack.c.l.b16 %v1609
    %v3220 = vunpack.c.l.b16 %v1610
    %v3221 = vunpack.c.l.b16 %v1611
    %v3222 = vunpack.c.l.b16 %v1612
    %v3223 = vunpack.c.l.b16 %v1613
    %v3224 = vunpack.c.l.b16 %v1614
    %v3225 = vunpack.c.l.b16 %v1615
    %v3226 = vunpack.c.l.b16 %v1616
    %v3227 = vunpack.c.l.b16 %v1617
    %v3228 = vunpack.c.l.b16 %v1618
    %v3229 = vunpack.c.l.b16 %v1619
    %v3230 = vunpack.c.l.b16 %v1620
    %v3231 = vpack.c.b16 %v3200, %v3199
    %v3232 = vpack.c.b16 %v3202, %v3201
    %v3233 = vpack.c.b16 %v3204, %v3203
    %v3234 = vpack.c.b16 %v3206, %v3205
    %v3235 = vpack.c.b16 %v3208, %v3207
    %v3236 = vpack.c.b16 %v3210, %v3209
    %v3237 = vpack.c.b16 %v3212, %v3211
    %v3238 = vpack.c.b16 %v3214, %v3213
    %v3239 = vpack.c.b16 %v3216, %v3215
    %v3240 = vpack.c.b16 %v3218, %v3217
    %v3241 = vpack.c.b16 %v3220, %v3219
    %v3242 = vpack.c.b16 %v3222, %v3221
    %v3243 = vpack.c.b16 %v3224, %v3223
    %v3244 = vpack.c.b16 %v3226, %v3225
    %v3245 = vpack.c.b16 %v3228, %v3227
    %v3246 = vpack.c.b16 %v3230, %v3229
    %3263 = vmatprep.subr.bf16.mxu0 0
    %3264 = vmatpush1.bf16.msra.mxu0 %v3238
    %3265 = vmatprep.subr.bf16.mxu0 0
    %3266 = vmatpush1.bf16.msra.mxu0 %v3237
    %3267 = vmatprep.subr.bf16.mxu0 0
    %3268 = vmatpush1.bf16.msra.mxu0 %v3236
    %3269 = vmatprep.subr.bf16.mxu0 0
    %3270 = vmatpush1.bf16.msra.mxu0 %v3235
    %3271 = vmatprep.subr.bf16.mxu0 0
    %3272 = vmatpush1.bf16.msra.mxu0 %v3234
    %3273 = vmatprep.subr.bf16.mxu0 0
    %3274 = vmatpush1.bf16.msra.mxu0 %v3233
    %3275 = vmatprep.subr.bf16.mxu0 0
    %3276 = vmatpush1.bf16.msra.mxu0 %v3232
    %3277 = vmatprep.subr.bf16.mxu0 0
    %3278 = vmatpush1.bf16.msra.mxu0 %v3231
    %3279 = vmatprep.subr.bf16.mxu0 0
    %3280 = vmatpush2.bf16.msra.mxu0 %v3246
    %3281 = vmatprep.subr.bf16.mxu0 0
    %3282 = vmatpush2.bf16.msra.mxu0 %v3245
    %3283 = vmatprep.subr.bf16.mxu0 0
    %3284 = vmatpush2.bf16.msra.mxu0 %v3244
    %3285 = vmatprep.subr.bf16.mxu0 0
    %3286 = vmatpush2.bf16.msra.mxu0 %v3243
    %3287 = vmatprep.subr.bf16.mxu0 0
    %3288 = vmatpush2.bf16.msra.mxu0 %v3242
    %3289 = vmatprep.subr.bf16.mxu0 0
    %3290 = vmatpush2.bf16.msra.mxu0 %v3241
    %3291 = vmatprep.subr.bf16.mxu0 0
    %3292 = vmatpush2.bf16.msra.mxu0 %v3240
    %3293 = vmatprep.subr.bf16.mxu0 0
    %3294 = vmatpush2.bf16.msra.mxu0 %v3239
    %3295 = vmatprep.mubr.bf16.mxu0 %v3152
    %3296 = vmatmul.mubr.bf16.gmra.mxu0 %v3151
    %v3297 = vpop.f32.mrf.mxu0
    %v3298 = vadd.f32 0.0, %v3297
    %v3299 = vpop.f32.mrf.mxu0
    %v3300 = vpop.f32.mrf.mxu0
    %v3301 = vadd.f32 0.0, %v3300
    %v3302 = vpop.f32.mrf.mxu0
    %3303 = vmatprep.mubr.bf16.mxu0 %v3154
    %3304 = vmatmul.mubr.bf16.gmra.mxu0 %v3153
    %v3305 = vpop.f32.mrf.mxu0
    %v3306 = vadd.f32 0.0, %v3305
    %v3307 = vpop.f32.mrf.mxu0
    %v3308 = vpop.f32.mrf.mxu0
    %v3309 = vadd.f32 0.0, %v3308
    %v3310 = vpop.f32.mrf.mxu0
    %3311 = vmatprep.mubr.bf16.mxu0 %v3156
    %3312 = vmatmul.mubr.bf16.gmra.mxu0 %v3155
    %v3313 = vpop.f32.mrf.mxu0
    %v3314 = vadd.f32 0.0, %v3313
    %v3315 = vpop.f32.mrf.mxu0
    %v3316 = vpop.f32.mrf.mxu0
    %v3317 = vadd.f32 0.0, %v3316
    %v3318 = vpop.f32.mrf.mxu0
    %3319 = vmatprep.mubr.bf16.mxu0 %v3158
    %3320 = vmatmul.mubr.bf16.gmra.mxu0 %v3157
    %v3321 = vpop.f32.mrf.mxu0
    %v3322 = vadd.f32 0.0, %v3321
    %v3323 = vpop.f32.mrf.mxu0
    %v3324 = vpop.f32.mrf.mxu0
    %v3325 = vadd.f32 0.0, %v3324
    %v3326 = vpop.f32.mrf.mxu0
    %3327 = vmatprep.mubr.bf16.mxu0 %v3160
    %3328 = vmatmul.mubr.bf16.gmra.mxu0 %v3159
    %v3329 = vpop.f32.mrf.mxu0
    %v3330 = vadd.f32 0.0, %v3329
    %v3331 = vpop.f32.mrf.mxu0
    %v3332 = vpop.f32.mrf.mxu0
    %v3333 = vadd.f32 0.0, %v3332
    %v3334 = vpop.f32.mrf.mxu0
    %3335 = vmatprep.mubr.bf16.mxu0 %v3162
    %3336 = vmatmul.mubr.bf16.gmra.mxu0 %v3161
    %v3337 = vpop.f32.mrf.mxu0
    %v3338 = vadd.f32 0.0, %v3337
    %v3339 = vpop.f32.mrf.mxu0
    %v3340 = vpop.f32.mrf.mxu0
    %v3341 = vadd.f32 0.0, %v3340
    %v3342 = vpop.f32.mrf.mxu0
    %3343 = vmatprep.mubr.bf16.mxu0 %v3164
    %3344 = vmatmul.mubr.bf16.gmra.mxu0 %v3163
    %v3345 = vpop.f32.mrf.mxu0
    %v3346 = vadd.f32 0.0, %v3345
    %v3347 = vpop.f32.mrf.mxu0
    %v3348 = vpop.f32.mrf.mxu0
    %v3349 = vadd.f32 0.0, %v3348
    %v3350 = vpop.f32.mrf.mxu0
    %3351 = vmatprep.mubr.bf16.mxu0 %v3166
    %3352 = vmatmul.mubr.bf16.gmra.mxu0 %v3165
    %v3353 = vpop.f32.mrf.mxu0
    %v3354 = vadd.f32 0.0, %v3353
    %v3355 = vpop.f32.mrf.mxu0
    %v3356 = vpop.f32.mrf.mxu0
    %v3357 = vadd.f32 0.0, %v3356
    %v3358 = vpop.f32.mrf.mxu0
    %3359 = vdwg.mxu0
    %v3360 = vadd.f32 %v2768, %v3298
    %v3361 = vadd.f32 %v2769, %v3301
    %v3362 = vadd.f32 %v2770, %v3306
    %v3363 = vadd.f32 %v2771, %v3309
    %v3364 = vadd.f32 %v2772, %v3314
    %v3365 = vadd.f32 %v2773, %v3317
    %v3366 = vadd.f32 %v2774, %v3322
    %v3367 = vadd.f32 %v2775, %v3325
    %v3368 = vadd.f32 %v2776, %v3330
    %v3369 = vadd.f32 %v2777, %v3333
    %v3370 = vadd.f32 %v2778, %v3338
    %v3371 = vadd.f32 %v2779, %v3341
    %v3372 = vadd.f32 %v2780, %v3346
    %v3373 = vadd.f32 %v2781, %v3349
    %v3374 = vadd.f32 %v2782, %v3354
    %v3375 = vadd.f32 %v2783, %v3357
    %3376 = vst [vmem:[%s17] sm:$0xff] %v3360
    %3377 = vst [vmem:[%s17 + $0x8] sm:$0xff] %v3361
    %3378 = vst [vmem:[%s17 + $0x10] sm:$0xff] %v3362
    %3379 = vst [vmem:[%s17 + $0x18] sm:$0xff] %v3363
    %3380 = vst [vmem:[%s17 + $0x20] sm:$0xff] %v3364
    %3381 = vst [vmem:[%s17 + $0x28] sm:$0xff] %v3365
    %3382 = vst [vmem:[%s17 + $0x30] sm:$0xff] %v3366
    %3383 = vst [vmem:[%s17 + $0x38] sm:$0xff] %v3367
    %3384 = vst [vmem:[%s17 + $0x40] sm:$0xff] %v3368
    %3385 = vst [vmem:[%s17 + $0x48] sm:$0xff] %v3369
    %3386 = vst [vmem:[%s17 + $0x50] sm:$0xff] %v3370
    %3387 = vst [vmem:[%s17 + $0x58] sm:$0xff] %v3371
    %3388 = vst [vmem:[%s17 + $0x60] sm:$0xff] %v3372
    %3389 = vst [vmem:[%s17 + $0x68] sm:$0xff] %v3373
    %3390 = vst [vmem:[%s17 + $0x70] sm:$0xff] %v3374
    %3391 = vst [vmem:[%s17 + $0x78] sm:$0xff] %v3375
    // Predicated region
    $region74: #{drive_t5_vision_forward.1} parent=1 // pred_check
      _
    $region75: #{drive_t5_vision_forward.1} parent=1 // pred_check_branch
      %3393 = sbr.rel (0) target = $region77
    $region76: #{drive_t5_vision_forward.1} parent=1 // pred_region
      _
    $region77: #{drive_t5_vision_forward.1} parent=1 // pred_fallthru
      _
    // Predicated region
    $region78: #{drive_t5_vision_forward.1} parent=1 // pred_check
      _
    $region79: #{drive_t5_vision_forward.1} parent=1 // pred_check_branch
      %3395 = sbr.rel (0) target = $region81
    $region80: #{drive_t5_vision_forward.1} parent=1 // pred_region
      _
    $region81: #{drive_t5_vision_forward.1} parent=1 // pred_fallthru
      _
    %3396 = vsyncpa [#allocation4], 1

</llo_original>
